<compile_context>
chip_gen: v7x
topology: tpu7x:2x2x1
jax: 0.10.0
libtpu: 0.0.40
codegen_flags: <defaults>
</compile_context>

<pallas_src>
import jax
import jax.numpy as jnp
from jax import lax
from jax.experimental import pallas as pl
from jax.experimental.pallas import tpu as pltpu

NUM_SCALES = 4    # GradientLoss(scales=4)
NUM_STATS = 10    # scale, M(=a11), data_num, g_num[0..3], m_sub[1..3]
_LANES = 128
_RED_COLS = 8     # width of the MXU lane-reduction RHS (kept small & cheap)


def _shift_left_cols(x, k):
    """out[:, j] = x[:, j + k] for j < W - k.

    The wrapped tail columns are garbage and are zeroed by the caller's
    column selector (which is applied inside the MXU reduction).
    """
    if k == 0:
        return x
    return jnp.concatenate([x[:, k:], x[:, :k]], axis=1)


def _shift_up_rows(x, k):
    """out[i, :] = x[i + k, :] for i < H - k (wrapped tail rows zeroed by
    the caller's row selector)."""
    if k == 0:
        return x
    return jnp.concatenate([x[k:, :], x[:k, :]], axis=0)


def _sel_sum(x, col_sel, row_sel):
    """sum_{i,j} x[i, j] * col_sel[j] * row_sel[i].

    col_sel is a (W, _RED_COLS) f32 matrix (selector replicated across the
    tiny output dim) so the lane reduction + column subsampling happen in one
    MXU matmul; the epilogue is a cheap (H, 1) multiply + sum.
    """
    r = lax.dot_general(x, col_sel, (((1,), (0,)), ((), ())),
                        preferred_element_type=jnp.float32)   # (H, _RED_COLS)
    return jnp.sum(r[:, :1] * row_sel)


def _ssi_stats_kernel(pred_ref, targ_ref, mask_ref, out_ref):
    _, H, W = pred_ref.shape

    p = pred_ref[0].astype(jnp.float32)   # (H, W)
    t = targ_ref[0].astype(jnp.float32)
    m = mask_ref[0].astype(jnp.float32)

    # --- compute_scale_and_shift: 2x2 normal equations (VPU, full f32) ---
    mp = m * p
    a00 = jnp.sum(mp * p)
    a01 = jnp.sum(mp)
    a11 = jnp.sum(m)
    b0 = jnp.sum(mp * t)
    b1 = jnp.sum(m * t)
    det = a00 * a11 - a01 * a01
    det_safe = jnp.where(det != 0.0, det, 1.0)
    scale = jnp.where(det != 0.0, (a11 * b0 - a01 * b1) / det_safe, 0.0)
    shift = jnp.where(det != 0.0, (-a01 * b0 + a00 * b1) / det_safe, 0.0)

    # --- scale/shift-invariant residual ---
    res = scale * p + shift - t
    d = m * res                              # masked residual ("diff" in torch)

    # Selector building blocks: (W, _RED_COLS) sublane iota feeds column
    # selectors straight into the MXU RHS (no (H, W) selector temporaries),
    # (H, 1) iota gives the row selectors.
    cw = lax.broadcasted_iota(jnp.int32, (W, _RED_COLS), 0)
    rh = lax.broadcasted_iota(jnp.int32, (H, 1), 0)
    ones_col = jnp.ones((W, _RED_COLS), jnp.float32)
    ones_row = jnp.ones((H, 1), jnp.float32)

    # Masked MSE numerator: sum(m * res * res), lane-reduced on the MXU.
    data_num = _sel_sum(d * res, ones_col, ones_row)

    g_nums = []
    m_subs = []   # scales >= 1 only; scale 0 mask sum is a11 (already computed)
    for s in range(NUM_SCALES):
        step = 1 << s
        on_col = (cw & (step - 1)) == 0                    # kept columns
        col_f = on_col.astype(jnp.float32)                 # (W, _RED_COLS)
        row_f = ((rh & (step - 1)) == 0).astype(jnp.float32)   # (H, 1)

        g = jnp.float32(0.0)
        if W > step:
            # x-gradient of the [::step, ::step] image: pairs (j, j + step).
            d_x = _shift_left_cols(d, step)
            m_x = _shift_left_cols(m, step)
            gx = jnp.abs(d_x - d) * (m_x * m)
            colx_f = (on_col & (cw < W - step)).astype(jnp.float32)
            g = g + _sel_sum(gx, colx_f, row_f)
        if H > step:
            # y-gradient of the [::step, ::step] image: pairs (i, i + step).
            d_y = _shift_up_rows(d, step)
            m_y = _shift_up_rows(m, step)
            gy = jnp.abs(d_y - d) * (m_y * m)
            rowy_f = row_f * (rh < H - step).astype(jnp.float32)
            g = g + _sel_sum(gy, col_f, rowy_f)
        g_nums.append(g)

        if s > 0:
            m_subs.append(_sel_sum(m, col_f, row_f))

    # --- pack per-image scalars into one lane-dense (1, 128) row ---
    vals = [scale, a11, data_num] + g_nums + m_subs        # NUM_STATS scalars
    lane = lax.broadcasted_iota(jnp.int32, (1, _LANES), 1)
    row = jnp.zeros((1, _LANES), jnp.float32)
    for k, v in enumerate(vals):
        row = row + (lane == k).astype(jnp.float32) * v
    out_ref[0] = row


def _compute_ssi_stats(prediction, target, mask):
    B, H, W = prediction.shape
    assert target.shape == (B, H, W) and mask.shape == (B, H, W)

    # VMEM budget: double-buffered input blocks + ~16 full-size f32
    # temporaries + small selector constants.  Cap at 90% of the physical
    # VMEM of whatever generation we are on (v5e/v6e: 128 MiB, v7x: 64 MiB).
    in_bytes = (prediction.dtype.itemsize + target.dtype.itemsize
                + mask.dtype.itemsize) * H * W
    f32_img = H * W * 4
    vmem_needed = 2 * in_bytes + 16 * f32_img + (2 << 20)
    try:
        vmem_cap = int(pltpu.get_tpu_info().vmem_capacity_bytes)
    except Exception:
        vmem_cap = 64 << 20    # conservative fallback (v7x physical VMEM)
    vmem_limit = int(min(max(vmem_needed, 32 << 20), int(vmem_cap * 0.9)))
    # TODO(synk): for images too large to fit a whole (H, W) block, switch to
    # a two-pass row-tiled variant (normal-eq sums first, then residual /
    # gradient partials with scale & shift passed via scalar prefetch).

    out = pl.pallas_call(
        _ssi_stats_kernel,
        out_shape=jax.ShapeDtypeStruct((B, 1, _LANES), jnp.float32),
        grid_spec=pltpu.PrefetchScalarGridSpec(
            num_scalar_prefetch=0,
            grid=(B,),
            in_specs=[
                pl.BlockSpec((1, H, W), lambda b: (b, 0, 0)),
                pl.BlockSpec((1, H, W), lambda b: (b, 0, 0)),
                pl.BlockSpec((1, H, W), lambda b: (b, 0, 0)),
            ],
            out_specs=pl.BlockSpec((1, 1, _LANES), lambda b: (b, 0, 0)),
        ),
        compiler_params=pltpu.CompilerParams(
            dimension_semantics=("parallel",),
            vmem_limit_bytes=vmem_limit,
        ),
    )(prediction, target, mask)
    return out[:, 0, :NUM_STATS]   # (B, NUM_STATS)


def scale_and_shift_invariant_loss(prediction, target, mask,
                                   alpha=0.5, scales=NUM_SCALES,
                                   lambda_1=0.5, lambda_2=0.5):
    """Mirrors ScaleAndShiftInvariantLoss.forward -> (total, scale_loss).

    prediction / target may be f32 or bf16, mask may be f32 / bf16 / uint8 /
    bool; the kernel casts to f32 internally (narrow inputs halve input DMA).
    """
    assert scales == NUM_SCALES, "kernel is specialized for scales=4"
    stats = _compute_ssi_stats(prediction, target, mask)
    scale = stats[:, 0]
    M = stats[:, 1]
    data_num = stats[:, 2]
    g_num = stats[:, 3:3 + scales]                                       # (B, scales)
    m_sub = jnp.concatenate([M[:, None], stats[:, 3 + scales:]], axis=1)  # (B, scales)

    # MSELoss, batch-based reduction: sum(mask*res^2) / sum(2*M)   (0 if empty)
    data_div = jnp.sum(2.0 * M)
    data_loss = jnp.where(data_div == 0.0, 0.0,
                          jnp.sum(data_num) / jnp.where(data_div == 0.0, 1.0, data_div))

    # GradientLoss over `scales` resolutions, batch-based reduction per scale.
    g_div = jnp.sum(m_sub, axis=0)                                        # (scales,)
    g_per_scale = jnp.where(g_div == 0.0, 0.0,
                            jnp.sum(g_num, axis=0) / jnp.where(g_div == 0.0, 1.0, g_div))
    grad_loss = jnp.sum(g_per_scale)

    total = data_loss + alpha * grad_loss

    # scale_aux_loss(scale, lambda_1, lambda_2)
    scale_loss = jnp.mean(lambda_1 * jnp.maximum(-scale, 0.0)
                          + lambda_2 * jnp.maximum(scale - 1.0, 0.0))
    return total, scale_loss


def _reference(prediction, target, mask, alpha=0.5, scales=NUM_SCALES,
               lambda_1=0.5, lambda_2=0.5):
    """Pure-JAX transcription of the PyTorch code (incl. strided slicing)."""
    p, t, m = prediction, target, mask
    a00 = jnp.sum(m * p * p, axis=(1, 2))
    a01 = jnp.sum(m * p, axis=(1, 2))
    a11 = jnp.sum(m, axis=(1, 2))
    b0 = jnp.sum(m * p * t, axis=(1, 2))
    b1 = jnp.sum(m * t, axis=(1, 2))
    det = a00 * a11 - a01 * a01
    dsafe = jnp.where(det != 0, det, 1.0)
    x0 = jnp.where(det != 0, (a11 * b0 - a01 * b1) / dsafe, 0.0)
    x1 = jnp.where(det != 0, (-a01 * b0 + a00 * b1) / dsafe, 0.0)
    p_ssi = x0[:, None, None] * p + x1[:, None, None]

    res = p_ssi - t
    img = jnp.sum(m * res * res, axis=(1, 2))
    div = jnp.sum(2.0 * a11)
    data = jnp.where(div == 0, 0.0, jnp.sum(img) / jnp.where(div == 0, 1.0, div))

    def gloss(pp, tt, mm):
        M = jnp.sum(mm, axis=(1, 2))
        d = mm * (pp - tt)
        gx = jnp.abs(d[:, :, 1:] - d[:, :, :-1]) * mm[:, :, 1:] * mm[:, :, :-1]
        gy = jnp.abs(d[:, 1:, :] - d[:, :-1, :]) * mm[:, 1:, :] * mm[:, :-1, :]
        il = jnp.sum(gx, axis=(1, 2)) + jnp.sum(gy, axis=(1, 2))
        dv = jnp.sum(M)
        return jnp.where(dv == 0, 0.0, jnp.sum(il) / jnp.where(dv == 0, 1.0, dv))

    gtotal = 0.0
    for s in range(scales):
        step = 2 ** s
        gtotal = gtotal + gloss(p_ssi[:, ::step, ::step],
                                t[:, ::step, ::step],
                                m[:, ::step, ::step])

    total = data + alpha * gtotal
    scale_loss = jnp.mean(lambda_1 * jnp.maximum(-x0, 0.0)
                          + lambda_2 * jnp.maximum(x0 - 1.0, 0.0))
    return total, scale_loss


if __name__ == "__main__":
    key = jax.random.PRNGKey(0)
    k1, k2, k3 = jax.random.split(key, 3)
    # Small depth-map-like shapes; W=128 keeps lanes fully dense.
    B, H, W = 2, 40, 128
    prediction = jax.random.normal(k1, (B, H, W), dtype=jnp.float32)
    target = jax.random.normal(k2, (B, H, W), dtype=jnp.float32)
    mask = (jax.random.uniform(k3, (B, H, W)) > 0.3).astype(jnp.float32)

    total, scale_loss = jax.jit(scale_and_shift_invariant_loss)(prediction, target, mask)
    jax.block_until_ready((total, scale_loss))

    ref_total, ref_scale_loss = _reference(prediction, target, mask)
    assert jnp.allclose(total, ref_total, rtol=2e-3, atol=1e-5), (total, ref_total)
    assert jnp.allclose(scale_loss, ref_scale_loss, rtol=2e-3, atol=1e-5), (scale_loss, ref_scale_loss)

    print("KERNEL_OK")
</pallas_src>

<mosaic_0001>
module attributes {stable_mosaic.version = 11 : i64} {
  func.func @_ssi_stats_kernel(%arg0: i32, %arg1: memref<1x40x128xf32, #tpu.memory_space<vmem>>, %arg2: memref<1x40x128xf32, #tpu.memory_space<vmem>>, %arg3: memref<1x40x128xf32, #tpu.memory_space<vmem>>, %arg4: memref<1x1x128xf32, #tpu.memory_space<vmem>>) attributes {dimension_semantics = [#tpu.dimension_semantics<parallel>], iteration_bounds = array<i64: 2>, scalar_prefetch = 0 : i64, scratch_operands = 0 : i64, tpu.core_type = #tpu.core_type<tc>, window_params = [{transform_indices = @transform_0, window_bounds = array<i64: 1, 40, 128>}, {transform_indices = @transform_1, window_bounds = array<i64: 1, 40, 128>}, {transform_indices = @transform_2, window_bounds = array<i64: 1, 40, 128>}, {transform_indices = @transform_3, window_bounds = array<i64: 1, 1, 128>}]} {
    %c0 = arith.constant 0 : index
    %c0_0 = arith.constant 0 : index
    %c0_1 = arith.constant 0 : index
    %0 = vector.load %arg1[%c0, %c0_0, %c0_1] : memref<1x40x128xf32, #tpu.memory_space<vmem>>, vector<1x40x128xf32>
    %1 = vector.shape_cast %0 : vector<1x40x128xf32> to vector<40x128xf32>
    %c0_2 = arith.constant 0 : index
    %c0_3 = arith.constant 0 : index
    %c0_4 = arith.constant 0 : index
    %2 = vector.load %arg2[%c0_2, %c0_3, %c0_4] : memref<1x40x128xf32, #tpu.memory_space<vmem>>, vector<1x40x128xf32>
    %3 = vector.shape_cast %2 : vector<1x40x128xf32> to vector<40x128xf32>
    %c0_5 = arith.constant 0 : index
    %c0_6 = arith.constant 0 : index
    %c0_7 = arith.constant 0 : index
    %4 = vector.load %arg3[%c0_5, %c0_6, %c0_7] : memref<1x40x128xf32, #tpu.memory_space<vmem>>, vector<1x40x128xf32>
    %5 = vector.shape_cast %4 : vector<1x40x128xf32> to vector<40x128xf32>
    %6 = arith.mulf %5, %1 : vector<40x128xf32>
    %7 = arith.mulf %6, %1 : vector<40x128xf32>
    %8 = vector.shape_cast %7 : vector<40x128xf32> to vector<1x40x128xf32>
    %cst = arith.constant dense<0.000000e+00> : vector<1xf32>
    %9 = vector.multi_reduction <add>, %8, %cst [1, 2] : vector<1x40x128xf32> to vector<1xf32>
    %10 = vector.shape_cast %9 : vector<1xf32> to vector<1x1x1xf32>
    %11 = vector.extract %10[0, 0, 0] : f32 from vector<1x1x1xf32>
    %12 = vector.shape_cast %6 : vector<40x128xf32> to vector<1x40x128xf32>
    %cst_8 = arith.constant dense<0.000000e+00> : vector<1xf32>
    %13 = vector.multi_reduction <add>, %12, %cst_8 [1, 2] : vector<1x40x128xf32> to vector<1xf32>
    %14 = vector.shape_cast %13 : vector<1xf32> to vector<1x1x1xf32>
    %15 = vector.extract %14[0, 0, 0] : f32 from vector<1x1x1xf32>
    %16 = vector.shape_cast %5 : vector<40x128xf32> to vector<1x40x128xf32>
    %cst_9 = arith.constant dense<0.000000e+00> : vector<1xf32>
    %17 = vector.multi_reduction <add>, %16, %cst_9 [1, 2] : vector<1x40x128xf32> to vector<1xf32>
    %18 = vector.shape_cast %17 : vector<1xf32> to vector<1x1x1xf32>
    %19 = vector.extract %18[0, 0, 0] : f32 from vector<1x1x1xf32>
    %20 = arith.mulf %6, %3 : vector<40x128xf32>
    %21 = vector.shape_cast %20 : vector<40x128xf32> to vector<1x40x128xf32>
    %cst_10 = arith.constant dense<0.000000e+00> : vector<1xf32>
    %22 = vector.multi_reduction <add>, %21, %cst_10 [1, 2] : vector<1x40x128xf32> to vector<1xf32>
    %23 = vector.shape_cast %22 : vector<1xf32> to vector<1x1x1xf32>
    %24 = vector.extract %23[0, 0, 0] : f32 from vector<1x1x1xf32>
    %25 = arith.mulf %5, %3 : vector<40x128xf32>
    %26 = vector.shape_cast %25 : vector<40x128xf32> to vector<1x40x128xf32>
    %cst_11 = arith.constant dense<0.000000e+00> : vector<1xf32>
    %27 = vector.multi_reduction <add>, %26, %cst_11 [1, 2] : vector<1x40x128xf32> to vector<1xf32>
    %28 = vector.shape_cast %27 : vector<1xf32> to vector<1x1x1xf32>
    %29 = vector.extract %28[0, 0, 0] : f32 from vector<1x1x1xf32>
    %30 = arith.mulf %11, %19 : f32
    %31 = arith.mulf %15, %15 : f32
    %32 = arith.subf %30, %31 : f32
    %cst_12 = arith.constant 0.000000e+00 : f32
    %33 = arith.cmpf one, %32, %cst_12 : f32
    %cst_13 = arith.constant 1.000000e+00 : f32
    %34 = arith.select %33, %32, %cst_13 : f32
    %cst_14 = arith.constant 0.000000e+00 : f32
    %35 = arith.cmpf one, %32, %cst_14 : f32
    %36 = arith.mulf %19, %24 : f32
    %37 = arith.mulf %15, %29 : f32
    %38 = arith.subf %36, %37 : f32
    %39 = arith.divf %38, %34 : f32
    %cst_15 = arith.constant 0.000000e+00 : f32
    %40 = arith.select %35, %39, %cst_15 : f32
    %cst_16 = arith.constant 0.000000e+00 : f32
    %41 = arith.cmpf one, %32, %cst_16 : f32
    %cst_17 = arith.constant 0.000000e+00 : f32
    %42 = arith.subf %cst_17, %15 : f32
    %43 = arith.mulf %42, %24 : f32
    %44 = arith.mulf %11, %29 : f32
    %45 = arith.addf %43, %44 : f32
    %46 = arith.divf %45, %34 : f32
    %cst_18 = arith.constant 0.000000e+00 : f32
    %47 = arith.select %41, %46, %cst_18 : f32
    %48 = vector.broadcast %40 : f32 to vector<40x128xf32>
    %49 = arith.mulf %48, %1 : vector<40x128xf32>
    %50 = vector.broadcast %47 : f32 to vector<40x128xf32>
    %51 = arith.addf %49, %50 : vector<40x128xf32>
    %52 = arith.subf %51, %3 : vector<40x128xf32>
    %53 = arith.mulf %5, %52 : vector<40x128xf32>
    %54 = tpu.iota {dimensions = array<i32: 0>} : vector<128x8xi32>
    %55 = tpu.iota {dimensions = array<i32: 0>} : vector<40x1xi32>
    %cst_19 = arith.constant 1.000000e+00 : f32
    %56 = vector.broadcast %cst_19 : f32 to vector<128x8xf32>
    %cst_20 = arith.constant 1.000000e+00 : f32
    %57 = vector.broadcast %cst_20 : f32 to vector<40x1xf32>
    %58 = arith.mulf %53, %52 : vector<40x128xf32>
    %cst_21 = arith.constant dense<0.000000e+00> : vector<40x8xf32>
    %59 = tpu.matmul %58, %56, %cst_21 {dimension_numbers = #tpu.dot_dimension_numbers<[1], [0], [0], [1], [0, 0, 1, 1], [], []>} : vector<40x128xf32>, vector<128x8xf32>, vector<40x8xf32> -> vector<40x8xf32>
    %60 = vector.extract_strided_slice %59 {offsets = [0, 0], sizes = [40, 1], strides = [1, 1]} : vector<40x8xf32> to vector<40x1xf32>
    %61 = arith.mulf %60, %57 : vector<40x1xf32>
    %62 = vector.shape_cast %61 : vector<40x1xf32> to vector<1x40x1xf32>
    %cst_22 = arith.constant dense<0.000000e+00> : vector<1xf32>
    %63 = vector.multi_reduction <add>, %62, %cst_22 [1, 2] : vector<1x40x1xf32> to vector<1xf32>
    %64 = vector.shape_cast %63 : vector<1xf32> to vector<1x1x1xf32>
    %65 = vector.extract %64[0, 0, 0] : f32 from vector<1x1x1xf32>
    %c0_i32 = arith.constant 0 : i32
    %66 = vector.broadcast %c0_i32 : i32 to vector<128x8xi32>
    %67 = arith.andi %54, %66 : vector<128x8xi32>
    %c0_i32_23 = arith.constant 0 : i32
    %68 = vector.broadcast %c0_i32_23 : i32 to vector<128x8xi32>
    %69 = arith.cmpi eq, %67, %68 : vector<128x8xi32>
    %70 = arith.extui %69 : vector<128x8xi1> to vector<128x8xi32>
    %71 = arith.sitofp %70 : vector<128x8xi32> to vector<128x8xf32>
    %c0_i32_24 = arith.constant 0 : i32
    %72 = vector.broadcast %c0_i32_24 : i32 to vector<40x1xi32>
    %73 = arith.andi %55, %72 : vector<40x1xi32>
    %c0_i32_25 = arith.constant 0 : i32
    %74 = vector.broadcast %c0_i32_25 : i32 to vector<40x1xi32>
    %75 = arith.cmpi eq, %73, %74 : vector<40x1xi32>
    %76 = arith.extui %75 : vector<40x1xi1> to vector<40x1xi32>
    %77 = arith.sitofp %76 : vector<40x1xi32> to vector<40x1xf32>
    %78 = vector.extract_strided_slice %53 {offsets = [0, 1], sizes = [40, 127], strides = [1, 1]} : vector<40x128xf32> to vector<40x127xf32>
    %79 = vector.extract_strided_slice %53 {offsets = [0, 0], sizes = [40, 1], strides = [1, 1]} : vector<40x128xf32> to vector<40x1xf32>
    %80 = tpu.concatenate %78, %79 in 1 : vector<40x127xf32>, vector<40x1xf32> -> vector<40x128xf32>
    %81 = vector.extract_strided_slice %5 {offsets = [0, 1], sizes = [40, 127], strides = [1, 1]} : vector<40x128xf32> to vector<40x127xf32>
    %82 = vector.extract_strided_slice %5 {offsets = [0, 0], sizes = [40, 1], strides = [1, 1]} : vector<40x128xf32> to vector<40x1xf32>
    %83 = tpu.concatenate %81, %82 in 1 : vector<40x127xf32>, vector<40x1xf32> -> vector<40x128xf32>
    %84 = arith.subf %80, %53 : vector<40x128xf32>
    %85 = math.absf %84 : vector<40x128xf32>
    %86 = arith.mulf %83, %5 : vector<40x128xf32>
    %87 = arith.mulf %85, %86 : vector<40x128xf32>
    %c127_i32 = arith.constant 127 : i32
    %88 = vector.broadcast %c127_i32 : i32 to vector<128x8xi32>
    %89 = arith.cmpi slt, %54, %88 : vector<128x8xi32>
    %90 = arith.andi %69, %89 : vector<128x8xi1>
    %91 = arith.extui %90 : vector<128x8xi1> to vector<128x8xi32>
    %92 = arith.sitofp %91 : vector<128x8xi32> to vector<128x8xf32>
    %cst_26 = arith.constant dense<0.000000e+00> : vector<40x8xf32>
    %93 = tpu.matmul %87, %92, %cst_26 {dimension_numbers = #tpu.dot_dimension_numbers<[1], [0], [0], [1], [0, 0, 1, 1], [], []>} : vector<40x128xf32>, vector<128x8xf32>, vector<40x8xf32> -> vector<40x8xf32>
    %94 = vector.extract_strided_slice %93 {offsets = [0, 0], sizes = [40, 1], strides = [1, 1]} : vector<40x8xf32> to vector<40x1xf32>
    %95 = arith.mulf %94, %77 : vector<40x1xf32>
    %96 = vector.shape_cast %95 : vector<40x1xf32> to vector<1x40x1xf32>
    %cst_27 = arith.constant dense<0.000000e+00> : vector<1xf32>
    %97 = vector.multi_reduction <add>, %96, %cst_27 [1, 2] : vector<1x40x1xf32> to vector<1xf32>
    %98 = vector.shape_cast %97 : vector<1xf32> to vector<1x1x1xf32>
    %99 = vector.extract %98[0, 0, 0] : f32 from vector<1x1x1xf32>
    %cst_28 = arith.constant 0.000000e+00 : f32
    %100 = arith.addf %cst_28, %99 : f32
    %101 = vector.extract_strided_slice %53 {offsets = [1, 0], sizes = [39, 128], strides = [1, 1]} : vector<40x128xf32> to vector<39x128xf32>
    %102 = vector.extract_strided_slice %53 {offsets = [0, 0], sizes = [1, 128], strides = [1, 1]} : vector<40x128xf32> to vector<1x128xf32>
    %103 = tpu.concatenate %101, %102 in 0 : vector<39x128xf32>, vector<1x128xf32> -> vector<40x128xf32>
    %104 = vector.extract_strided_slice %5 {offsets = [1, 0], sizes = [39, 128], strides = [1, 1]} : vector<40x128xf32> to vector<39x128xf32>
    %105 = vector.extract_strided_slice %5 {offsets = [0, 0], sizes = [1, 128], strides = [1, 1]} : vector<40x128xf32> to vector<1x128xf32>
    %106 = tpu.concatenate %104, %105 in 0 : vector<39x128xf32>, vector<1x128xf32> -> vector<40x128xf32>
    %107 = arith.subf %103, %53 : vector<40x128xf32>
    %108 = math.absf %107 : vector<40x128xf32>
    %109 = arith.mulf %106, %5 : vector<40x128xf32>
    %110 = arith.mulf %108, %109 : vector<40x128xf32>
    %c39_i32 = arith.constant 39 : i32
    %111 = vector.broadcast %c39_i32 : i32 to vector<40x1xi32>
    %112 = arith.cmpi slt, %55, %111 : vector<40x1xi32>
    %113 = arith.extui %112 : vector<40x1xi1> to vector<40x1xi32>
    %114 = arith.sitofp %113 : vector<40x1xi32> to vector<40x1xf32>
    %115 = arith.mulf %77, %114 : vector<40x1xf32>
    %cst_29 = arith.constant dense<0.000000e+00> : vector<40x8xf32>
    %116 = tpu.matmul %110, %71, %cst_29 {dimension_numbers = #tpu.dot_dimension_numbers<[1], [0], [0], [1], [0, 0, 1, 1], [], []>} : vector<40x128xf32>, vector<128x8xf32>, vector<40x8xf32> -> vector<40x8xf32>
    %117 = vector.extract_strided_slice %116 {offsets = [0, 0], sizes = [40, 1], strides = [1, 1]} : vector<40x8xf32> to vector<40x1xf32>
    %118 = arith.mulf %117, %115 : vector<40x1xf32>
    %119 = vector.shape_cast %118 : vector<40x1xf32> to vector<1x40x1xf32>
    %cst_30 = arith.constant dense<0.000000e+00> : vector<1xf32>
    %120 = vector.multi_reduction <add>, %119, %cst_30 [1, 2] : vector<1x40x1xf32> to vector<1xf32>
    %121 = vector.shape_cast %120 : vector<1xf32> to vector<1x1x1xf32>
    %122 = vector.extract %121[0, 0, 0] : f32 from vector<1x1x1xf32>
    %123 = arith.addf %100, %122 : f32
    %c1_i32 = arith.constant 1 : i32
    %124 = vector.broadcast %c1_i32 : i32 to vector<128x8xi32>
    %125 = arith.andi %54, %124 : vector<128x8xi32>
    %c0_i32_31 = arith.constant 0 : i32
    %126 = vector.broadcast %c0_i32_31 : i32 to vector<128x8xi32>
    %127 = arith.cmpi eq, %125, %126 : vector<128x8xi32>
    %128 = arith.extui %127 : vector<128x8xi1> to vector<128x8xi32>
    %129 = arith.sitofp %128 : vector<128x8xi32> to vector<128x8xf32>
    %c1_i32_32 = arith.constant 1 : i32
    %130 = vector.broadcast %c1_i32_32 : i32 to vector<40x1xi32>
    %131 = arith.andi %55, %130 : vector<40x1xi32>
    %c0_i32_33 = arith.constant 0 : i32
    %132 = vector.broadcast %c0_i32_33 : i32 to vector<40x1xi32>
    %133 = arith.cmpi eq, %131, %132 : vector<40x1xi32>
    %134 = arith.extui %133 : vector<40x1xi1> to vector<40x1xi32>
    %135 = arith.sitofp %134 : vector<40x1xi32> to vector<40x1xf32>
    %136 = vector.extract_strided_slice %53 {offsets = [0, 2], sizes = [40, 126], strides = [1, 1]} : vector<40x128xf32> to vector<40x126xf32>
    %137 = vector.extract_strided_slice %53 {offsets = [0, 0], sizes = [40, 2], strides = [1, 1]} : vector<40x128xf32> to vector<40x2xf32>
    %138 = tpu.concatenate %136, %137 in 1 : vector<40x126xf32>, vector<40x2xf32> -> vector<40x128xf32>
    %139 = vector.extract_strided_slice %5 {offsets = [0, 2], sizes = [40, 126], strides = [1, 1]} : vector<40x128xf32> to vector<40x126xf32>
    %140 = vector.extract_strided_slice %5 {offsets = [0, 0], sizes = [40, 2], strides = [1, 1]} : vector<40x128xf32> to vector<40x2xf32>
    %141 = tpu.concatenate %139, %140 in 1 : vector<40x126xf32>, vector<40x2xf32> -> vector<40x128xf32>
    %142 = arith.subf %138, %53 : vector<40x128xf32>
    %143 = math.absf %142 : vector<40x128xf32>
    %144 = arith.mulf %141, %5 : vector<40x128xf32>
    %145 = arith.mulf %143, %144 : vector<40x128xf32>
    %c126_i32 = arith.constant 126 : i32
    %146 = vector.broadcast %c126_i32 : i32 to vector<128x8xi32>
    %147 = arith.cmpi slt, %54, %146 : vector<128x8xi32>
    %148 = arith.andi %127, %147 : vector<128x8xi1>
    %149 = arith.extui %148 : vector<128x8xi1> to vector<128x8xi32>
    %150 = arith.sitofp %149 : vector<128x8xi32> to vector<128x8xf32>
    %cst_34 = arith.constant dense<0.000000e+00> : vector<40x8xf32>
    %151 = tpu.matmul %145, %150, %cst_34 {dimension_numbers = #tpu.dot_dimension_numbers<[1], [0], [0], [1], [0, 0, 1, 1], [], []>} : vector<40x128xf32>, vector<128x8xf32>, vector<40x8xf32> -> vector<40x8xf32>
    %152 = vector.extract_strided_slice %151 {offsets = [0, 0], sizes = [40, 1], strides = [1, 1]} : vector<40x8xf32> to vector<40x1xf32>
    %153 = arith.mulf %152, %135 : vector<40x1xf32>
    %154 = vector.shape_cast %153 : vector<40x1xf32> to vector<1x40x1xf32>
    %cst_35 = arith.constant dense<0.000000e+00> : vector<1xf32>
    %155 = vector.multi_reduction <add>, %154, %cst_35 [1, 2] : vector<1x40x1xf32> to vector<1xf32>
    %156 = vector.shape_cast %155 : vector<1xf32> to vector<1x1x1xf32>
    %157 = vector.extract %156[0, 0, 0] : f32 from vector<1x1x1xf32>
    %cst_36 = arith.constant 0.000000e+00 : f32
    %158 = arith.addf %cst_36, %157 : f32
    %159 = vector.extract_strided_slice %53 {offsets = [2, 0], sizes = [38, 128], strides = [1, 1]} : vector<40x128xf32> to vector<38x128xf32>
    %160 = vector.extract_strided_slice %53 {offsets = [0, 0], sizes = [2, 128], strides = [1, 1]} : vector<40x128xf32> to vector<2x128xf32>
    %161 = tpu.concatenate %159, %160 in 0 : vector<38x128xf32>, vector<2x128xf32> -> vector<40x128xf32>
    %162 = vector.extract_strided_slice %5 {offsets = [2, 0], sizes = [38, 128], strides = [1, 1]} : vector<40x128xf32> to vector<38x128xf32>
    %163 = vector.extract_strided_slice %5 {offsets = [0, 0], sizes = [2, 128], strides = [1, 1]} : vector<40x128xf32> to vector<2x128xf32>
    %164 = tpu.concatenate %162, %163 in 0 : vector<38x128xf32>, vector<2x128xf32> -> vector<40x128xf32>
    %165 = arith.subf %161, %53 : vector<40x128xf32>
    %166 = math.absf %165 : vector<40x128xf32>
    %167 = arith.mulf %164, %5 : vector<40x128xf32>
    %168 = arith.mulf %166, %167 : vector<40x128xf32>
    %c38_i32 = arith.constant 38 : i32
    %169 = vector.broadcast %c38_i32 : i32 to vector<40x1xi32>
    %170 = arith.cmpi slt, %55, %169 : vector<40x1xi32>
    %171 = arith.extui %170 : vector<40x1xi1> to vector<40x1xi32>
    %172 = arith.sitofp %171 : vector<40x1xi32> to vector<40x1xf32>
    %173 = arith.mulf %135, %172 : vector<40x1xf32>
    %cst_37 = arith.constant dense<0.000000e+00> : vector<40x8xf32>
    %174 = tpu.matmul %168, %129, %cst_37 {dimension_numbers = #tpu.dot_dimension_numbers<[1], [0], [0], [1], [0, 0, 1, 1], [], []>} : vector<40x128xf32>, vector<128x8xf32>, vector<40x8xf32> -> vector<40x8xf32>
    %175 = vector.extract_strided_slice %174 {offsets = [0, 0], sizes = [40, 1], strides = [1, 1]} : vector<40x8xf32> to vector<40x1xf32>
    %176 = arith.mulf %175, %173 : vector<40x1xf32>
    %177 = vector.shape_cast %176 : vector<40x1xf32> to vector<1x40x1xf32>
    %cst_38 = arith.constant dense<0.000000e+00> : vector<1xf32>
    %178 = vector.multi_reduction <add>, %177, %cst_38 [1, 2] : vector<1x40x1xf32> to vector<1xf32>
    %179 = vector.shape_cast %178 : vector<1xf32> to vector<1x1x1xf32>
    %180 = vector.extract %179[0, 0, 0] : f32 from vector<1x1x1xf32>
    %181 = arith.addf %158, %180 : f32
    %cst_39 = arith.constant dense<0.000000e+00> : vector<40x8xf32>
    %182 = tpu.matmul %5, %129, %cst_39 {dimension_numbers = #tpu.dot_dimension_numbers<[1], [0], [0], [1], [0, 0, 1, 1], [], []>} : vector<40x128xf32>, vector<128x8xf32>, vector<40x8xf32> -> vector<40x8xf32>
    %183 = vector.extract_strided_slice %182 {offsets = [0, 0], sizes = [40, 1], strides = [1, 1]} : vector<40x8xf32> to vector<40x1xf32>
    %184 = arith.mulf %183, %135 : vector<40x1xf32>
    %185 = vector.shape_cast %184 : vector<40x1xf32> to vector<1x40x1xf32>
    %cst_40 = arith.constant dense<0.000000e+00> : vector<1xf32>
    %186 = vector.multi_reduction <add>, %185, %cst_40 [1, 2] : vector<1x40x1xf32> to vector<1xf32>
    %187 = vector.shape_cast %186 : vector<1xf32> to vector<1x1x1xf32>
    %188 = vector.extract %187[0, 0, 0] : f32 from vector<1x1x1xf32>
    %c3_i32 = arith.constant 3 : i32
    %189 = vector.broadcast %c3_i32 : i32 to vector<128x8xi32>
    %190 = arith.andi %54, %189 : vector<128x8xi32>
    %c0_i32_41 = arith.constant 0 : i32
    %191 = vector.broadcast %c0_i32_41 : i32 to vector<128x8xi32>
    %192 = arith.cmpi eq, %190, %191 : vector<128x8xi32>
    %193 = arith.extui %192 : vector<128x8xi1> to vector<128x8xi32>
    %194 = arith.sitofp %193 : vector<128x8xi32> to vector<128x8xf32>
    %c3_i32_42 = arith.constant 3 : i32
    %195 = vector.broadcast %c3_i32_42 : i32 to vector<40x1xi32>
    %196 = arith.andi %55, %195 : vector<40x1xi32>
    %c0_i32_43 = arith.constant 0 : i32
    %197 = vector.broadcast %c0_i32_43 : i32 to vector<40x1xi32>
    %198 = arith.cmpi eq, %196, %197 : vector<40x1xi32>
    %199 = arith.extui %198 : vector<40x1xi1> to vector<40x1xi32>
    %200 = arith.sitofp %199 : vector<40x1xi32> to vector<40x1xf32>
    %201 = vector.extract_strided_slice %53 {offsets = [0, 4], sizes = [40, 124], strides = [1, 1]} : vector<40x128xf32> to vector<40x124xf32>
    %202 = vector.extract_strided_slice %53 {offsets = [0, 0], sizes = [40, 4], strides = [1, 1]} : vector<40x128xf32> to vector<40x4xf32>
    %203 = tpu.concatenate %201, %202 in 1 : vector<40x124xf32>, vector<40x4xf32> -> vector<40x128xf32>
    %204 = vector.extract_strided_slice %5 {offsets = [0, 4], sizes = [40, 124], strides = [1, 1]} : vector<40x128xf32> to vector<40x124xf32>
    %205 = vector.extract_strided_slice %5 {offsets = [0, 0], sizes = [40, 4], strides = [1, 1]} : vector<40x128xf32> to vector<40x4xf32>
    %206 = tpu.concatenate %204, %205 in 1 : vector<40x124xf32>, vector<40x4xf32> -> vector<40x128xf32>
    %207 = arith.subf %203, %53 : vector<40x128xf32>
    %208 = math.absf %207 : vector<40x128xf32>
    %209 = arith.mulf %206, %5 : vector<40x128xf32>
    %210 = arith.mulf %208, %209 : vector<40x128xf32>
    %c124_i32 = arith.constant 124 : i32
    %211 = vector.broadcast %c124_i32 : i32 to vector<128x8xi32>
    %212 = arith.cmpi slt, %54, %211 : vector<128x8xi32>
    %213 = arith.andi %192, %212 : vector<128x8xi1>
    %214 = arith.extui %213 : vector<128x8xi1> to vector<128x8xi32>
    %215 = arith.sitofp %214 : vector<128x8xi32> to vector<128x8xf32>
    %cst_44 = arith.constant dense<0.000000e+00> : vector<40x8xf32>
    %216 = tpu.matmul %210, %215, %cst_44 {dimension_numbers = #tpu.dot_dimension_numbers<[1], [0], [0], [1], [0, 0, 1, 1], [], []>} : vector<40x128xf32>, vector<128x8xf32>, vector<40x8xf32> -> vector<40x8xf32>
    %217 = vector.extract_strided_slice %216 {offsets = [0, 0], sizes = [40, 1], strides = [1, 1]} : vector<40x8xf32> to vector<40x1xf32>
    %218 = arith.mulf %217, %200 : vector<40x1xf32>
    %219 = vector.shape_cast %218 : vector<40x1xf32> to vector<1x40x1xf32>
    %cst_45 = arith.constant dense<0.000000e+00> : vector<1xf32>
    %220 = vector.multi_reduction <add>, %219, %cst_45 [1, 2] : vector<1x40x1xf32> to vector<1xf32>
    %221 = vector.shape_cast %220 : vector<1xf32> to vector<1x1x1xf32>
    %222 = vector.extract %221[0, 0, 0] : f32 from vector<1x1x1xf32>
    %cst_46 = arith.constant 0.000000e+00 : f32
    %223 = arith.addf %cst_46, %222 : f32
    %224 = vector.extract_strided_slice %53 {offsets = [4, 0], sizes = [36, 128], strides = [1, 1]} : vector<40x128xf32> to vector<36x128xf32>
    %225 = vector.extract_strided_slice %53 {offsets = [0, 0], sizes = [4, 128], strides = [1, 1]} : vector<40x128xf32> to vector<4x128xf32>
    %226 = tpu.concatenate %224, %225 in 0 : vector<36x128xf32>, vector<4x128xf32> -> vector<40x128xf32>
    %227 = vector.extract_strided_slice %5 {offsets = [4, 0], sizes = [36, 128], strides = [1, 1]} : vector<40x128xf32> to vector<36x128xf32>
    %228 = vector.extract_strided_slice %5 {offsets = [0, 0], sizes = [4, 128], strides = [1, 1]} : vector<40x128xf32> to vector<4x128xf32>
    %229 = tpu.concatenate %227, %228 in 0 : vector<36x128xf32>, vector<4x128xf32> -> vector<40x128xf32>
    %230 = arith.subf %226, %53 : vector<40x128xf32>
    %231 = math.absf %230 : vector<40x128xf32>
    %232 = arith.mulf %229, %5 : vector<40x128xf32>
    %233 = arith.mulf %231, %232 : vector<40x128xf32>
    %c36_i32 = arith.constant 36 : i32
    %234 = vector.broadcast %c36_i32 : i32 to vector<40x1xi32>
    %235 = arith.cmpi slt, %55, %234 : vector<40x1xi32>
    %236 = arith.extui %235 : vector<40x1xi1> to vector<40x1xi32>
    %237 = arith.sitofp %236 : vector<40x1xi32> to vector<40x1xf32>
    %238 = arith.mulf %200, %237 : vector<40x1xf32>
    %cst_47 = arith.constant dense<0.000000e+00> : vector<40x8xf32>
    %239 = tpu.matmul %233, %194, %cst_47 {dimension_numbers = #tpu.dot_dimension_numbers<[1], [0], [0], [1], [0, 0, 1, 1], [], []>} : vector<40x128xf32>, vector<128x8xf32>, vector<40x8xf32> -> vector<40x8xf32>
    %240 = vector.extract_strided_slice %239 {offsets = [0, 0], sizes = [40, 1], strides = [1, 1]} : vector<40x8xf32> to vector<40x1xf32>
    %241 = arith.mulf %240, %238 : vector<40x1xf32>
    %242 = vector.shape_cast %241 : vector<40x1xf32> to vector<1x40x1xf32>
    %cst_48 = arith.constant dense<0.000000e+00> : vector<1xf32>
    %243 = vector.multi_reduction <add>, %242, %cst_48 [1, 2] : vector<1x40x1xf32> to vector<1xf32>
    %244 = vector.shape_cast %243 : vector<1xf32> to vector<1x1x1xf32>
    %245 = vector.extract %244[0, 0, 0] : f32 from vector<1x1x1xf32>
    %246 = arith.addf %223, %245 : f32
    %cst_49 = arith.constant dense<0.000000e+00> : vector<40x8xf32>
    %247 = tpu.matmul %5, %194, %cst_49 {dimension_numbers = #tpu.dot_dimension_numbers<[1], [0], [0], [1], [0, 0, 1, 1], [], []>} : vector<40x128xf32>, vector<128x8xf32>, vector<40x8xf32> -> vector<40x8xf32>
    %248 = vector.extract_strided_slice %247 {offsets = [0, 0], sizes = [40, 1], strides = [1, 1]} : vector<40x8xf32> to vector<40x1xf32>
    %249 = arith.mulf %248, %200 : vector<40x1xf32>
    %250 = vector.shape_cast %249 : vector<40x1xf32> to vector<1x40x1xf32>
    %cst_50 = arith.constant dense<0.000000e+00> : vector<1xf32>
    %251 = vector.multi_reduction <add>, %250, %cst_50 [1, 2] : vector<1x40x1xf32> to vector<1xf32>
    %252 = vector.shape_cast %251 : vector<1xf32> to vector<1x1x1xf32>
    %253 = vector.extract %252[0, 0, 0] : f32 from vector<1x1x1xf32>
    %c7_i32 = arith.constant 7 : i32
    %254 = vector.broadcast %c7_i32 : i32 to vector<128x8xi32>
    %255 = arith.andi %54, %254 : vector<128x8xi32>
    %c0_i32_51 = arith.constant 0 : i32
    %256 = vector.broadcast %c0_i32_51 : i32 to vector<128x8xi32>
    %257 = arith.cmpi eq, %255, %256 : vector<128x8xi32>
    %258 = arith.extui %257 : vector<128x8xi1> to vector<128x8xi32>
    %259 = arith.sitofp %258 : vector<128x8xi32> to vector<128x8xf32>
    %c7_i32_52 = arith.constant 7 : i32
    %260 = vector.broadcast %c7_i32_52 : i32 to vector<40x1xi32>
    %261 = arith.andi %55, %260 : vector<40x1xi32>
    %c0_i32_53 = arith.constant 0 : i32
    %262 = vector.broadcast %c0_i32_53 : i32 to vector<40x1xi32>
    %263 = arith.cmpi eq, %261, %262 : vector<40x1xi32>
    %264 = arith.extui %263 : vector<40x1xi1> to vector<40x1xi32>
    %265 = arith.sitofp %264 : vector<40x1xi32> to vector<40x1xf32>
    %266 = vector.extract_strided_slice %53 {offsets = [0, 8], sizes = [40, 120], strides = [1, 1]} : vector<40x128xf32> to vector<40x120xf32>
    %267 = vector.extract_strided_slice %53 {offsets = [0, 0], sizes = [40, 8], strides = [1, 1]} : vector<40x128xf32> to vector<40x8xf32>
    %268 = tpu.concatenate %266, %267 in 1 : vector<40x120xf32>, vector<40x8xf32> -> vector<40x128xf32>
    %269 = vector.extract_strided_slice %5 {offsets = [0, 8], sizes = [40, 120], strides = [1, 1]} : vector<40x128xf32> to vector<40x120xf32>
    %270 = vector.extract_strided_slice %5 {offsets = [0, 0], sizes = [40, 8], strides = [1, 1]} : vector<40x128xf32> to vector<40x8xf32>
    %271 = tpu.concatenate %269, %270 in 1 : vector<40x120xf32>, vector<40x8xf32> -> vector<40x128xf32>
    %272 = arith.subf %268, %53 : vector<40x128xf32>
    %273 = math.absf %272 : vector<40x128xf32>
    %274 = arith.mulf %271, %5 : vector<40x128xf32>
    %275 = arith.mulf %273, %274 : vector<40x128xf32>
    %c120_i32 = arith.constant 120 : i32
    %276 = vector.broadcast %c120_i32 : i32 to vector<128x8xi32>
    %277 = arith.cmpi slt, %54, %276 : vector<128x8xi32>
    %278 = arith.andi %257, %277 : vector<128x8xi1>
    %279 = arith.extui %278 : vector<128x8xi1> to vector<128x8xi32>
    %280 = arith.sitofp %279 : vector<128x8xi32> to vector<128x8xf32>
    %cst_54 = arith.constant dense<0.000000e+00> : vector<40x8xf32>
    %281 = tpu.matmul %275, %280, %cst_54 {dimension_numbers = #tpu.dot_dimension_numbers<[1], [0], [0], [1], [0, 0, 1, 1], [], []>} : vector<40x128xf32>, vector<128x8xf32>, vector<40x8xf32> -> vector<40x8xf32>
    %282 = vector.extract_strided_slice %281 {offsets = [0, 0], sizes = [40, 1], strides = [1, 1]} : vector<40x8xf32> to vector<40x1xf32>
    %283 = arith.mulf %282, %265 : vector<40x1xf32>
    %284 = vector.shape_cast %283 : vector<40x1xf32> to vector<1x40x1xf32>
    %cst_55 = arith.constant dense<0.000000e+00> : vector<1xf32>
    %285 = vector.multi_reduction <add>, %284, %cst_55 [1, 2] : vector<1x40x1xf32> to vector<1xf32>
    %286 = vector.shape_cast %285 : vector<1xf32> to vector<1x1x1xf32>
    %287 = vector.extract %286[0, 0, 0] : f32 from vector<1x1x1xf32>
    %cst_56 = arith.constant 0.000000e+00 : f32
    %288 = arith.addf %cst_56, %287 : f32
    %289 = vector.extract_strided_slice %53 {offsets = [8, 0], sizes = [32, 128], strides = [1, 1]} : vector<40x128xf32> to vector<32x128xf32>
    %290 = vector.extract_strided_slice %53 {offsets = [0, 0], sizes = [8, 128], strides = [1, 1]} : vector<40x128xf32> to vector<8x128xf32>
    %291 = tpu.concatenate %289, %290 in 0 : vector<32x128xf32>, vector<8x128xf32> -> vector<40x128xf32>
    %292 = vector.extract_strided_slice %5 {offsets = [8, 0], sizes = [32, 128], strides = [1, 1]} : vector<40x128xf32> to vector<32x128xf32>
    %293 = vector.extract_strided_slice %5 {offsets = [0, 0], sizes = [8, 128], strides = [1, 1]} : vector<40x128xf32> to vector<8x128xf32>
    %294 = tpu.concatenate %292, %293 in 0 : vector<32x128xf32>, vector<8x128xf32> -> vector<40x128xf32>
    %295 = arith.subf %291, %53 : vector<40x128xf32>
    %296 = math.absf %295 : vector<40x128xf32>
    %297 = arith.mulf %294, %5 : vector<40x128xf32>
    %298 = arith.mulf %296, %297 : vector<40x128xf32>
    %c32_i32 = arith.constant 32 : i32
    %299 = vector.broadcast %c32_i32 : i32 to vector<40x1xi32>
    %300 = arith.cmpi slt, %55, %299 : vector<40x1xi32>
    %301 = arith.extui %300 : vector<40x1xi1> to vector<40x1xi32>
    %302 = arith.sitofp %301 : vector<40x1xi32> to vector<40x1xf32>
    %303 = arith.mulf %265, %302 : vector<40x1xf32>
    %cst_57 = arith.constant dense<0.000000e+00> : vector<40x8xf32>
    %304 = tpu.matmul %298, %259, %cst_57 {dimension_numbers = #tpu.dot_dimension_numbers<[1], [0], [0], [1], [0, 0, 1, 1], [], []>} : vector<40x128xf32>, vector<128x8xf32>, vector<40x8xf32> -> vector<40x8xf32>
    %305 = vector.extract_strided_slice %304 {offsets = [0, 0], sizes = [40, 1], strides = [1, 1]} : vector<40x8xf32> to vector<40x1xf32>
    %306 = arith.mulf %305, %303 : vector<40x1xf32>
    %307 = vector.shape_cast %306 : vector<40x1xf32> to vector<1x40x1xf32>
    %cst_58 = arith.constant dense<0.000000e+00> : vector<1xf32>
    %308 = vector.multi_reduction <add>, %307, %cst_58 [1, 2] : vector<1x40x1xf32> to vector<1xf32>
    %309 = vector.shape_cast %308 : vector<1xf32> to vector<1x1x1xf32>
    %310 = vector.extract %309[0, 0, 0] : f32 from vector<1x1x1xf32>
    %311 = arith.addf %288, %310 : f32
    %cst_59 = arith.constant dense<0.000000e+00> : vector<40x8xf32>
    %312 = tpu.matmul %5, %259, %cst_59 {dimension_numbers = #tpu.dot_dimension_numbers<[1], [0], [0], [1], [0, 0, 1, 1], [], []>} : vector<40x128xf32>, vector<128x8xf32>, vector<40x8xf32> -> vector<40x8xf32>
    %313 = vector.extract_strided_slice %312 {offsets = [0, 0], sizes = [40, 1], strides = [1, 1]} : vector<40x8xf32> to vector<40x1xf32>
    %314 = arith.mulf %313, %265 : vector<40x1xf32>
    %315 = vector.shape_cast %314 : vector<40x1xf32> to vector<1x40x1xf32>
    %cst_60 = arith.constant dense<0.000000e+00> : vector<1xf32>
    %316 = vector.multi_reduction <add>, %315, %cst_60 [1, 2] : vector<1x40x1xf32> to vector<1xf32>
    %317 = vector.shape_cast %316 : vector<1xf32> to vector<1x1x1xf32>
    %318 = vector.extract %317[0, 0, 0] : f32 from vector<1x1x1xf32>
    %319 = tpu.iota {dimensions = array<i32: 1>} : vector<1x128xi32>
    %cst_61 = arith.constant 0.000000e+00 : f32
    %320 = vector.broadcast %cst_61 : f32 to vector<1x128xf32>
    %c0_i32_62 = arith.constant 0 : i32
    %321 = vector.broadcast %c0_i32_62 : i32 to vector<1x128xi32>
    %322 = arith.cmpi eq, %319, %321 : vector<1x128xi32>
    %323 = arith.extui %322 : vector<1x128xi1> to vector<1x128xi32>
    %324 = arith.sitofp %323 : vector<1x128xi32> to vector<1x128xf32>
    %325 = vector.broadcast %40 : f32 to vector<1x128xf32>
    %326 = arith.mulf %324, %325 : vector<1x128xf32>
    %327 = arith.addf %320, %326 : vector<1x128xf32>
    %c1_i32_63 = arith.constant 1 : i32
    %328 = vector.broadcast %c1_i32_63 : i32 to vector<1x128xi32>
    %329 = arith.cmpi eq, %319, %328 : vector<1x128xi32>
    %330 = arith.extui %329 : vector<1x128xi1> to vector<1x128xi32>
    %331 = arith.sitofp %330 : vector<1x128xi32> to vector<1x128xf32>
    %332 = vector.broadcast %19 : f32 to vector<1x128xf32>
    %333 = arith.mulf %331, %332 : vector<1x128xf32>
    %334 = arith.addf %327, %333 : vector<1x128xf32>
    %c2_i32 = arith.constant 2 : i32
    %335 = vector.broadcast %c2_i32 : i32 to vector<1x128xi32>
    %336 = arith.cmpi eq, %319, %335 : vector<1x128xi32>
    %337 = arith.extui %336 : vector<1x128xi1> to vector<1x128xi32>
    %338 = arith.sitofp %337 : vector<1x128xi32> to vector<1x128xf32>
    %339 = vector.broadcast %65 : f32 to vector<1x128xf32>
    %340 = arith.mulf %338, %339 : vector<1x128xf32>
    %341 = arith.addf %334, %340 : vector<1x128xf32>
    %c3_i32_64 = arith.constant 3 : i32
    %342 = vector.broadcast %c3_i32_64 : i32 to vector<1x128xi32>
    %343 = arith.cmpi eq, %319, %342 : vector<1x128xi32>
    %344 = arith.extui %343 : vector<1x128xi1> to vector<1x128xi32>
    %345 = arith.sitofp %344 : vector<1x128xi32> to vector<1x128xf32>
    %346 = vector.broadcast %123 : f32 to vector<1x128xf32>
    %347 = arith.mulf %345, %346 : vector<1x128xf32>
    %348 = arith.addf %341, %347 : vector<1x128xf32>
    %c4_i32 = arith.constant 4 : i32
    %349 = vector.broadcast %c4_i32 : i32 to vector<1x128xi32>
    %350 = arith.cmpi eq, %319, %349 : vector<1x128xi32>
    %351 = arith.extui %350 : vector<1x128xi1> to vector<1x128xi32>
    %352 = arith.sitofp %351 : vector<1x128xi32> to vector<1x128xf32>
    %353 = vector.broadcast %181 : f32 to vector<1x128xf32>
    %354 = arith.mulf %352, %353 : vector<1x128xf32>
    %355 = arith.addf %348, %354 : vector<1x128xf32>
    %c5_i32 = arith.constant 5 : i32
    %356 = vector.broadcast %c5_i32 : i32 to vector<1x128xi32>
    %357 = arith.cmpi eq, %319, %356 : vector<1x128xi32>
    %358 = arith.extui %357 : vector<1x128xi1> to vector<1x128xi32>
    %359 = arith.sitofp %358 : vector<1x128xi32> to vector<1x128xf32>
    %360 = vector.broadcast %246 : f32 to vector<1x128xf32>
    %361 = arith.mulf %359, %360 : vector<1x128xf32>
    %362 = arith.addf %355, %361 : vector<1x128xf32>
    %c6_i32 = arith.constant 6 : i32
    %363 = vector.broadcast %c6_i32 : i32 to vector<1x128xi32>
    %364 = arith.cmpi eq, %319, %363 : vector<1x128xi32>
    %365 = arith.extui %364 : vector<1x128xi1> to vector<1x128xi32>
    %366 = arith.sitofp %365 : vector<1x128xi32> to vector<1x128xf32>
    %367 = vector.broadcast %311 : f32 to vector<1x128xf32>
    %368 = arith.mulf %366, %367 : vector<1x128xf32>
    %369 = arith.addf %362, %368 : vector<1x128xf32>
    %c7_i32_65 = arith.constant 7 : i32
    %370 = vector.broadcast %c7_i32_65 : i32 to vector<1x128xi32>
    %371 = arith.cmpi eq, %319, %370 : vector<1x128xi32>
    %372 = arith.extui %371 : vector<1x128xi1> to vector<1x128xi32>
    %373 = arith.sitofp %372 : vector<1x128xi32> to vector<1x128xf32>
    %374 = vector.broadcast %188 : f32 to vector<1x128xf32>
    %375 = arith.mulf %373, %374 : vector<1x128xf32>
    %376 = arith.addf %369, %375 : vector<1x128xf32>
    %c8_i32 = arith.constant 8 : i32
    %377 = vector.broadcast %c8_i32 : i32 to vector<1x128xi32>
    %378 = arith.cmpi eq, %319, %377 : vector<1x128xi32>
    %379 = arith.extui %378 : vector<1x128xi1> to vector<1x128xi32>
    %380 = arith.sitofp %379 : vector<1x128xi32> to vector<1x128xf32>
    %381 = vector.broadcast %253 : f32 to vector<1x128xf32>
    %382 = arith.mulf %380, %381 : vector<1x128xf32>
    %383 = arith.addf %376, %382 : vector<1x128xf32>
    %c9_i32 = arith.constant 9 : i32
    %384 = vector.broadcast %c9_i32 : i32 to vector<1x128xi32>
    %385 = arith.cmpi eq, %319, %384 : vector<1x128xi32>
    %386 = arith.extui %385 : vector<1x128xi1> to vector<1x128xi32>
    %387 = arith.sitofp %386 : vector<1x128xi32> to vector<1x128xf32>
    %388 = vector.broadcast %318 : f32 to vector<1x128xf32>
    %389 = arith.mulf %387, %388 : vector<1x128xf32>
    %390 = arith.addf %383, %389 : vector<1x128xf32>
    %c0_66 = arith.constant 0 : index
    %c0_67 = arith.constant 0 : index
    %c0_68 = arith.constant 0 : index
    %391 = vector.load %arg4[%c0_66, %c0_67, %c0_68] : memref<1x1x128xf32, #tpu.memory_space<vmem>>, vector<1x1x128xf32>
    %392 = vector.shape_cast %391 : vector<1x1x128xf32> to vector<1x128xf32>
    %393 = vector.shape_cast %390 : vector<1x128xf32> to vector<1x1x128xf32>
    tpu.vector_store %arg4[%c0_66, %c0_67, %c0_68], %393 {strides = array<i32>} : memref<1x1x128xf32, #tpu.memory_space<vmem>>, vector<1x1x128xf32>,
    return
  }
  func.func @transform_0(%arg0: i32) -> (i32, i32, i32) {
    %c0_i32 = arith.constant 0 : i32
    %c0_i32_0 = arith.constant 0 : i32
    %c0_i32_1 = arith.constant 0 : i32
    return %arg0, %c0_i32, %c0_i32_0 : i32, i32, i32
  }
  func.func @transform_1(%arg0: i32) -> (i32, i32, i32) {
    %c0_i32 = arith.constant 0 : i32
    %c0_i32_0 = arith.constant 0 : i32
    %c0_i32_1 = arith.constant 0 : i32
    return %arg0, %c0_i32, %c0_i32_0 : i32, i32, i32
  }
  func.func @transform_2(%arg0: i32) -> (i32, i32, i32) {
    %c0_i32 = arith.constant 0 : i32
    %c0_i32_0 = arith.constant 0 : i32
    %c0_i32_1 = arith.constant 0 : i32
    return %arg0, %c0_i32, %c0_i32_0 : i32, i32, i32
  }
  func.func @transform_3(%arg0: i32) -> (i32, i32, i32) {
    %c0_i32 = arith.constant 0 : i32
    %c0_i32_0 = arith.constant 0 : i32
    %c0_i32_1 = arith.constant 0 : i32
    return %arg0, %c0_i32, %c0_i32_0 : i32, i32, i32
  }
}

</mosaic_0001>

<llo_original>
// kernel: scale_and_shift_invariant_loss.1
$region0: #{scale_and_shift_invariant_loss.1}
  #allocation0 [shape = 'u32[]', space=smem, size = 0x4, offset = 0x4, fixed_abs, tag = 'smem constant byte address 0x4 - core index']
  #allocation1 [shape = 'u32[144,128]{1,0:T(1,128)}', space=vmem, size = 0x12000, scoped, tag = 'internal scratch']
  %s0 = inlined_call_operand.hbm [shape: f32[2,40,128], index: 0, kind: input, shape index: {}]
  %s1 = inlined_call_operand.hbm [shape: f32[2,40,128], index: 1, kind: input, shape index: {}]
  %s2 = inlined_call_operand.hbm [shape: f32[2,40,128], index: 2, kind: input, shape index: {}]
  %s3 = inlined_call_operand.vmem [shape: f32[2,1,128], index: 3, kind: output, shape index: {}]
  %s4 = sld [smem:[#allocation0]]
  $region57: #{scale_and_shift_invariant_loss.1} parent=0
    _
  %s6 = ssub.s32 1, %s4
  %s7 = scalar_select 0, %s6, %s4
  $region1: #{scale_and_shift_invariant_loss.1} parent=0
    #allocation2 [shape = 'u8[40960]{0}', space=vmem, size = 0xa000, scoped, tag = 'input window, operand 0']
    #allocation3 [shape = 's32[2]{0}', space=sflag, size = 0x8, scoped, tag = 'scoped memory for scale_and_shift_invariant_loss.1']
    #allocation4 [shape = 'u8[40960]{0}', space=vmem, size = 0xa000, scoped, tag = 'input window, operand 1']
    #allocation5 [shape = 's32[2]{0}', space=sflag, size = 0x8, scoped, tag = 'scoped memory for scale_and_shift_invariant_loss.1']
    #allocation6 [shape = 'u8[40960]{0}', space=vmem, size = 0xa000, scoped, tag = 'input window, operand 2']
    %8 = vsyncpa [#allocation3], 0
    %s9 = scalar_lea.sflag [#allocation3], 1
    %10 = vsyncpa %s9, 0
    %11 = vsyncpa [#allocation5], 0
    %s12 = scalar_lea.sflag [#allocation5], 1
    %13 = vsyncpa %s12, 0
    loop: start=0, step=1, limit=4
    $region2: #{scale_and_shift_invariant_loss.1} parent=1 // loop_pre_header
      _
    $region3: #{scale_and_shift_invariant_loss.1} parent=1 // loop_header
      %s15 = sphi 0, %s19
      %p16 = scmp.ge.s32.totalorder %s15, 4
      %s25 = sphi 0, %s27
      %s28 = sphi 0, %s25
      %s29 = sphi 0, %s28
      %s45 = sphi 0, %s29
      %s51 = sphi 0, %s53
      %s54 = sphi 0, %s51
      %s55 = sphi 0, %s54
      %s71 = sphi 0, %s55
      %s77 = sphi 0, %s79
      %s80 = sphi 0, %s77
      %s81 = sphi 0, %s80
      %s97 = sphi 0, %s81
      %s103 = sphi 0, %s105
      %s106 = sphi 0, %s103
      %s107 = sphi 0, %s106
      %s123 = sphi 0, %s107
    $region4: #{scale_and_shift_invariant_loss.1} parent=1 // loop_header_branch
      %18 = sbr.rel (%p16) target = $region8
    $region5: #{scale_and_shift_invariant_loss.1} parent=1 // loop_body
      %s20 = ssub.s32 %s15, 1
      %s21 = ssub.s32 %s15, 2
      %s22 = sadd.s32 %s15, 1
      %s23 = ssub.s32 %s15, %s22
      %p24 = scmp.eq.s32.totalorder %s23, 0
      %s26 = sadd.s32 %s25, 1
      %s27 = scalar_select %p24, %s25, %s26
      %p30 = pneg %p24
      %p31 = scmp.eq.s32.totalorder %s15, 1
      %p32 = por %p30, %p31
      %p33 = scmp.ne.s32.totalorder %s25, %s28
      %p34 = scmp.eq.s32.totalorder %s15, 0
      %p35 = por %p33, %p34
      %p36 = scmp.ne.s32.totalorder %s25, %s28
      %p37 = scmp.eq.s32.totalorder %s20, 1
      %p38 = por %p36, %p37
      %p39 = scmp.ne.s32.totalorder %s28, %s29
      %p40 = scmp.eq.s32.totalorder %s20, 0
      %p41 = por %p39, %p40
      %p42 = scmp.ne.s32.totalorder %s28, %s29
      %p43 = scmp.eq.s32.totalorder %s21, 1
      %p44 = por %p42, %p43
      %p46 = scmp.ne.s32.totalorder %s29, %s45
      %p47 = scmp.eq.s32.totalorder %s21, 0
      %p48 = por %p46, %p47
      %s49 = ssub.s32 %s15, %s22
      %p50 = scmp.eq.s32.totalorder %s49, 0
      %s52 = sadd.s32 %s51, 1
      %s53 = scalar_select %p50, %s51, %s52
      %p56 = pneg %p50
      %p57 = scmp.eq.s32.totalorder %s15, 1
      %p58 = por %p56, %p57
      %p59 = scmp.ne.s32.totalorder %s51, %s54
      %p60 = scmp.eq.s32.totalorder %s15, 0
      %p61 = por %p59, %p60
      %p62 = scmp.ne.s32.totalorder %s51, %s54
      %p63 = scmp.eq.s32.totalorder %s20, 1
      %p64 = por %p62, %p63
      %p65 = scmp.ne.s32.totalorder %s54, %s55
      %p66 = scmp.eq.s32.totalorder %s20, 0
      %p67 = por %p65, %p66
      %p68 = scmp.ne.s32.totalorder %s54, %s55
      %p69 = scmp.eq.s32.totalorder %s21, 1
      %p70 = por %p68, %p69
      %p72 = scmp.ne.s32.totalorder %s55, %s71
      %p73 = scmp.eq.s32.totalorder %s21, 0
      %p74 = por %p72, %p73
      %s75 = ssub.s32 %s15, %s22
      %p76 = scmp.eq.s32.totalorder %s75, 0
      %s78 = sadd.s32 %s77, 1
      %s79 = scalar_select %p76, %s77, %s78
      %p82 = pneg %p76
      %p83 = scmp.eq.s32.totalorder %s15, 1
      %p84 = por %p82, %p83
      %p85 = scmp.ne.s32.totalorder %s77, %s80
      %p86 = scmp.eq.s32.totalorder %s15, 0
      %p87 = por %p85, %p86
      %p88 = scmp.ne.s32.totalorder %s77, %s80
      %p89 = scmp.eq.s32.totalorder %s20, 1
      %p90 = por %p88, %p89
      %p91 = scmp.ne.s32.totalorder %s80, %s81
      %p92 = scmp.eq.s32.totalorder %s20, 0
      %p93 = por %p91, %p92
      %p94 = scmp.ne.s32.totalorder %s80, %s81
      %p95 = scmp.eq.s32.totalorder %s21, 1
      %p96 = por %p94, %p95
      %p98 = scmp.ne.s32.totalorder %s81, %s97
      %p99 = scmp.eq.s32.totalorder %s21, 0
      %p100 = por %p98, %p99
      %s101 = ssub.s32 %s15, %s22
      %p102 = scmp.eq.s32.totalorder %s101, 0
      %s104 = sadd.s32 %s103, 1
      %s105 = scalar_select %p102, %s103, %s104
      %p108 = pneg %p102
      %p109 = scmp.eq.s32.totalorder %s15, 1
      %p110 = por %p108, %p109
      %p111 = scmp.ne.s32.totalorder %s103, %s106
      %p112 = scmp.eq.s32.totalorder %s15, 0
      %p113 = por %p111, %p112
      %p114 = scmp.ne.s32.totalorder %s103, %s106
      %p115 = scmp.eq.s32.totalorder %s20, 1
      %p116 = por %p114, %p115
      %p117 = scmp.ne.s32.totalorder %s106, %s107
      %p118 = scmp.eq.s32.totalorder %s20, 0
      %p119 = por %p117, %p118
      %p120 = scmp.ne.s32.totalorder %s106, %s107
      %p121 = scmp.eq.s32.totalorder %s21, 1
      %p122 = por %p120, %p121
      %p124 = scmp.ne.s32.totalorder %s107, %s123
      %p125 = scmp.eq.s32.totalorder %s21, 0
      %p126 = por %p124, %p125
      %p127 = scmp.le.s32.totalorder 1, %s15
      %p128 = scmp.lt.s32.totalorder %s15, 3
      %p129 = pnand %p127, %p128
      %p130 = pneg %p129
      // Predicated region
      $region9: #{scale_and_shift_invariant_loss.1} parent=5 // pred_check
        _
      $region10: #{scale_and_shift_invariant_loss.1} parent=5 // pred_check_branch
        %132 = sbr.rel (%p129) target = $region12
      $region11: #{scale_and_shift_invariant_loss.1} parent=5 // pred_region
        %s133 = ssub.s32 %s15, 1
      $region12: #{scale_and_shift_invariant_loss.1} parent=5 // pred_fallthru
        _
      %p134 = scmp.lt.s32.totalorder %s15, 2
      // Predicated region
      $region13: #{scale_and_shift_invariant_loss.1} parent=5 // pred_check
        %p135 = pneg %p134
      $region14: #{scale_and_shift_invariant_loss.1} parent=5 // pred_check_branch
        %137 = sbr.rel (%p135) target = $region16
      $region15: #{scale_and_shift_invariant_loss.1} parent=5 // pred_region
        // Predicated region
        $region17: #{scale_and_shift_invariant_loss.1} parent=15 // pred_check
          %p138 = pneg %p35
        $region18: #{scale_and_shift_invariant_loss.1} parent=15 // pred_check_branch
          %140 = sbr.rel (%p138) target = $region20
        $region19: #{scale_and_shift_invariant_loss.1} parent=15 // pred_region
          %s141 = sand.u32 %s25, 1
          %s142 = scalar_lea.sflag [#allocation3], %s141
          %s143 = sand.u32 %s25, 1
          %s144 = smul.addr %s143, 40
          %s145 = scalar_lea.vmem [#allocation2], %s144
          %s147 = ssub.s32 640, 640
          %148 = vsyncadd %s142, %s147
          %s149 = smul.addr %s15, 5
          %s150 = smul.addr %s149, 128
          %s151 = scalar_lea.hbm %s0, %s150
          %s152 = sshll.u32 %s145, 4
          %s153 = int_to_ptr.vmem [resolvable:$true] %s152
          %158 = dma.hbm_to_vmem [thread:$0]  %s151, 640, %s153, %s142, 128, 128, 8
        $region20: #{scale_and_shift_invariant_loss.1} parent=15 // pred_fallthru
          _
        // Predicated region
        $region21: #{scale_and_shift_invariant_loss.1} parent=15 // pred_check
          %p159 = pneg %p61
        $region22: #{scale_and_shift_invariant_loss.1} parent=15 // pred_check_branch
          %161 = sbr.rel (%p159) target = $region24
        $region23: #{scale_and_shift_invariant_loss.1} parent=15 // pred_region
          %s162 = sand.u32 %s15, 1
          %s163 = scalar_lea.sflag [#allocation5], %s162
          %s164 = sand.u32 %s51, 1
          %s165 = smul.addr %s164, 40
          %s166 = scalar_lea.vmem [#allocation4], %s165
          %s168 = ssub.s32 640, 640
          %169 = vsyncadd %s163, %s168
          %s170 = smul.addr %s15, 5
          %s171 = smul.addr %s170, 128
          %s172 = scalar_lea.hbm %s1, %s171
          %s173 = sshll.u32 %s166, 4
          %s174 = int_to_ptr.vmem [resolvable:$true] %s173
          %179 = dma.hbm_to_vmem [thread:$0]  %s172, 640, %s174, %s163, 128, 128, 8
        $region24: #{scale_and_shift_invariant_loss.1} parent=15 // pred_fallthru
          _
        // Predicated region
        $region25: #{scale_and_shift_invariant_loss.1} parent=15 // pred_check
          %p180 = pneg %p87
        $region26: #{scale_and_shift_invariant_loss.1} parent=15 // pred_check_branch
          %182 = sbr.rel (%p180) target = $region28
        $region27: #{scale_and_shift_invariant_loss.1} parent=15 // pred_region
          %s183 = sand.u32 %s15, 1
          %s184 = scalar_lea.sflag [#allocation5], %s183
          %s185 = sand.u32 %s77, 1
          %s186 = smul.addr %s185, 40
          %s187 = scalar_lea.vmem [#allocation6], %s186
          %s189 = ssub.s32 640, 640
          %190 = vsyncadd %s184, %s189
          %s191 = smul.addr %s15, 5
          %s192 = smul.addr %s191, 128
          %s193 = scalar_lea.hbm %s2, %s192
          %s194 = sshll.u32 %s187, 4
          %s195 = int_to_ptr.vmem [resolvable:$true] %s194
          %200 = dma.hbm_to_vmem [thread:$0]  %s193, 640, %s195, %s184, 128, 128, 8
        $region28: #{scale_and_shift_invariant_loss.1} parent=15 // pred_fallthru
          _
      $region16: #{scale_and_shift_invariant_loss.1} parent=5 // pred_fallthru
        _
      %p201 = scmp.le.s32.totalorder 1, %s15
      %p202 = scmp.lt.s32.totalorder %s15, 3
      %p203 = pnand %p201, %p202
      %p204 = pneg %p203
      // Predicated region
      $region29: #{scale_and_shift_invariant_loss.1} parent=5 // pred_check
        _
      $region30: #{scale_and_shift_invariant_loss.1} parent=5 // pred_check_branch
        %206 = sbr.rel (%p203) target = $region32
      $region31: #{scale_and_shift_invariant_loss.1} parent=5 // pred_region
        %s207 = ssub.s32 %s15, 1
        %s208 = sand.u32 %s28, 1
        %s209 = scalar_lea.sflag [#allocation3], %s208
        %s210 = sand.u32 %s28, 1
        %s211 = smul.addr %s210, 40
        %s212 = scalar_lea.vmem [#allocation2], %s211
        // Predicated region
        $region33: #{scale_and_shift_invariant_loss.1} parent=31 // pred_check
          %p213 = pneg %p41
        $region34: #{scale_and_shift_invariant_loss.1} parent=31 // pred_check_branch
          %215 = sbr.rel (%p213) target = $region36
        $region35: #{scale_and_shift_invariant_loss.1} parent=31 // pred_region
          %216 = dma.done %s209, 640
        $region36: #{scale_and_shift_invariant_loss.1} parent=31 // pred_fallthru
          _
        %s217 = sand.u32 %s20, 1
        %s218 = scalar_lea.sflag [#allocation5], %s217
        %s219 = sand.u32 %s54, 1
        %s220 = smul.addr %s219, 40
        %s221 = scalar_lea.vmem [#allocation4], %s220
        // Predicated region
        $region37: #{scale_and_shift_invariant_loss.1} parent=31 // pred_check
          %p222 = pneg %p67
        $region38: #{scale_and_shift_invariant_loss.1} parent=31 // pred_check_branch
          %224 = sbr.rel (%p222) target = $region40
        $region39: #{scale_and_shift_invariant_loss.1} parent=31 // pred_region
          %225 = dma.done %s218, 640
        $region40: #{scale_and_shift_invariant_loss.1} parent=31 // pred_fallthru
          _
        %s226 = sand.u32 %s20, 1
        %s227 = scalar_lea.sflag [#allocation5], %s226
        %s228 = sand.u32 %s80, 1
        %s229 = smul.addr %s228, 40
        %s230 = scalar_lea.vmem [#allocation6], %s229
        // Predicated region
        $region41: #{scale_and_shift_invariant_loss.1} parent=31 // pred_check
          %p231 = pneg %p93
        $region42: #{scale_and_shift_invariant_loss.1} parent=31 // pred_check_branch
          %233 = sbr.rel (%p231) target = $region44
        $region43: #{scale_and_shift_invariant_loss.1} parent=31 // pred_region
          %234 = dma.done %s227, 640
        $region44: #{scale_and_shift_invariant_loss.1} parent=31 // pred_fallthru
          _
        %s235 = sand.u32 %s28, 1
        %s236 = scalar_lea.sflag [#allocation3], %s235
        %s237 = sand.u32 %s28, 1
        %s238 = smul.addr %s237, 40
        %s239 = scalar_lea.vmem [#allocation2], %s238
        %p240 = pneg %p41
        %p241 = pneg %p38
        %s242 = sand.u32 %s20, 1
        %s243 = scalar_lea.sflag [#allocation5], %s242
        %s244 = sand.u32 %s54, 1
        %s245 = smul.addr %s244, 40
        %s246 = scalar_lea.vmem [#allocation4], %s245
        %p247 = pneg %p67
        %p248 = pneg %p64
        %s249 = sand.u32 %s20, 1
        %s250 = scalar_lea.sflag [#allocation5], %s249
        %s251 = sand.u32 %s80, 1
        %s252 = smul.addr %s251, 40
        %s253 = scalar_lea.vmem [#allocation6], %s252
        %p254 = pneg %p93
        %p255 = pneg %p90
        %p256 = pneg %p119
        %p257 = pneg %p116
        %p258 = scmp.lt.s32.totalorder %s20, 1
        %s259 = scalar_select %p258, %s20, 1
        %s260 = scalar_lea.vmem %s3, %s259
        %p261 = scmp.lt.s32.totalorder %s20, 1
        %s262 = scalar_select %p261, %s20, 1
        %s263 = scalar_lea.vmem %s3, %s262
        %v264 = vld [vmem:[%s212] sm:$0xff]
        %v265 = vld [vmem:[%s212 + $0x8] sm:$0xff]
        %v266 = vld [vmem:[%s212 + $0x10] sm:$0xff]
        %v267 = vld [vmem:[%s212 + $0x18] sm:$0xff]
        %v268 = vld [vmem:[%s212 + $0x20] sm:$0xff]
        %v269 = vld [vmem:[%s221] sm:$0xff]
        %v270 = vld [vmem:[%s221 + $0x8] sm:$0xff]
        %v271 = vld [vmem:[%s221 + $0x10] sm:$0xff]
        %v272 = vld [vmem:[%s221 + $0x18] sm:$0xff]
        %v273 = vld [vmem:[%s221 + $0x20] sm:$0xff]
        %v274 = vld [vmem:[%s230] sm:$0xff]
        %v275 = vld [vmem:[%s230 + $0x8] sm:$0xff]
        %v276 = vld [vmem:[%s230 + $0x10] sm:$0xff]
        %v277 = vld [vmem:[%s230 + $0x18] sm:$0xff]
        %v278 = vld [vmem:[%s230 + $0x20] sm:$0xff]
        %v279 = vmul.f32 %v274, %v264
        %v280 = vmul.f32 %v275, %v265
        %v281 = vmul.f32 %v276, %v266
        %v282 = vmul.f32 %v277, %v267
        %v283 = vmul.f32 %v278, %v268
        %v284 = vmul.f32 %v279, %v264
        %v285 = vmul.f32 %v280, %v265
        %v286 = vmul.f32 %v281, %v266
        %v287 = vmul.f32 %v282, %v267
        %v288 = vmul.f32 %v283, %v268
        %v289 = vadd.f32 %v284, %v285
        %v290 = vadd.f32 %v289, %v286
        %v291 = vadd.f32 %v290, %v287
        %v292 = vadd.f32 %v291, %v288
        %293 = vadd.xlane.f32.xlu0 %v292
        %v294 = vpop.xlane.xlu0 %293
        %v295 = vrot.slane %v294, 4
        %v296 = vadd.f32 %v294, %v295
        %v297 = vrot.slane %v296, 2
        %v298 = vadd.f32 %v296, %v297
        %v299 = vrot.slane %v298, 1
        %v300 = vadd.f32 %v298, %v299
        %s301 = vtos %v300
        %v302 = vadd.f32 %v279, %v280
        %v303 = vadd.f32 %v302, %v281
        %v304 = vadd.f32 %v303, %v282
        %v305 = vadd.f32 %v304, %v283
        %306 = vadd.xlane.f32.xlu0 %v305
        %v307 = vpop.xlane.xlu0 %306
        %v308 = vrot.slane %v307, 4
        %v309 = vadd.f32 %v307, %v308
        %v310 = vrot.slane %v309, 2
        %v311 = vadd.f32 %v309, %v310
        %v312 = vrot.slane %v311, 1
        %v313 = vadd.f32 %v311, %v312
        %s314 = vtos %v313
        %v315 = vadd.f32 %v274, %v275
        %v316 = vadd.f32 %v315, %v276
        %v317 = vadd.f32 %v316, %v277
        %v318 = vadd.f32 %v317, %v278
        %319 = vadd.xlane.f32.xlu0 %v318
        %v320 = vpop.xlane.xlu0 %319
        %v321 = vrot.slane %v320, 4
        %v322 = vadd.f32 %v320, %v321
        %v323 = vrot.slane %v322, 2
        %v324 = vadd.f32 %v322, %v323
        %v325 = vrot.slane %v324, 1
        %v326 = vadd.f32 %v324, %v325
        %s327 = vtos %v326
        %v328 = vmul.f32 %v279, %v269
        %v329 = vmul.f32 %v280, %v270
        %v330 = vmul.f32 %v281, %v271
        %v331 = vmul.f32 %v282, %v272
        %v332 = vmul.f32 %v283, %v273
        %v333 = vadd.f32 %v328, %v329
        %v334 = vadd.f32 %v333, %v330
        %v335 = vadd.f32 %v334, %v331
        %v336 = vadd.f32 %v335, %v332
        %337 = vadd.xlane.f32.xlu0 %v336
        %v338 = vpop.xlane.xlu0 %337
        %v339 = vrot.slane %v338, 4
        %v340 = vadd.f32 %v338, %v339
        %v341 = vrot.slane %v340, 2
        %v342 = vadd.f32 %v340, %v341
        %v343 = vrot.slane %v342, 1
        %v344 = vadd.f32 %v342, %v343
        %s345 = vtos %v344
        %v346 = vmul.f32 %v274, %v269
        %v347 = vmul.f32 %v275, %v270
        %v348 = vmul.f32 %v276, %v271
        %v349 = vmul.f32 %v277, %v272
        %v350 = vmul.f32 %v278, %v273
        %v351 = vadd.f32 %v346, %v347
        %v352 = vadd.f32 %v351, %v348
        %v353 = vadd.f32 %v352, %v349
        %v354 = vadd.f32 %v353, %v350
        %355 = vadd.xlane.f32.xlu0 %v354
        %v356 = vpop.xlane.xlu0 %355
        %v357 = vrot.slane %v356, 4
        %v358 = vadd.f32 %v356, %v357
        %v359 = vrot.slane %v358, 2
        %v360 = vadd.f32 %v358, %v359
        %v361 = vrot.slane %v360, 1
        %v362 = vadd.f32 %v360, %v361
        %s363 = vtos %v362
        %s364 = smul.f32 %s301, %s327
        %s365 = smul.f32 %s314, %s314
        %s366 = ssub.f32 %s364, %s365
        %p367 = scmp.ne.f32.partialorder %s366, 0.0
        %s368 = scalar_select %p367, %s366, 1.0
        %s369 = smul.f32 %s327, %s345
        %s370 = smul.f32 %s314, %s363
        %s371 = ssub.f32 %s369, %s370
        %v372 = vstv %s368
        %v373 = vrcp.pop %v372
        %s374 = vtos %v373
        %s375 = smul.f32 %s371, %s374
        %s376 = scalar_select %p367, %s375, 0.0
        %s377 = ssub.f32 0.0, %s314
        %s378 = smul.f32 %s377, %s345
        %s379 = smul.f32 %s301, %s363
        %s380 = sadd.f32 %s378, %s379
        %v381 = vstv %s368
        %v382 = vrcp.pop %v381
        %s383 = vtos %v382
        %s384 = smul.f32 %s380, %s383
        %s385 = scalar_select %p367, %s384, 0.0
        %v386 = vstv %s376
        %v387 = vmul.f32 %v386, %v264
        %v388 = vmul.f32 %v386, %v265
        %v389 = vmul.f32 %v386, %v266
        %v390 = vmul.f32 %v386, %v267
        %v391 = vmul.f32 %v386, %v268
        %v392 = vstv %s385
        %v393 = vadd.f32 %v387, %v392
        %v394 = vadd.f32 %v388, %v392
        %v395 = vadd.f32 %v389, %v392
        %v396 = vadd.f32 %v390, %v392
        %v397 = vadd.f32 %v391, %v392
        %v398 = vsub.f32 %v393, %v269
        %v399 = vsub.f32 %v394, %v270
        %v400 = vsub.f32 %v395, %v271
        %v401 = vsub.f32 %v396, %v272
        %v402 = vsub.f32 %v397, %v273
        %v403 = vmul.f32 %v274, %v398
        %v404 = vmul.f32 %v275, %v399
        %v405 = vmul.f32 %v276, %v400
        %v406 = vmul.f32 %v277, %v401
        %v407 = vmul.f32 %v278, %v402
        %v408 = vlaneseq
        %v409 = vshrl.u32 %v408, 7
        %v410 = vadd.s32 %v409, 8
        %v411 = vadd.s32 %v409, 16
        %v412 = vadd.s32 %v409, 24
        %v413 = vadd.s32 %v409, 32
        %v414 = vadd.s32 %v409, 40
        %v415 = vadd.s32 %v409, 48
        %v416 = vadd.s32 %v409, 56
        %v417 = vadd.s32 %v409, 64
        %v418 = vadd.s32 %v409, 72
        %v419 = vadd.s32 %v409, 80
        %v420 = vadd.s32 %v409, 88
        %v421 = vadd.s32 %v409, 96
        %v422 = vadd.s32 %v409, 104
        %v423 = vadd.s32 %v409, 112
        %v424 = vadd.s32 %v409, 120
        %v425 = vmul.f32 %v403, %v398
        %v426 = vmul.f32 %v404, %v399
        %v427 = vmul.f32 %v405, %v400
        %v428 = vmul.f32 %v406, %v401
        %v429 = vmul.f32 %v407, %v402
        %430 = vmatprep.subr.mxu0 0.0
        %431 = vmatpush1.msra.mxu0 1.0
        %432 = vmatprep.subr.mxu0 0.0
        %433 = vmatpush1.msra.mxu0 1.0
        %434 = vmatprep.subr.mxu0 0.0
        %435 = vmatpush1.msra.mxu0 1.0
        %436 = vmatprep.subr.mxu0 0.0
        %437 = vmatpush1.msra.mxu0 1.0
        %438 = vmatprep.subr.mxu0 0.0
        %439 = vmatpush1.msra.mxu0 1.0
        %440 = vmatprep.subr.mxu0 0.0
        %441 = vmatpush1.msra.mxu0 1.0
        %442 = vmatprep.subr.mxu0 0.0
        %443 = vmatpush1.msra.mxu0 1.0
        %444 = vmatprep.subr.mxu0 0.0
        %445 = vmatpush1.msra.mxu0 1.0
        %446 = vmatprep.subr.mxu0 0.0
        %447 = vmatpush1.msra.mxu0 1.0
        %448 = vmatprep.subr.mxu0 0.0
        %449 = vmatpush1.msra.mxu0 1.0
        %450 = vmatprep.subr.mxu0 0.0
        %451 = vmatpush1.msra.mxu0 1.0
        %452 = vmatprep.subr.mxu0 0.0
        %453 = vmatpush1.msra.mxu0 1.0
        %454 = vmatprep.subr.mxu0 0.0
        %455 = vmatpush1.msra.mxu0 1.0
        %456 = vmatprep.subr.mxu0 0.0
        %457 = vmatpush1.msra.mxu0 1.0
        %458 = vmatprep.subr.mxu0 0.0
        %459 = vmatpush1.msra.mxu0 1.0
        %460 = vmatprep.subr.mxu0 0.0
        %461 = vmatpush1.msra.mxu0 1.0
        %462 = vmatprep.subr.mxu0 0.0
        %463 = vmatpush1.msra.mxu0 0.0
        %464 = vmatprep.subr.mxu0 0.0
        %465 = vmatpush1.msra.mxu0 0.0
        %466 = vmatprep.subr.mxu0 0.0
        %467 = vmatpush1.msra.mxu0 0.0
        %468 = vmatprep.subr.mxu0 0.0
        %469 = vmatpush1.msra.mxu0 0.0
        %470 = vmatprep.subr.mxu0 0.0
        %471 = vmatpush1.msra.mxu0 0.0
        %472 = vmatprep.subr.mxu0 0.0
        %473 = vmatpush1.msra.mxu0 0.0
        %474 = vmatprep.subr.mxu0 0.0
        %475 = vmatpush1.msra.mxu0 0.0
        %476 = vmatprep.subr.mxu0 0.0
        %477 = vmatpush1.msra.mxu0 0.0
        %478 = vmatprep.subr.mxu0 0.0
        %479 = vmatpush1.msra.mxu0 0.0
        %480 = vmatprep.subr.mxu0 0.0
        %481 = vmatpush1.msra.mxu0 0.0
        %482 = vmatprep.subr.mxu0 0.0
        %483 = vmatpush1.msra.mxu0 0.0
        %484 = vmatprep.subr.mxu0 0.0
        %485 = vmatpush1.msra.mxu0 0.0
        %486 = vmatprep.subr.mxu0 0.0
        %487 = vmatpush1.msra.mxu0 0.0
        %488 = vmatprep.subr.mxu0 0.0
        %489 = vmatpush1.msra.mxu0 0.0
        %490 = vmatprep.subr.mxu0 0.0
        %491 = vmatpush1.msra.mxu0 0.0
        %492 = vmatprep.subr.mxu0 0.0
        %493 = vmatpush1.msra.mxu0 0.0
        %494 = vmatprep.mubr.f32.mxu0 0.0
        %495 = vmatmul.mubr.f32.gmra.mrb[0].mxu0 %v425
        %v496 = vpop.f32.mrb[0].mxu0
        %v497 = vadd.f32 0.0, %v496
        %v498 = vpop.f32.mrb[0].mxu0
        %499 = vmatprep.mubr.f32.mxu0 0.0
        %500 = vmatmul.mubr.f32.gmra.mrb[0].mxu0 %v426
        %v501 = vpop.f32.mrb[0].mxu0
        %v502 = vadd.f32 0.0, %v501
        %v503 = vpop.f32.mrb[0].mxu0
        %504 = vmatprep.mubr.f32.mxu0 0.0
        %505 = vmatmul.mubr.f32.gmra.mrb[0].mxu0 %v427
        %v506 = vpop.f32.mrb[0].mxu0
        %v507 = vadd.f32 0.0, %v506
        %v508 = vpop.f32.mrb[0].mxu0
        %509 = vmatprep.mubr.f32.mxu0 0.0
        %510 = vmatmul.mubr.f32.gmra.mrb[0].mxu0 %v428
        %v511 = vpop.f32.mrb[0].mxu0
        %v512 = vadd.f32 0.0, %v511
        %v513 = vpop.f32.mrb[0].mxu0
        %514 = vmatprep.mubr.f32.mxu0 0.0
        %515 = vmatmul.mubr.f32.gmra.mrb[0].mxu0 %v429
        %v516 = vpop.f32.mrb[0].mxu0
        %v517 = vadd.f32 0.0, %v516
        %v518 = vpop.f32.mrb[0].mxu0
        %519 = vdwg.mxu0
        %vm520 = vcmask 7168
        %v521 = vsel %vm520, %v497, 0.0
        %v522 = vsel %vm520, %v502, 0.0
        %v523 = vadd.f32 %v521, %v522
        %v524 = vsel %vm520, %v507, 0.0
        %v525 = vadd.f32 %v523, %v524
        %v526 = vsel %vm520, %v512, 0.0
        %v527 = vadd.f32 %v525, %v526
        %v528 = vsel %vm520, %v517, 0.0
        %v529 = vadd.f32 %v527, %v528
        %530 = vadd.xlane.f32.xlu0 %v529
        %v531 = vpop.xlane.xlu0 %530
        %v532 = vrot.slane %v531, 4
        %v533 = vadd.f32 %v531, %v532
        %v534 = vrot.slane %v533, 2
        %v535 = vadd.f32 %v533, %v534
        %v536 = vrot.slane %v535, 1
        %v537 = vadd.f32 %v535, %v536
        %s538 = vtos %v537
        %544 = vrot.lane.b32.xlu0 %v403, 127
        %v545 = vpop.permute.xlu0 %544
        %546 = vrot.lane.b32.xlu0 %v404, 127
        %v547 = vpop.permute.xlu0 %546
        %548 = vrot.lane.b32.xlu0 %v405, 127
        %v549 = vpop.permute.xlu0 %548
        %550 = vrot.lane.b32.xlu0 %v406, 127
        %v551 = vpop.permute.xlu0 %550
        %552 = vrot.lane.b32.xlu0 %v407, 127
        %v553 = vpop.permute.xlu0 %552
        %564 = vrot.lane.b32.xlu0 %v274, 127
        %v565 = vpop.permute.xlu0 %564
        %566 = vrot.lane.b32.xlu0 %v275, 127
        %v567 = vpop.permute.xlu0 %566
        %568 = vrot.lane.b32.xlu0 %v276, 127
        %v569 = vpop.permute.xlu0 %568
        %570 = vrot.lane.b32.xlu0 %v277, 127
        %v571 = vpop.permute.xlu0 %570
        %572 = vrot.lane.b32.xlu0 %v278, 127
        %v573 = vpop.permute.xlu0 %572
        %v579 = vsub.f32 %v545, %v403
        %v580 = vsub.f32 %v547, %v404
        %v581 = vsub.f32 %v549, %v405
        %v582 = vsub.f32 %v551, %v406
        %v583 = vsub.f32 %v553, %v407
        %v584 = vand.u32 2147483647, %v579
        %v585 = vand.u32 2147483647, %v580
        %v586 = vand.u32 2147483647, %v581
        %v587 = vand.u32 2147483647, %v582
        %v588 = vand.u32 2147483647, %v583
        %v589 = vmul.f32 %v565, %v274
        %v590 = vmul.f32 %v567, %v275
        %v591 = vmul.f32 %v569, %v276
        %v592 = vmul.f32 %v571, %v277
        %v593 = vmul.f32 %v573, %v278
        %v594 = vmul.f32 %v584, %v589
        %v595 = vmul.f32 %v585, %v590
        %v596 = vmul.f32 %v586, %v591
        %v597 = vmul.f32 %v587, %v592
        %v598 = vmul.f32 %v588, %v593
        %vm599 = vcmp.lt.s32.totalorder %v409, 127
        %vm600 = vcmp.lt.s32.totalorder %v410, 127
        %vm601 = vcmp.lt.s32.totalorder %v411, 127
        %vm602 = vcmp.lt.s32.totalorder %v412, 127
        %vm603 = vcmp.lt.s32.totalorder %v413, 127
        %vm604 = vcmp.lt.s32.totalorder %v414, 127
        %vm605 = vcmp.lt.s32.totalorder %v415, 127
        %vm606 = vcmp.lt.s32.totalorder %v416, 127
        %vm607 = vcmp.lt.s32.totalorder %v417, 127
        %vm608 = vcmp.lt.s32.totalorder %v418, 127
        %vm609 = vcmp.lt.s32.totalorder %v419, 127
        %vm610 = vcmp.lt.s32.totalorder %v420, 127
        %vm611 = vcmp.lt.s32.totalorder %v421, 127
        %vm612 = vcmp.lt.s32.totalorder %v422, 127
        %vm613 = vcmp.lt.s32.totalorder %v423, 127
        %vm614 = vcmp.lt.s32.totalorder %v424, 127
        %v615 = vsel %vm599, 1, 0
        %v616 = vsel %vm600, 1, 0
        %v617 = vsel %vm601, 1, 0
        %v618 = vsel %vm602, 1, 0
        %v619 = vsel %vm603, 1, 0
        %v620 = vsel %vm604, 1, 0
        %v621 = vsel %vm605, 1, 0
        %v622 = vsel %vm606, 1, 0
        %v623 = vsel %vm607, 1, 0
        %v624 = vsel %vm608, 1, 0
        %v625 = vsel %vm609, 1, 0
        %v626 = vsel %vm610, 1, 0
        %v627 = vsel %vm611, 1, 0
        %v628 = vsel %vm612, 1, 0
        %v629 = vsel %vm613, 1, 0
        %v630 = vsel %vm614, 1, 0
        %v631 = vcvt.s32.f32 %v615
        %v632 = vcvt.s32.f32 %v616
        %v633 = vcvt.s32.f32 %v617
        %v634 = vcvt.s32.f32 %v618
        %v635 = vcvt.s32.f32 %v619
        %v636 = vcvt.s32.f32 %v620
        %v637 = vcvt.s32.f32 %v621
        %v638 = vcvt.s32.f32 %v622
        %v639 = vcvt.s32.f32 %v623
        %v640 = vcvt.s32.f32 %v624
        %v641 = vcvt.s32.f32 %v625
        %v642 = vcvt.s32.f32 %v626
        %v643 = vcvt.s32.f32 %v627
        %v644 = vcvt.s32.f32 %v628
        %v645 = vcvt.s32.f32 %v629
        %v646 = vcvt.s32.f32 %v630
        %647 = vmatprep.subr.mxu0 0.0
        %648 = vmatpush1.msra.mxu0 %v631
        %649 = vmatprep.subr.mxu0 0.0
        %650 = vmatpush1.msra.mxu0 %v632
        %651 = vmatprep.subr.mxu0 0.0
        %652 = vmatpush1.msra.mxu0 %v633
        %653 = vmatprep.subr.mxu0 0.0
        %654 = vmatpush1.msra.mxu0 %v634
        %655 = vmatprep.subr.mxu0 0.0
        %656 = vmatpush1.msra.mxu0 %v635
        %657 = vmatprep.subr.mxu0 0.0
        %658 = vmatpush1.msra.mxu0 %v636
        %659 = vmatprep.subr.mxu0 0.0
        %660 = vmatpush1.msra.mxu0 %v637
        %661 = vmatprep.subr.mxu0 0.0
        %662 = vmatpush1.msra.mxu0 %v638
        %663 = vmatprep.subr.mxu0 0.0
        %664 = vmatpush1.msra.mxu0 %v639
        %665 = vmatprep.subr.mxu0 0.0
        %666 = vmatpush1.msra.mxu0 %v640
        %667 = vmatprep.subr.mxu0 0.0
        %668 = vmatpush1.msra.mxu0 %v641
        %669 = vmatprep.subr.mxu0 0.0
        %670 = vmatpush1.msra.mxu0 %v642
        %671 = vmatprep.subr.mxu0 0.0
        %672 = vmatpush1.msra.mxu0 %v643
        %673 = vmatprep.subr.mxu0 0.0
        %674 = vmatpush1.msra.mxu0 %v644
        %675 = vmatprep.subr.mxu0 0.0
        %676 = vmatpush1.msra.mxu0 %v645
        %677 = vmatprep.subr.mxu0 0.0
        %678 = vmatpush1.msra.mxu0 %v646
        %679 = vmatprep.subr.mxu0 0.0
        %680 = vmatpush1.msra.mxu0 0.0
        %681 = vmatprep.subr.mxu0 0.0
        %682 = vmatpush1.msra.mxu0 0.0
        %683 = vmatprep.subr.mxu0 0.0
        %684 = vmatpush1.msra.mxu0 0.0
        %685 = vmatprep.subr.mxu0 0.0
        %686 = vmatpush1.msra.mxu0 0.0
        %687 = vmatprep.subr.mxu0 0.0
        %688 = vmatpush1.msra.mxu0 0.0
        %689 = vmatprep.subr.mxu0 0.0
        %690 = vmatpush1.msra.mxu0 0.0
        %691 = vmatprep.subr.mxu0 0.0
        %692 = vmatpush1.msra.mxu0 0.0
        %693 = vmatprep.subr.mxu0 0.0
        %694 = vmatpush1.msra.mxu0 0.0
        %695 = vmatprep.subr.mxu0 0.0
        %696 = vmatpush1.msra.mxu0 0.0
        %697 = vmatprep.subr.mxu0 0.0
        %698 = vmatpush1.msra.mxu0 0.0
        %699 = vmatprep.subr.mxu0 0.0
        %700 = vmatpush1.msra.mxu0 0.0
        %701 = vmatprep.subr.mxu0 0.0
        %702 = vmatpush1.msra.mxu0 0.0
        %703 = vmatprep.subr.mxu0 0.0
        %704 = vmatpush1.msra.mxu0 0.0
        %705 = vmatprep.subr.mxu0 0.0
        %706 = vmatpush1.msra.mxu0 0.0
        %707 = vmatprep.subr.mxu0 0.0
        %708 = vmatpush1.msra.mxu0 0.0
        %709 = vmatprep.subr.mxu0 0.0
        %710 = vmatpush1.msra.mxu0 0.0
        %711 = vmatprep.mubr.f32.mxu0 0.0
        %712 = vmatmul.mubr.f32.gmra.mrb[0].mxu0 %v594
        %v713 = vpop.f32.mrb[0].mxu0
        %v714 = vadd.f32 0.0, %v713
        %v715 = vpop.f32.mrb[0].mxu0
        %716 = vmatprep.mubr.f32.mxu0 0.0
        %717 = vmatmul.mubr.f32.gmra.mrb[0].mxu0 %v595
        %v718 = vpop.f32.mrb[0].mxu0
        %v719 = vadd.f32 0.0, %v718
        %v720 = vpop.f32.mrb[0].mxu0
        %721 = vmatprep.mubr.f32.mxu0 0.0
        %722 = vmatmul.mubr.f32.gmra.mrb[0].mxu0 %v596
        %v723 = vpop.f32.mrb[0].mxu0
        %v724 = vadd.f32 0.0, %v723
        %v725 = vpop.f32.mrb[0].mxu0
        %726 = vmatprep.mubr.f32.mxu0 0.0
        %727 = vmatmul.mubr.f32.gmra.mrb[0].mxu0 %v597
        %v728 = vpop.f32.mrb[0].mxu0
        %v729 = vadd.f32 0.0, %v728
        %v730 = vpop.f32.mrb[0].mxu0
        %731 = vmatprep.mubr.f32.mxu0 0.0
        %732 = vmatmul.mubr.f32.gmra.mrb[0].mxu0 %v598
        %v733 = vpop.f32.mrb[0].mxu0
        %v734 = vadd.f32 0.0, %v733
        %v735 = vpop.f32.mrb[0].mxu0
        %736 = vdwg.mxu0
        %v737 = vsel %vm520, %v714, 0.0
        %v738 = vsel %vm520, %v719, 0.0
        %v739 = vadd.f32 %v737, %v738
        %v740 = vsel %vm520, %v724, 0.0
        %v741 = vadd.f32 %v739, %v740
        %v742 = vsel %vm520, %v729, 0.0
        %v743 = vadd.f32 %v741, %v742
        %v744 = vsel %vm520, %v734, 0.0
        %v745 = vadd.f32 %v743, %v744
        %746 = vadd.xlane.f32.xlu0 %v745
        %v747 = vpop.xlane.xlu0 %746
        %v748 = vrot.slane %v747, 4
        %v749 = vadd.f32 %v747, %v748
        %v750 = vrot.slane %v749, 2
        %v751 = vadd.f32 %v749, %v750
        %v752 = vrot.slane %v751, 1
        %v753 = vadd.f32 %v751, %v752
        %s754 = vtos %v753
        %s755 = sadd.f32 %s754, 0.0
        %vm756 = vcmask 1046528
        %v757 = vrot.slane %v403, 1
        %v758 = vrot.slane %v404, 1
        %v759 = vsel %vm756, %v757, %v758
        %v760 = vrot.slane %v405, 1
        %v761 = vsel %vm756, %v758, %v760
        %v762 = vrot.slane %v406, 1
        %v763 = vsel %vm756, %v760, %v762
        %v764 = vrot.slane %v407, 1
        %v765 = vsel %vm756, %v762, %v764
        %v772 = vsel %vm756, %v764, %v757
        %v773 = vrot.slane %v274, 1
        %v774 = vrot.slane %v275, 1
        %v775 = vsel %vm756, %v773, %v774
        %v776 = vrot.slane %v276, 1
        %v777 = vsel %vm756, %v774, %v776
        %v778 = vrot.slane %v277, 1
        %v779 = vsel %vm756, %v776, %v778
        %v780 = vrot.slane %v278, 1
        %v781 = vsel %vm756, %v778, %v780
        %v788 = vsel %vm756, %v780, %v773
        %v789 = vsub.f32 %v759, %v403
        %v790 = vsub.f32 %v761, %v404
        %v791 = vsub.f32 %v763, %v405
        %v792 = vsub.f32 %v765, %v406
        %v793 = vsub.f32 %v772, %v407
        %v794 = vand.u32 2147483647, %v789
        %v795 = vand.u32 2147483647, %v790
        %v796 = vand.u32 2147483647, %v791
        %v797 = vand.u32 2147483647, %v792
        %v798 = vand.u32 2147483647, %v793
        %v799 = vmul.f32 %v775, %v274
        %v800 = vmul.f32 %v777, %v275
        %v801 = vmul.f32 %v779, %v276
        %v802 = vmul.f32 %v781, %v277
        %v803 = vmul.f32 %v788, %v278
        %v804 = vmul.f32 %v794, %v799
        %v805 = vmul.f32 %v795, %v800
        %v806 = vmul.f32 %v796, %v801
        %v807 = vmul.f32 %v797, %v802
        %v808 = vmul.f32 %v798, %v803
        %vm809 = vcmp.lt.s32.totalorder %v409, 39
        %vm810 = vcmp.lt.s32.totalorder %v410, 39
        %vm811 = vcmp.lt.s32.totalorder %v411, 39
        %vm812 = vcmp.lt.s32.totalorder %v412, 39
        %vm813 = vcmp.lt.s32.totalorder %v413, 39
        %v814 = vsel %vm809, 1, 0
        %v815 = vsel %vm810, 1, 0
        %v816 = vsel %vm811, 1, 0
        %v817 = vsel %vm812, 1, 0
        %v818 = vsel %vm813, 1, 0
        %v819 = vcvt.s32.f32 %v814
        %v820 = vcvt.s32.f32 %v815
        %v821 = vcvt.s32.f32 %v816
        %v822 = vcvt.s32.f32 %v817
        %v823 = vcvt.s32.f32 %v818
        %824 = vmatprep.subr.mxu0 0.0
        %825 = vmatpush1.msra.mxu0 1.0
        %826 = vmatprep.subr.mxu0 0.0
        %827 = vmatpush1.msra.mxu0 1.0
        %828 = vmatprep.subr.mxu0 0.0
        %829 = vmatpush1.msra.mxu0 1.0
        %830 = vmatprep.subr.mxu0 0.0
        %831 = vmatpush1.msra.mxu0 1.0
        %832 = vmatprep.subr.mxu0 0.0
        %833 = vmatpush1.msra.mxu0 1.0
        %834 = vmatprep.subr.mxu0 0.0
        %835 = vmatpush1.msra.mxu0 1.0
        %836 = vmatprep.subr.mxu0 0.0
        %837 = vmatpush1.msra.mxu0 1.0
        %838 = vmatprep.subr.mxu0 0.0
        %839 = vmatpush1.msra.mxu0 1.0
        %840 = vmatprep.subr.mxu0 0.0
        %841 = vmatpush1.msra.mxu0 1.0
        %842 = vmatprep.subr.mxu0 0.0
        %843 = vmatpush1.msra.mxu0 1.0
        %844 = vmatprep.subr.mxu0 0.0
        %845 = vmatpush1.msra.mxu0 1.0
        %846 = vmatprep.subr.mxu0 0.0
        %847 = vmatpush1.msra.mxu0 1.0
        %848 = vmatprep.subr.mxu0 0.0
        %849 = vmatpush1.msra.mxu0 1.0
        %850 = vmatprep.subr.mxu0 0.0
        %851 = vmatpush1.msra.mxu0 1.0
        %852 = vmatprep.subr.mxu0 0.0
        %853 = vmatpush1.msra.mxu0 1.0
        %854 = vmatprep.subr.mxu0 0.0
        %855 = vmatpush1.msra.mxu0 1.0
        %856 = vmatprep.subr.mxu0 0.0
        %857 = vmatpush1.msra.mxu0 0.0
        %858 = vmatprep.subr.mxu0 0.0
        %859 = vmatpush1.msra.mxu0 0.0
        %860 = vmatprep.subr.mxu0 0.0
        %861 = vmatpush1.msra.mxu0 0.0
        %862 = vmatprep.subr.mxu0 0.0
        %863 = vmatpush1.msra.mxu0 0.0
        %864 = vmatprep.subr.mxu0 0.0
        %865 = vmatpush1.msra.mxu0 0.0
        %866 = vmatprep.subr.mxu0 0.0
        %867 = vmatpush1.msra.mxu0 0.0
        %868 = vmatprep.subr.mxu0 0.0
        %869 = vmatpush1.msra.mxu0 0.0
        %870 = vmatprep.subr.mxu0 0.0
        %871 = vmatpush1.msra.mxu0 0.0
        %872 = vmatprep.subr.mxu0 0.0
        %873 = vmatpush1.msra.mxu0 0.0
        %874 = vmatprep.subr.mxu0 0.0
        %875 = vmatpush1.msra.mxu0 0.0
        %876 = vmatprep.subr.mxu0 0.0
        %877 = vmatpush1.msra.mxu0 0.0
        %878 = vmatprep.subr.mxu0 0.0
        %879 = vmatpush1.msra.mxu0 0.0
        %880 = vmatprep.subr.mxu0 0.0
        %881 = vmatpush1.msra.mxu0 0.0
        %882 = vmatprep.subr.mxu0 0.0
        %883 = vmatpush1.msra.mxu0 0.0
        %884 = vmatprep.subr.mxu0 0.0
        %885 = vmatpush1.msra.mxu0 0.0
        %886 = vmatprep.subr.mxu0 0.0
        %887 = vmatpush1.msra.mxu0 0.0
        %888 = vmatprep.mubr.f32.mxu0 0.0
        %889 = vmatmul.mubr.f32.gmra.mrb[0].mxu0 %v804
        %v890 = vpop.f32.mrb[0].mxu0
        %v891 = vadd.f32 0.0, %v890
        %v892 = vpop.f32.mrb[0].mxu0
        %893 = vmatprep.mubr.f32.mxu0 0.0
        %894 = vmatmul.mubr.f32.gmra.mrb[0].mxu0 %v805
        %v895 = vpop.f32.mrb[0].mxu0
        %v896 = vadd.f32 0.0, %v895
        %v897 = vpop.f32.mrb[0].mxu0
        %898 = vmatprep.mubr.f32.mxu0 0.0
        %899 = vmatmul.mubr.f32.gmra.mrb[0].mxu0 %v806
        %v900 = vpop.f32.mrb[0].mxu0
        %v901 = vadd.f32 0.0, %v900
        %v902 = vpop.f32.mrb[0].mxu0
        %903 = vmatprep.mubr.f32.mxu0 0.0
        %904 = vmatmul.mubr.f32.gmra.mrb[0].mxu0 %v807
        %v905 = vpop.f32.mrb[0].mxu0
        %v906 = vadd.f32 0.0, %v905
        %v907 = vpop.f32.mrb[0].mxu0
        %908 = vmatprep.mubr.f32.mxu0 0.0
        %909 = vmatmul.mubr.f32.gmra.mrb[0].mxu0 %v808
        %v910 = vpop.f32.mrb[0].mxu0
        %v911 = vadd.f32 0.0, %v910
        %v912 = vpop.f32.mrb[0].mxu0
        %913 = vdwg.mxu0
        %v914 = vmul.f32 %v891, %v819
        %v915 = vmul.f32 %v896, %v820
        %v916 = vmul.f32 %v901, %v821
        %v917 = vmul.f32 %v906, %v822
        %v918 = vmul.f32 %v911, %v823
        %v919 = vsel %vm520, %v914, 0.0
        %v920 = vsel %vm520, %v915, 0.0
        %v921 = vadd.f32 %v919, %v920
        %v922 = vsel %vm520, %v916, 0.0
        %v923 = vadd.f32 %v921, %v922
        %v924 = vsel %vm520, %v917, 0.0
        %v925 = vadd.f32 %v923, %v924
        %v926 = vsel %vm520, %v918, 0.0
        %v927 = vadd.f32 %v925, %v926
        %928 = vadd.xlane.f32.xlu0 %v927
        %v929 = vpop.xlane.xlu0 %928
        %v930 = vrot.slane %v929, 4
        %v931 = vadd.f32 %v929, %v930
        %v932 = vrot.slane %v931, 2
        %v933 = vadd.f32 %v931, %v932
        %v934 = vrot.slane %v933, 1
        %v935 = vadd.f32 %v933, %v934
        %s936 = vtos %v935
        %s937 = sadd.f32 %s755, %s936
        %v938 = vand.u32 %v409, 1
        %v939 = vand.u32 %v410, 1
        %v940 = vand.u32 %v411, 1
        %v941 = vand.u32 %v412, 1
        %v942 = vand.u32 %v413, 1
        %v943 = vand.u32 %v414, 1
        %v944 = vand.u32 %v415, 1
        %v945 = vand.u32 %v416, 1
        %v946 = vand.u32 %v417, 1
        %v947 = vand.u32 %v418, 1
        %v948 = vand.u32 %v419, 1
        %v949 = vand.u32 %v420, 1
        %v950 = vand.u32 %v421, 1
        %v951 = vand.u32 %v422, 1
        %v952 = vand.u32 %v423, 1
        %v953 = vand.u32 %v424, 1
        %vm954 = vcmp.eq.s32.totalorder %v938, 0
        %vm955 = vcmp.eq.s32.totalorder %v939, 0
        %vm956 = vcmp.eq.s32.totalorder %v940, 0
        %vm957 = vcmp.eq.s32.totalorder %v941, 0
        %vm958 = vcmp.eq.s32.totalorder %v942, 0
        %vm959 = vcmp.eq.s32.totalorder %v943, 0
        %vm960 = vcmp.eq.s32.totalorder %v944, 0
        %vm961 = vcmp.eq.s32.totalorder %v945, 0
        %vm962 = vcmp.eq.s32.totalorder %v946, 0
        %vm963 = vcmp.eq.s32.totalorder %v947, 0
        %vm964 = vcmp.eq.s32.totalorder %v948, 0
        %vm965 = vcmp.eq.s32.totalorder %v949, 0
        %vm966 = vcmp.eq.s32.totalorder %v950, 0
        %vm967 = vcmp.eq.s32.totalorder %v951, 0
        %vm968 = vcmp.eq.s32.totalorder %v952, 0
        %vm969 = vcmp.eq.s32.totalorder %v953, 0
        %v970 = vsel %vm954, 1, 0
        %v971 = vsel %vm955, 1, 0
        %v972 = vsel %vm956, 1, 0
        %v973 = vsel %vm957, 1, 0
        %v974 = vsel %vm958, 1, 0
        %v975 = vsel %vm959, 1, 0
        %v976 = vsel %vm960, 1, 0
        %v977 = vsel %vm961, 1, 0
        %v978 = vsel %vm962, 1, 0
        %v979 = vsel %vm963, 1, 0
        %v980 = vsel %vm964, 1, 0
        %v981 = vsel %vm965, 1, 0
        %v982 = vsel %vm966, 1, 0
        %v983 = vsel %vm967, 1, 0
        %v984 = vsel %vm968, 1, 0
        %v985 = vsel %vm969, 1, 0
        %v986 = vcvt.s32.f32 %v970
        %v987 = vcvt.s32.f32 %v971
        %v988 = vcvt.s32.f32 %v972
        %v989 = vcvt.s32.f32 %v973
        %v990 = vcvt.s32.f32 %v974
        %v991 = vcvt.s32.f32 %v975
        %v992 = vcvt.s32.f32 %v976
        %v993 = vcvt.s32.f32 %v977
        %v994 = vcvt.s32.f32 %v978
        %v995 = vcvt.s32.f32 %v979
        %v996 = vcvt.s32.f32 %v980
        %v997 = vcvt.s32.f32 %v981
        %v998 = vcvt.s32.f32 %v982
        %v999 = vcvt.s32.f32 %v983
        %v1000 = vcvt.s32.f32 %v984
        %v1001 = vcvt.s32.f32 %v985
        %1002 = vrot.lane.b32.xlu0 %v403, 126
        %v1003 = vpop.permute.xlu0 %1002
        %1004 = vrot.lane.b32.xlu0 %v404, 126
        %v1005 = vpop.permute.xlu0 %1004
        %1006 = vrot.lane.b32.xlu0 %v405, 126
        %v1007 = vpop.permute.xlu0 %1006
        %1008 = vrot.lane.b32.xlu0 %v406, 126
        %v1009 = vpop.permute.xlu0 %1008
        %1010 = vrot.lane.b32.xlu0 %v407, 126
        %v1011 = vpop.permute.xlu0 %1010
        %1017 = vrot.lane.b32.xlu0 %v274, 126
        %v1018 = vpop.permute.xlu0 %1017
        %1019 = vrot.lane.b32.xlu0 %v275, 126
        %v1020 = vpop.permute.xlu0 %1019
        %1021 = vrot.lane.b32.xlu0 %v276, 126
        %v1022 = vpop.permute.xlu0 %1021
        %1023 = vrot.lane.b32.xlu0 %v277, 126
        %v1024 = vpop.permute.xlu0 %1023
        %1025 = vrot.lane.b32.xlu0 %v278, 126
        %v1026 = vpop.permute.xlu0 %1025
        %v1032 = vsub.f32 %v1003, %v403
        %v1033 = vsub.f32 %v1005, %v404
        %v1034 = vsub.f32 %v1007, %v405
        %v1035 = vsub.f32 %v1009, %v406
        %v1036 = vsub.f32 %v1011, %v407
        %v1037 = vand.u32 2147483647, %v1032
        %v1038 = vand.u32 2147483647, %v1033
        %v1039 = vand.u32 2147483647, %v1034
        %v1040 = vand.u32 2147483647, %v1035
        %v1041 = vand.u32 2147483647, %v1036
        %v1042 = vmul.f32 %v1018, %v274
        %v1043 = vmul.f32 %v1020, %v275
        %v1044 = vmul.f32 %v1022, %v276
        %v1045 = vmul.f32 %v1024, %v277
        %v1046 = vmul.f32 %v1026, %v278
        %v1047 = vmul.f32 %v1037, %v1042
        %v1048 = vmul.f32 %v1038, %v1043
        %v1049 = vmul.f32 %v1039, %v1044
        %v1050 = vmul.f32 %v1040, %v1045
        %v1051 = vmul.f32 %v1041, %v1046
        %vm1052 = vcmp.lt.s32.totalorder %v409, 126
        %vm1053 = vcmp.lt.s32.totalorder %v410, 126
        %vm1054 = vcmp.lt.s32.totalorder %v411, 126
        %vm1055 = vcmp.lt.s32.totalorder %v412, 126
        %vm1056 = vcmp.lt.s32.totalorder %v413, 126
        %vm1057 = vcmp.lt.s32.totalorder %v414, 126
        %vm1058 = vcmp.lt.s32.totalorder %v415, 126
        %vm1059 = vcmp.lt.s32.totalorder %v416, 126
        %vm1060 = vcmp.lt.s32.totalorder %v417, 126
        %vm1061 = vcmp.lt.s32.totalorder %v418, 126
        %vm1062 = vcmp.lt.s32.totalorder %v419, 126
        %vm1063 = vcmp.lt.s32.totalorder %v420, 126
        %vm1064 = vcmp.lt.s32.totalorder %v421, 126
        %vm1065 = vcmp.lt.s32.totalorder %v422, 126
        %vm1066 = vcmp.lt.s32.totalorder %v423, 126
        %vm1067 = vcmp.lt.s32.totalorder %v424, 126
        %vm1068 = vmand %vm954, %vm1052
        %vm1069 = vmand %vm955, %vm1053
        %vm1070 = vmand %vm956, %vm1054
        %vm1071 = vmand %vm957, %vm1055
        %vm1072 = vmand %vm958, %vm1056
        %vm1073 = vmand %vm959, %vm1057
        %vm1074 = vmand %vm960, %vm1058
        %vm1075 = vmand %vm961, %vm1059
        %vm1076 = vmand %vm962, %vm1060
        %vm1077 = vmand %vm963, %vm1061
        %vm1078 = vmand %vm964, %vm1062
        %vm1079 = vmand %vm965, %vm1063
        %vm1080 = vmand %vm966, %vm1064
        %vm1081 = vmand %vm967, %vm1065
        %vm1082 = vmand %vm968, %vm1066
        %vm1083 = vmand %vm969, %vm1067
        %v1084 = vsel %vm1068, 1, 0
        %v1085 = vsel %vm1069, 1, 0
        %v1086 = vsel %vm1070, 1, 0
        %v1087 = vsel %vm1071, 1, 0
        %v1088 = vsel %vm1072, 1, 0
        %v1089 = vsel %vm1073, 1, 0
        %v1090 = vsel %vm1074, 1, 0
        %v1091 = vsel %vm1075, 1, 0
        %v1092 = vsel %vm1076, 1, 0
        %v1093 = vsel %vm1077, 1, 0
        %v1094 = vsel %vm1078, 1, 0
        %v1095 = vsel %vm1079, 1, 0
        %v1096 = vsel %vm1080, 1, 0
        %v1097 = vsel %vm1081, 1, 0
        %v1098 = vsel %vm1082, 1, 0
        %v1099 = vsel %vm1083, 1, 0
        %v1100 = vcvt.s32.f32 %v1084
        %v1101 = vcvt.s32.f32 %v1085
        %v1102 = vcvt.s32.f32 %v1086
        %v1103 = vcvt.s32.f32 %v1087
        %v1104 = vcvt.s32.f32 %v1088
        %v1105 = vcvt.s32.f32 %v1089
        %v1106 = vcvt.s32.f32 %v1090
        %v1107 = vcvt.s32.f32 %v1091
        %v1108 = vcvt.s32.f32 %v1092
        %v1109 = vcvt.s32.f32 %v1093
        %v1110 = vcvt.s32.f32 %v1094
        %v1111 = vcvt.s32.f32 %v1095
        %v1112 = vcvt.s32.f32 %v1096
        %v1113 = vcvt.s32.f32 %v1097
        %v1114 = vcvt.s32.f32 %v1098
        %v1115 = vcvt.s32.f32 %v1099
        %1116 = vmatprep.subr.mxu0 0.0
        %1117 = vmatpush1.msra.mxu0 %v1100
        %1118 = vmatprep.subr.mxu0 0.0
        %1119 = vmatpush1.msra.mxu0 %v1101
        %1120 = vmatprep.subr.mxu0 0.0
        %1121 = vmatpush1.msra.mxu0 %v1102
        %1122 = vmatprep.subr.mxu0 0.0
        %1123 = vmatpush1.msra.mxu0 %v1103
        %1124 = vmatprep.subr.mxu0 0.0
        %1125 = vmatpush1.msra.mxu0 %v1104
        %1126 = vmatprep.subr.mxu0 0.0
        %1127 = vmatpush1.msra.mxu0 %v1105
        %1128 = vmatprep.subr.mxu0 0.0
        %1129 = vmatpush1.msra.mxu0 %v1106
        %1130 = vmatprep.subr.mxu0 0.0
        %1131 = vmatpush1.msra.mxu0 %v1107
        %1132 = vmatprep.subr.mxu0 0.0
        %1133 = vmatpush1.msra.mxu0 %v1108
        %1134 = vmatprep.subr.mxu0 0.0
        %1135 = vmatpush1.msra.mxu0 %v1109
        %1136 = vmatprep.subr.mxu0 0.0
        %1137 = vmatpush1.msra.mxu0 %v1110
        %1138 = vmatprep.subr.mxu0 0.0
        %1139 = vmatpush1.msra.mxu0 %v1111
        %1140 = vmatprep.subr.mxu0 0.0
        %1141 = vmatpush1.msra.mxu0 %v1112
        %1142 = vmatprep.subr.mxu0 0.0
        %1143 = vmatpush1.msra.mxu0 %v1113
        %1144 = vmatprep.subr.mxu0 0.0
        %1145 = vmatpush1.msra.mxu0 %v1114
        %1146 = vmatprep.subr.mxu0 0.0
        %1147 = vmatpush1.msra.mxu0 %v1115
        %1148 = vmatprep.subr.mxu0 0.0
        %1149 = vmatpush1.msra.mxu0 0.0
        %1150 = vmatprep.subr.mxu0 0.0
        %1151 = vmatpush1.msra.mxu0 0.0
        %1152 = vmatprep.subr.mxu0 0.0
        %1153 = vmatpush1.msra.mxu0 0.0
        %1154 = vmatprep.subr.mxu0 0.0
        %1155 = vmatpush1.msra.mxu0 0.0
        %1156 = vmatprep.subr.mxu0 0.0
        %1157 = vmatpush1.msra.mxu0 0.0
        %1158 = vmatprep.subr.mxu0 0.0
        %1159 = vmatpush1.msra.mxu0 0.0
        %1160 = vmatprep.subr.mxu0 0.0
        %1161 = vmatpush1.msra.mxu0 0.0
        %1162 = vmatprep.subr.mxu0 0.0
        %1163 = vmatpush1.msra.mxu0 0.0
        %1164 = vmatprep.subr.mxu0 0.0
        %1165 = vmatpush1.msra.mxu0 0.0
        %1166 = vmatprep.subr.mxu0 0.0
        %1167 = vmatpush1.msra.mxu0 0.0
        %1168 = vmatprep.subr.mxu0 0.0
        %1169 = vmatpush1.msra.mxu0 0.0
        %1170 = vmatprep.subr.mxu0 0.0
        %1171 = vmatpush1.msra.mxu0 0.0
        %1172 = vmatprep.subr.mxu0 0.0
        %1173 = vmatpush1.msra.mxu0 0.0
        %1174 = vmatprep.subr.mxu0 0.0
        %1175 = vmatpush1.msra.mxu0 0.0
        %1176 = vmatprep.subr.mxu0 0.0
        %1177 = vmatpush1.msra.mxu0 0.0
        %1178 = vmatprep.subr.mxu0 0.0
        %1179 = vmatpush1.msra.mxu0 0.0
        %1180 = vmatprep.mubr.f32.mxu0 0.0
        %1181 = vmatmul.mubr.f32.gmra.mrb[0].mxu0 %v1047
        %v1182 = vpop.f32.mrb[0].mxu0
        %v1183 = vadd.f32 0.0, %v1182
        %v1184 = vpop.f32.mrb[0].mxu0
        %1185 = vmatprep.mubr.f32.mxu0 0.0
        %1186 = vmatmul.mubr.f32.gmra.mrb[0].mxu0 %v1048
        %v1187 = vpop.f32.mrb[0].mxu0
        %v1188 = vadd.f32 0.0, %v1187
        %v1189 = vpop.f32.mrb[0].mxu0
        %1190 = vmatprep.mubr.f32.mxu0 0.0
        %1191 = vmatmul.mubr.f32.gmra.mrb[0].mxu0 %v1049
        %v1192 = vpop.f32.mrb[0].mxu0
        %v1193 = vadd.f32 0.0, %v1192
        %v1194 = vpop.f32.mrb[0].mxu0
        %1195 = vmatprep.mubr.f32.mxu0 0.0
        %1196 = vmatmul.mubr.f32.gmra.mrb[0].mxu0 %v1050
        %v1197 = vpop.f32.mrb[0].mxu0
        %v1198 = vadd.f32 0.0, %v1197
        %v1199 = vpop.f32.mrb[0].mxu0
        %1200 = vmatprep.mubr.f32.mxu0 0.0
        %1201 = vmatmul.mubr.f32.gmra.mrb[0].mxu0 %v1051
        %v1202 = vpop.f32.mrb[0].mxu0
        %v1203 = vadd.f32 0.0, %v1202
        %v1204 = vpop.f32.mrb[0].mxu0
        %1205 = vdwg.mxu0
        %v1206 = vmul.f32 %v1183, %v986
        %v1207 = vmul.f32 %v1188, %v987
        %v1208 = vmul.f32 %v1193, %v988
        %v1209 = vmul.f32 %v1198, %v989
        %v1210 = vmul.f32 %v1203, %v990
        %v1211 = vsel %vm520, %v1206, 0.0
        %v1212 = vsel %vm520, %v1207, 0.0
        %v1213 = vadd.f32 %v1211, %v1212
        %v1214 = vsel %vm520, %v1208, 0.0
        %v1215 = vadd.f32 %v1213, %v1214
        %v1216 = vsel %vm520, %v1209, 0.0
        %v1217 = vadd.f32 %v1215, %v1216
        %v1218 = vsel %vm520, %v1210, 0.0
        %v1219 = vadd.f32 %v1217, %v1218
        %1220 = vadd.xlane.f32.xlu0 %v1219
        %v1221 = vpop.xlane.xlu0 %1220
        %v1222 = vrot.slane %v1221, 4
        %v1223 = vadd.f32 %v1221, %v1222
        %v1224 = vrot.slane %v1223, 2
        %v1225 = vadd.f32 %v1223, %v1224
        %v1226 = vrot.slane %v1225, 1
        %v1227 = vadd.f32 %v1225, %v1226
        %s1228 = vtos %v1227
        %s1229 = sadd.f32 %s1228, 0.0
        %vm1230 = vcmask 1045504
        %v1231 = vrot.slane %v403, 2
        %v1232 = vrot.slane %v404, 2
        %v1233 = vsel %vm1230, %v1231, %v1232
        %v1234 = vrot.slane %v405, 2
        %v1235 = vsel %vm1230, %v1232, %v1234
        %v1236 = vrot.slane %v406, 2
        %v1237 = vsel %vm1230, %v1234, %v1236
        %v1238 = vrot.slane %v407, 2
        %v1239 = vsel %vm1230, %v1236, %v1238
        %v1246 = vsel %vm1230, %v1238, %v1231
        %v1247 = vrot.slane %v274, 2
        %v1248 = vrot.slane %v275, 2
        %v1249 = vsel %vm1230, %v1247, %v1248
        %v1250 = vrot.slane %v276, 2
        %v1251 = vsel %vm1230, %v1248, %v1250
        %v1252 = vrot.slane %v277, 2
        %v1253 = vsel %vm1230, %v1250, %v1252
        %v1254 = vrot.slane %v278, 2
        %v1255 = vsel %vm1230, %v1252, %v1254
        %v1262 = vsel %vm1230, %v1254, %v1247
        %v1263 = vsub.f32 %v1233, %v403
        %v1264 = vsub.f32 %v1235, %v404
        %v1265 = vsub.f32 %v1237, %v405
        %v1266 = vsub.f32 %v1239, %v406
        %v1267 = vsub.f32 %v1246, %v407
        %v1268 = vand.u32 2147483647, %v1263
        %v1269 = vand.u32 2147483647, %v1264
        %v1270 = vand.u32 2147483647, %v1265
        %v1271 = vand.u32 2147483647, %v1266
        %v1272 = vand.u32 2147483647, %v1267
        %v1273 = vmul.f32 %v1249, %v274
        %v1274 = vmul.f32 %v1251, %v275
        %v1275 = vmul.f32 %v1253, %v276
        %v1276 = vmul.f32 %v1255, %v277
        %v1277 = vmul.f32 %v1262, %v278
        %v1278 = vmul.f32 %v1268, %v1273
        %v1279 = vmul.f32 %v1269, %v1274
        %v1280 = vmul.f32 %v1270, %v1275
        %v1281 = vmul.f32 %v1271, %v1276
        %v1282 = vmul.f32 %v1272, %v1277
        %vm1283 = vcmp.lt.s32.totalorder %v409, 38
        %vm1284 = vcmp.lt.s32.totalorder %v410, 38
        %vm1285 = vcmp.lt.s32.totalorder %v411, 38
        %vm1286 = vcmp.lt.s32.totalorder %v412, 38
        %vm1287 = vcmp.lt.s32.totalorder %v413, 38
        %v1288 = vsel %vm1283, 1, 0
        %v1289 = vsel %vm1284, 1, 0
        %v1290 = vsel %vm1285, 1, 0
        %v1291 = vsel %vm1286, 1, 0
        %v1292 = vsel %vm1287, 1, 0
        %v1293 = vcvt.s32.f32 %v1288
        %v1294 = vcvt.s32.f32 %v1289
        %v1295 = vcvt.s32.f32 %v1290
        %v1296 = vcvt.s32.f32 %v1291
        %v1297 = vcvt.s32.f32 %v1292
        %v1298 = vmul.f32 %v986, %v1293
        %v1299 = vmul.f32 %v987, %v1294
        %v1300 = vmul.f32 %v988, %v1295
        %v1301 = vmul.f32 %v989, %v1296
        %v1302 = vmul.f32 %v990, %v1297
        %1303 = vmatprep.subr.mxu0 0.0
        %1304 = vmatpush1.msra.mxu0 %v986
        %1305 = vmatprep.subr.mxu0 0.0
        %1306 = vmatpush1.msra.mxu0 %v987
        %1307 = vmatprep.subr.mxu0 0.0
        %1308 = vmatpush1.msra.mxu0 %v988
        %1309 = vmatprep.subr.mxu0 0.0
        %1310 = vmatpush1.msra.mxu0 %v989
        %1311 = vmatprep.subr.mxu0 0.0
        %1312 = vmatpush1.msra.mxu0 %v990
        %1313 = vmatprep.subr.mxu0 0.0
        %1314 = vmatpush1.msra.mxu0 %v991
        %1315 = vmatprep.subr.mxu0 0.0
        %1316 = vmatpush1.msra.mxu0 %v992
        %1317 = vmatprep.subr.mxu0 0.0
        %1318 = vmatpush1.msra.mxu0 %v993
        %1319 = vmatprep.subr.mxu0 0.0
        %1320 = vmatpush1.msra.mxu0 %v994
        %1321 = vmatprep.subr.mxu0 0.0
        %1322 = vmatpush1.msra.mxu0 %v995
        %1323 = vmatprep.subr.mxu0 0.0
        %1324 = vmatpush1.msra.mxu0 %v996
        %1325 = vmatprep.subr.mxu0 0.0
        %1326 = vmatpush1.msra.mxu0 %v997
        %1327 = vmatprep.subr.mxu0 0.0
        %1328 = vmatpush1.msra.mxu0 %v998
        %1329 = vmatprep.subr.mxu0 0.0
        %1330 = vmatpush1.msra.mxu0 %v999
        %1331 = vmatprep.subr.mxu0 0.0
        %1332 = vmatpush1.msra.mxu0 %v1000
        %1333 = vmatprep.subr.mxu0 0.0
        %1334 = vmatpush1.msra.mxu0 %v1001
        %1335 = vmatprep.subr.mxu0 0.0
        %1336 = vmatpush1.msra.mxu0 0.0
        %1337 = vmatprep.subr.mxu0 0.0
        %1338 = vmatpush1.msra.mxu0 0.0
        %1339 = vmatprep.subr.mxu0 0.0
        %1340 = vmatpush1.msra.mxu0 0.0
        %1341 = vmatprep.subr.mxu0 0.0
        %1342 = vmatpush1.msra.mxu0 0.0
        %1343 = vmatprep.subr.mxu0 0.0
        %1344 = vmatpush1.msra.mxu0 0.0
        %1345 = vmatprep.subr.mxu0 0.0
        %1346 = vmatpush1.msra.mxu0 0.0
        %1347 = vmatprep.subr.mxu0 0.0
        %1348 = vmatpush1.msra.mxu0 0.0
        %1349 = vmatprep.subr.mxu0 0.0
        %1350 = vmatpush1.msra.mxu0 0.0
        %1351 = vmatprep.subr.mxu0 0.0
        %1352 = vmatpush1.msra.mxu0 0.0
        %1353 = vmatprep.subr.mxu0 0.0
        %1354 = vmatpush1.msra.mxu0 0.0
        %1355 = vmatprep.subr.mxu0 0.0
        %1356 = vmatpush1.msra.mxu0 0.0
        %1357 = vmatprep.subr.mxu0 0.0
        %1358 = vmatpush1.msra.mxu0 0.0
        %1359 = vmatprep.subr.mxu0 0.0
        %1360 = vmatpush1.msra.mxu0 0.0
        %1361 = vmatprep.subr.mxu0 0.0
        %1362 = vmatpush1.msra.mxu0 0.0
        %1363 = vmatprep.subr.mxu0 0.0
        %1364 = vmatpush1.msra.mxu0 0.0
        %1365 = vmatprep.subr.mxu0 0.0
        %1366 = vmatpush1.msra.mxu0 0.0
        %1367 = vmatprep.mubr.f32.mxu0 0.0
        %1368 = vmatmul.mubr.f32.gmra.mrb[0].mxu0 %v1278
        %v1369 = vpop.f32.mrb[0].mxu0
        %v1370 = vadd.f32 0.0, %v1369
        %v1371 = vpop.f32.mrb[0].mxu0
        %1372 = vmatprep.mubr.f32.mxu0 0.0
        %1373 = vmatmul.mubr.f32.gmra.mrb[0].mxu0 %v1279
        %v1374 = vpop.f32.mrb[0].mxu0
        %v1375 = vadd.f32 0.0, %v1374
        %v1376 = vpop.f32.mrb[0].mxu0
        %1377 = vmatprep.mubr.f32.mxu0 0.0
        %1378 = vmatmul.mubr.f32.gmra.mrb[0].mxu0 %v1280
        %v1379 = vpop.f32.mrb[0].mxu0
        %v1380 = vadd.f32 0.0, %v1379
        %v1381 = vpop.f32.mrb[0].mxu0
        %1382 = vmatprep.mubr.f32.mxu0 0.0
        %1383 = vmatmul.mubr.f32.gmra.mrb[0].mxu0 %v1281
        %v1384 = vpop.f32.mrb[0].mxu0
        %v1385 = vadd.f32 0.0, %v1384
        %v1386 = vpop.f32.mrb[0].mxu0
        %1387 = vmatprep.mubr.f32.mxu0 0.0
        %1388 = vmatmul.mubr.f32.gmra.mrb[0].mxu0 %v1282
        %v1389 = vpop.f32.mrb[0].mxu0
        %v1390 = vadd.f32 0.0, %v1389
        %v1391 = vpop.f32.mrb[0].mxu0
        %1392 = vdwg.mxu0
        %v1393 = vmul.f32 %v1370, %v1298
        %v1394 = vmul.f32 %v1375, %v1299
        %v1395 = vmul.f32 %v1380, %v1300
        %v1396 = vmul.f32 %v1385, %v1301
        %v1397 = vmul.f32 %v1390, %v1302
        %v1398 = vsel %vm520, %v1393, 0.0
        %v1399 = vsel %vm520, %v1394, 0.0
        %v1400 = vadd.f32 %v1398, %v1399
        %v1401 = vsel %vm520, %v1395, 0.0
        %v1402 = vadd.f32 %v1400, %v1401
        %v1403 = vsel %vm520, %v1396, 0.0
        %v1404 = vadd.f32 %v1402, %v1403
        %v1405 = vsel %vm520, %v1397, 0.0
        %v1406 = vadd.f32 %v1404, %v1405
        %1407 = vadd.xlane.f32.xlu0 %v1406
        %v1408 = vpop.xlane.xlu0 %1407
        %v1409 = vrot.slane %v1408, 4
        %v1410 = vadd.f32 %v1408, %v1409
        %v1411 = vrot.slane %v1410, 2
        %v1412 = vadd.f32 %v1410, %v1411
        %v1413 = vrot.slane %v1412, 1
        %v1414 = vadd.f32 %v1412, %v1413
        %s1415 = vtos %v1414
        %s1416 = sadd.f32 %s1229, %s1415
        %1417 = vmatprep.subr.mxu0 0.0
        %1418 = vmatpush1.msra.mxu0 %v986
        %1419 = vmatprep.subr.mxu0 0.0
        %1420 = vmatpush1.msra.mxu0 %v987
        %1421 = vmatprep.subr.mxu0 0.0
        %1422 = vmatpush1.msra.mxu0 %v988
        %1423 = vmatprep.subr.mxu0 0.0
        %1424 = vmatpush1.msra.mxu0 %v989
        %1425 = vmatprep.subr.mxu0 0.0
        %1426 = vmatpush1.msra.mxu0 %v990
        %1427 = vmatprep.subr.mxu0 0.0
        %1428 = vmatpush1.msra.mxu0 %v991
        %1429 = vmatprep.subr.mxu0 0.0
        %1430 = vmatpush1.msra.mxu0 %v992
        %1431 = vmatprep.subr.mxu0 0.0
        %1432 = vmatpush1.msra.mxu0 %v993
        %1433 = vmatprep.subr.mxu0 0.0
        %1434 = vmatpush1.msra.mxu0 %v994
        %1435 = vmatprep.subr.mxu0 0.0
        %1436 = vmatpush1.msra.mxu0 %v995
        %1437 = vmatprep.subr.mxu0 0.0
        %1438 = vmatpush1.msra.mxu0 %v996
        %1439 = vmatprep.subr.mxu0 0.0
        %1440 = vmatpush1.msra.mxu0 %v997
        %1441 = vmatprep.subr.mxu0 0.0
        %1442 = vmatpush1.msra.mxu0 %v998
        %1443 = vmatprep.subr.mxu0 0.0
        %1444 = vmatpush1.msra.mxu0 %v999
        %1445 = vmatprep.subr.mxu0 0.0
        %1446 = vmatpush1.msra.mxu0 %v1000
        %1447 = vmatprep.subr.mxu0 0.0
        %1448 = vmatpush1.msra.mxu0 %v1001
        %1449 = vmatprep.subr.mxu0 0.0
        %1450 = vmatpush1.msra.mxu0 0.0
        %1451 = vmatprep.subr.mxu0 0.0
        %1452 = vmatpush1.msra.mxu0 0.0
        %1453 = vmatprep.subr.mxu0 0.0
        %1454 = vmatpush1.msra.mxu0 0.0
        %1455 = vmatprep.subr.mxu0 0.0
        %1456 = vmatpush1.msra.mxu0 0.0
        %1457 = vmatprep.subr.mxu0 0.0
        %1458 = vmatpush1.msra.mxu0 0.0
        %1459 = vmatprep.subr.mxu0 0.0
        %1460 = vmatpush1.msra.mxu0 0.0
        %1461 = vmatprep.subr.mxu0 0.0
        %1462 = vmatpush1.msra.mxu0 0.0
        %1463 = vmatprep.subr.mxu0 0.0
        %1464 = vmatpush1.msra.mxu0 0.0
        %1465 = vmatprep.subr.mxu0 0.0
        %1466 = vmatpush1.msra.mxu0 0.0
        %1467 = vmatprep.subr.mxu0 0.0
        %1468 = vmatpush1.msra.mxu0 0.0
        %1469 = vmatprep.subr.mxu0 0.0
        %1470 = vmatpush1.msra.mxu0 0.0
        %1471 = vmatprep.subr.mxu0 0.0
        %1472 = vmatpush1.msra.mxu0 0.0
        %1473 = vmatprep.subr.mxu0 0.0
        %1474 = vmatpush1.msra.mxu0 0.0
        %1475 = vmatprep.subr.mxu0 0.0
        %1476 = vmatpush1.msra.mxu0 0.0
        %1477 = vmatprep.subr.mxu0 0.0
        %1478 = vmatpush1.msra.mxu0 0.0
        %1479 = vmatprep.subr.mxu0 0.0
        %1480 = vmatpush1.msra.mxu0 0.0
        %1481 = vmatprep.mubr.f32.mxu0 0.0
        %1482 = vmatmul.mubr.f32.gmra.mrb[0].mxu0 %v274
        %v1483 = vpop.f32.mrb[0].mxu0
        %v1484 = vadd.f32 0.0, %v1483
        %v1485 = vpop.f32.mrb[0].mxu0
        %1486 = vmatprep.mubr.f32.mxu0 0.0
        %1487 = vmatmul.mubr.f32.gmra.mrb[0].mxu0 %v275
        %v1488 = vpop.f32.mrb[0].mxu0
        %v1489 = vadd.f32 0.0, %v1488
        %v1490 = vpop.f32.mrb[0].mxu0
        %1491 = vmatprep.mubr.f32.mxu0 0.0
        %1492 = vmatmul.mubr.f32.gmra.mrb[0].mxu0 %v276
        %v1493 = vpop.f32.mrb[0].mxu0
        %v1494 = vadd.f32 0.0, %v1493
        %v1495 = vpop.f32.mrb[0].mxu0
        %1496 = vmatprep.mubr.f32.mxu0 0.0
        %1497 = vmatmul.mubr.f32.gmra.mrb[0].mxu0 %v277
        %v1498 = vpop.f32.mrb[0].mxu0
        %v1499 = vadd.f32 0.0, %v1498
        %v1500 = vpop.f32.mrb[0].mxu0
        %1501 = vmatprep.mubr.f32.mxu0 0.0
        %1502 = vmatmul.mubr.f32.gmra.mrb[0].mxu0 %v278
        %v1503 = vpop.f32.mrb[0].mxu0
        %v1504 = vadd.f32 0.0, %v1503
        %v1505 = vpop.f32.mrb[0].mxu0
        %1506 = vdwg.mxu0
        %v1507 = vmul.f32 %v1484, %v986
        %v1508 = vmul.f32 %v1489, %v987
        %v1509 = vmul.f32 %v1494, %v988
        %v1510 = vmul.f32 %v1499, %v989
        %v1511 = vmul.f32 %v1504, %v990
        %v1512 = vsel %vm520, %v1507, 0.0
        %v1513 = vsel %vm520, %v1508, 0.0
        %v1514 = vadd.f32 %v1512, %v1513
        %v1515 = vsel %vm520, %v1509, 0.0
        %v1516 = vadd.f32 %v1514, %v1515
        %v1517 = vsel %vm520, %v1510, 0.0
        %v1518 = vadd.f32 %v1516, %v1517
        %v1519 = vsel %vm520, %v1511, 0.0
        %v1520 = vadd.f32 %v1518, %v1519
        %1521 = vadd.xlane.f32.xlu0 %v1520
        %v1522 = vpop.xlane.xlu0 %1521
        %v1523 = vrot.slane %v1522, 4
        %v1524 = vadd.f32 %v1522, %v1523
        %v1525 = vrot.slane %v1524, 2
        %v1526 = vadd.f32 %v1524, %v1525
        %v1527 = vrot.slane %v1526, 1
        %v1528 = vadd.f32 %v1526, %v1527
        %s1529 = vtos %v1528
        %v1530 = vand.u32 %v409, 3
        %v1531 = vand.u32 %v410, 3
        %v1532 = vand.u32 %v411, 3
        %v1533 = vand.u32 %v412, 3
        %v1534 = vand.u32 %v413, 3
        %v1535 = vand.u32 %v414, 3
        %v1536 = vand.u32 %v415, 3
        %v1537 = vand.u32 %v416, 3
        %v1538 = vand.u32 %v417, 3
        %v1539 = vand.u32 %v418, 3
        %v1540 = vand.u32 %v419, 3
        %v1541 = vand.u32 %v420, 3
        %v1542 = vand.u32 %v421, 3
        %v1543 = vand.u32 %v422, 3
        %v1544 = vand.u32 %v423, 3
        %v1545 = vand.u32 %v424, 3
        %vm1546 = vcmp.eq.s32.totalorder %v1530, 0
        %vm1547 = vcmp.eq.s32.totalorder %v1531, 0
        %vm1548 = vcmp.eq.s32.totalorder %v1532, 0
        %vm1549 = vcmp.eq.s32.totalorder %v1533, 0
        %vm1550 = vcmp.eq.s32.totalorder %v1534, 0
        %vm1551 = vcmp.eq.s32.totalorder %v1535, 0
        %vm1552 = vcmp.eq.s32.totalorder %v1536, 0
        %vm1553 = vcmp.eq.s32.totalorder %v1537, 0
        %vm1554 = vcmp.eq.s32.totalorder %v1538, 0
        %vm1555 = vcmp.eq.s32.totalorder %v1539, 0
        %vm1556 = vcmp.eq.s32.totalorder %v1540, 0
        %vm1557 = vcmp.eq.s32.totalorder %v1541, 0
        %vm1558 = vcmp.eq.s32.totalorder %v1542, 0
        %vm1559 = vcmp.eq.s32.totalorder %v1543, 0
        %vm1560 = vcmp.eq.s32.totalorder %v1544, 0
        %vm1561 = vcmp.eq.s32.totalorder %v1545, 0
        %v1562 = vsel %vm1546, 1, 0
        %v1563 = vsel %vm1547, 1, 0
        %v1564 = vsel %vm1548, 1, 0
        %v1565 = vsel %vm1549, 1, 0
        %v1566 = vsel %vm1550, 1, 0
        %v1567 = vsel %vm1551, 1, 0
        %v1568 = vsel %vm1552, 1, 0
        %v1569 = vsel %vm1553, 1, 0
        %v1570 = vsel %vm1554, 1, 0
        %v1571 = vsel %vm1555, 1, 0
        %v1572 = vsel %vm1556, 1, 0
        %v1573 = vsel %vm1557, 1, 0
        %v1574 = vsel %vm1558, 1, 0
        %v1575 = vsel %vm1559, 1, 0
        %v1576 = vsel %vm1560, 1, 0
        %v1577 = vsel %vm1561, 1, 0
        %v1578 = vcvt.s32.f32 %v1562
        %v1579 = vcvt.s32.f32 %v1563
        %v1580 = vcvt.s32.f32 %v1564
        %v1581 = vcvt.s32.f32 %v1565
        %v1582 = vcvt.s32.f32 %v1566
        %v1583 = vcvt.s32.f32 %v1567
        %v1584 = vcvt.s32.f32 %v1568
        %v1585 = vcvt.s32.f32 %v1569
        %v1586 = vcvt.s32.f32 %v1570
        %v1587 = vcvt.s32.f32 %v1571
        %v1588 = vcvt.s32.f32 %v1572
        %v1589 = vcvt.s32.f32 %v1573
        %v1590 = vcvt.s32.f32 %v1574
        %v1591 = vcvt.s32.f32 %v1575
        %v1592 = vcvt.s32.f32 %v1576
        %v1593 = vcvt.s32.f32 %v1577
        %1594 = vrot.lane.b32.xlu0 %v403, 124
        %v1595 = vpop.permute.xlu0 %1594
        %1596 = vrot.lane.b32.xlu0 %v404, 124
        %v1597 = vpop.permute.xlu0 %1596
        %1598 = vrot.lane.b32.xlu0 %v405, 124
        %v1599 = vpop.permute.xlu0 %1598
        %1600 = vrot.lane.b32.xlu0 %v406, 124
        %v1601 = vpop.permute.xlu0 %1600
        %1602 = vrot.lane.b32.xlu0 %v407, 124
        %v1603 = vpop.permute.xlu0 %1602
        %1609 = vrot.lane.b32.xlu0 %v274, 124
        %v1610 = vpop.permute.xlu0 %1609
        %1611 = vrot.lane.b32.xlu0 %v275, 124
        %v1612 = vpop.permute.xlu0 %1611
        %1613 = vrot.lane.b32.xlu0 %v276, 124
        %v1614 = vpop.permute.xlu0 %1613
        %1615 = vrot.lane.b32.xlu0 %v277, 124
        %v1616 = vpop.permute.xlu0 %1615
        %1617 = vrot.lane.b32.xlu0 %v278, 124
        %v1618 = vpop.permute.xlu0 %1617
        %v1624 = vsub.f32 %v1595, %v403
        %v1625 = vsub.f32 %v1597, %v404
        %v1626 = vsub.f32 %v1599, %v405
        %v1627 = vsub.f32 %v1601, %v406
        %v1628 = vsub.f32 %v1603, %v407
        %v1629 = vand.u32 2147483647, %v1624
        %v1630 = vand.u32 2147483647, %v1625
        %v1631 = vand.u32 2147483647, %v1626
        %v1632 = vand.u32 2147483647, %v1627
        %v1633 = vand.u32 2147483647, %v1628
        %v1634 = vmul.f32 %v1610, %v274
        %v1635 = vmul.f32 %v1612, %v275
        %v1636 = vmul.f32 %v1614, %v276
        %v1637 = vmul.f32 %v1616, %v277
        %v1638 = vmul.f32 %v1618, %v278
        %v1639 = vmul.f32 %v1629, %v1634
        %v1640 = vmul.f32 %v1630, %v1635
        %v1641 = vmul.f32 %v1631, %v1636
        %v1642 = vmul.f32 %v1632, %v1637
        %v1643 = vmul.f32 %v1633, %v1638
        %vm1644 = vcmp.lt.s32.totalorder %v409, 124
        %vm1645 = vcmp.lt.s32.totalorder %v410, 124
        %vm1646 = vcmp.lt.s32.totalorder %v411, 124
        %vm1647 = vcmp.lt.s32.totalorder %v412, 124
        %vm1648 = vcmp.lt.s32.totalorder %v413, 124
        %vm1649 = vcmp.lt.s32.totalorder %v414, 124
        %vm1650 = vcmp.lt.s32.totalorder %v415, 124
        %vm1651 = vcmp.lt.s32.totalorder %v416, 124
        %vm1652 = vcmp.lt.s32.totalorder %v417, 124
        %vm1653 = vcmp.lt.s32.totalorder %v418, 124
        %vm1654 = vcmp.lt.s32.totalorder %v419, 124
        %vm1655 = vcmp.lt.s32.totalorder %v420, 124
        %vm1656 = vcmp.lt.s32.totalorder %v421, 124
        %vm1657 = vcmp.lt.s32.totalorder %v422, 124
        %vm1658 = vcmp.lt.s32.totalorder %v423, 124
        %vm1659 = vcmp.lt.s32.totalorder %v424, 124
        %vm1660 = vmand %vm1546, %vm1644
        %vm1661 = vmand %vm1547, %vm1645
        %vm1662 = vmand %vm1548, %vm1646
        %vm1663 = vmand %vm1549, %vm1647
        %vm1664 = vmand %vm1550, %vm1648
        %vm1665 = vmand %vm1551, %vm1649
        %vm1666 = vmand %vm1552, %vm1650
        %vm1667 = vmand %vm1553, %vm1651
        %vm1668 = vmand %vm1554, %vm1652
        %vm1669 = vmand %vm1555, %vm1653
        %vm1670 = vmand %vm1556, %vm1654
        %vm1671 = vmand %vm1557, %vm1655
        %vm1672 = vmand %vm1558, %vm1656
        %vm1673 = vmand %vm1559, %vm1657
        %vm1674 = vmand %vm1560, %vm1658
        %vm1675 = vmand %vm1561, %vm1659
        %v1676 = vsel %vm1660, 1, 0
        %v1677 = vsel %vm1661, 1, 0
        %v1678 = vsel %vm1662, 1, 0
        %v1679 = vsel %vm1663, 1, 0
        %v1680 = vsel %vm1664, 1, 0
        %v1681 = vsel %vm1665, 1, 0
        %v1682 = vsel %vm1666, 1, 0
        %v1683 = vsel %vm1667, 1, 0
        %v1684 = vsel %vm1668, 1, 0
        %v1685 = vsel %vm1669, 1, 0
        %v1686 = vsel %vm1670, 1, 0
        %v1687 = vsel %vm1671, 1, 0
        %v1688 = vsel %vm1672, 1, 0
        %v1689 = vsel %vm1673, 1, 0
        %v1690 = vsel %vm1674, 1, 0
        %v1691 = vsel %vm1675, 1, 0
        %v1692 = vcvt.s32.f32 %v1676
        %v1693 = vcvt.s32.f32 %v1677
        %v1694 = vcvt.s32.f32 %v1678
        %v1695 = vcvt.s32.f32 %v1679
        %v1696 = vcvt.s32.f32 %v1680
        %v1697 = vcvt.s32.f32 %v1681
        %v1698 = vcvt.s32.f32 %v1682
        %v1699 = vcvt.s32.f32 %v1683
        %v1700 = vcvt.s32.f32 %v1684
        %v1701 = vcvt.s32.f32 %v1685
        %v1702 = vcvt.s32.f32 %v1686
        %v1703 = vcvt.s32.f32 %v1687
        %v1704 = vcvt.s32.f32 %v1688
        %v1705 = vcvt.s32.f32 %v1689
        %v1706 = vcvt.s32.f32 %v1690
        %v1707 = vcvt.s32.f32 %v1691
        %1708 = vmatprep.subr.mxu0 0.0
        %1709 = vmatpush1.msra.mxu0 %v1692
        %1710 = vmatprep.subr.mxu0 0.0
        %1711 = vmatpush1.msra.mxu0 %v1693
        %1712 = vmatprep.subr.mxu0 0.0
        %1713 = vmatpush1.msra.mxu0 %v1694
        %1714 = vmatprep.subr.mxu0 0.0
        %1715 = vmatpush1.msra.mxu0 %v1695
        %1716 = vmatprep.subr.mxu0 0.0
        %1717 = vmatpush1.msra.mxu0 %v1696
        %1718 = vmatprep.subr.mxu0 0.0
        %1719 = vmatpush1.msra.mxu0 %v1697
        %1720 = vmatprep.subr.mxu0 0.0
        %1721 = vmatpush1.msra.mxu0 %v1698
        %1722 = vmatprep.subr.mxu0 0.0
        %1723 = vmatpush1.msra.mxu0 %v1699
        %1724 = vmatprep.subr.mxu0 0.0
        %1725 = vmatpush1.msra.mxu0 %v1700
        %1726 = vmatprep.subr.mxu0 0.0
        %1727 = vmatpush1.msra.mxu0 %v1701
        %1728 = vmatprep.subr.mxu0 0.0
        %1729 = vmatpush1.msra.mxu0 %v1702
        %1730 = vmatprep.subr.mxu0 0.0
        %1731 = vmatpush1.msra.mxu0 %v1703
        %1732 = vmatprep.subr.mxu0 0.0
        %1733 = vmatpush1.msra.mxu0 %v1704
        %1734 = vmatprep.subr.mxu0 0.0
        %1735 = vmatpush1.msra.mxu0 %v1705
        %1736 = vmatprep.subr.mxu0 0.0
        %1737 = vmatpush1.msra.mxu0 %v1706
        %1738 = vmatprep.subr.mxu0 0.0
        %1739 = vmatpush1.msra.mxu0 %v1707
        %1740 = vmatprep.subr.mxu0 0.0
        %1741 = vmatpush1.msra.mxu0 0.0
        %1742 = vmatprep.subr.mxu0 0.0
        %1743 = vmatpush1.msra.mxu0 0.0
        %1744 = vmatprep.subr.mxu0 0.0
        %1745 = vmatpush1.msra.mxu0 0.0
        %1746 = vmatprep.subr.mxu0 0.0
        %1747 = vmatpush1.msra.mxu0 0.0
        %1748 = vmatprep.subr.mxu0 0.0
        %1749 = vmatpush1.msra.mxu0 0.0
        %1750 = vmatprep.subr.mxu0 0.0
        %1751 = vmatpush1.msra.mxu0 0.0
        %1752 = vmatprep.subr.mxu0 0.0
        %1753 = vmatpush1.msra.mxu0 0.0
        %1754 = vmatprep.subr.mxu0 0.0
        %1755 = vmatpush1.msra.mxu0 0.0
        %1756 = vmatprep.subr.mxu0 0.0
        %1757 = vmatpush1.msra.mxu0 0.0
        %1758 = vmatprep.subr.mxu0 0.0
        %1759 = vmatpush1.msra.mxu0 0.0
        %1760 = vmatprep.subr.mxu0 0.0
        %1761 = vmatpush1.msra.mxu0 0.0
        %1762 = vmatprep.subr.mxu0 0.0
        %1763 = vmatpush1.msra.mxu0 0.0
        %1764 = vmatprep.subr.mxu0 0.0
        %1765 = vmatpush1.msra.mxu0 0.0
        %1766 = vmatprep.subr.mxu0 0.0
        %1767 = vmatpush1.msra.mxu0 0.0
        %1768 = vmatprep.subr.mxu0 0.0
        %1769 = vmatpush1.msra.mxu0 0.0
        %1770 = vmatprep.subr.mxu0 0.0
        %1771 = vmatpush1.msra.mxu0 0.0
        %1772 = vmatprep.mubr.f32.mxu0 0.0
        %1773 = vmatmul.mubr.f32.gmra.mrb[0].mxu0 %v1639
        %v1774 = vpop.f32.mrb[0].mxu0
        %v1775 = vadd.f32 0.0, %v1774
        %v1776 = vpop.f32.mrb[0].mxu0
        %1777 = vmatprep.mubr.f32.mxu0 0.0
        %1778 = vmatmul.mubr.f32.gmra.mrb[0].mxu0 %v1640
        %v1779 = vpop.f32.mrb[0].mxu0
        %v1780 = vadd.f32 0.0, %v1779
        %v1781 = vpop.f32.mrb[0].mxu0
        %1782 = vmatprep.mubr.f32.mxu0 0.0
        %1783 = vmatmul.mubr.f32.gmra.mrb[0].mxu0 %v1641
        %v1784 = vpop.f32.mrb[0].mxu0
        %v1785 = vadd.f32 0.0, %v1784
        %v1786 = vpop.f32.mrb[0].mxu0
        %1787 = vmatprep.mubr.f32.mxu0 0.0
        %1788 = vmatmul.mubr.f32.gmra.mrb[0].mxu0 %v1642
        %v1789 = vpop.f32.mrb[0].mxu0
        %v1790 = vadd.f32 0.0, %v1789
        %v1791 = vpop.f32.mrb[0].mxu0
        %1792 = vmatprep.mubr.f32.mxu0 0.0
        %1793 = vmatmul.mubr.f32.gmra.mrb[0].mxu0 %v1643
        %v1794 = vpop.f32.mrb[0].mxu0
        %v1795 = vadd.f32 0.0, %v1794
        %v1796 = vpop.f32.mrb[0].mxu0
        %1797 = vdwg.mxu0
        %v1798 = vmul.f32 %v1775, %v1578
        %v1799 = vmul.f32 %v1780, %v1579
        %v1800 = vmul.f32 %v1785, %v1580
        %v1801 = vmul.f32 %v1790, %v1581
        %v1802 = vmul.f32 %v1795, %v1582
        %v1803 = vsel %vm520, %v1798, 0.0
        %v1804 = vsel %vm520, %v1799, 0.0
        %v1805 = vadd.f32 %v1803, %v1804
        %v1806 = vsel %vm520, %v1800, 0.0
        %v1807 = vadd.f32 %v1805, %v1806
        %v1808 = vsel %vm520, %v1801, 0.0
        %v1809 = vadd.f32 %v1807, %v1808
        %v1810 = vsel %vm520, %v1802, 0.0
        %v1811 = vadd.f32 %v1809, %v1810
        %1812 = vadd.xlane.f32.xlu0 %v1811
        %v1813 = vpop.xlane.xlu0 %1812
        %v1814 = vrot.slane %v1813, 4
        %v1815 = vadd.f32 %v1813, %v1814
        %v1816 = vrot.slane %v1815, 2
        %v1817 = vadd.f32 %v1815, %v1816
        %v1818 = vrot.slane %v1817, 1
        %v1819 = vadd.f32 %v1817, %v1818
        %s1820 = vtos %v1819
        %s1821 = sadd.f32 %s1820, 0.0
        %vm1822 = vcmask 1043456
        %v1823 = vrot.slane %v403, 4
        %v1824 = vrot.slane %v404, 4
        %v1825 = vsel %vm1822, %v1823, %v1824
        %v1826 = vrot.slane %v405, 4
        %v1827 = vsel %vm1822, %v1824, %v1826
        %v1828 = vrot.slane %v406, 4
        %v1829 = vsel %vm1822, %v1826, %v1828
        %v1830 = vrot.slane %v407, 4
        %v1831 = vsel %vm1822, %v1828, %v1830
        %v1838 = vsel %vm1822, %v1830, %v1823
        %v1839 = vrot.slane %v274, 4
        %v1840 = vrot.slane %v275, 4
        %v1841 = vsel %vm1822, %v1839, %v1840
        %v1842 = vrot.slane %v276, 4
        %v1843 = vsel %vm1822, %v1840, %v1842
        %v1844 = vrot.slane %v277, 4
        %v1845 = vsel %vm1822, %v1842, %v1844
        %v1846 = vrot.slane %v278, 4
        %v1847 = vsel %vm1822, %v1844, %v1846
        %v1854 = vsel %vm1822, %v1846, %v1839
        %v1855 = vsub.f32 %v1825, %v403
        %v1856 = vsub.f32 %v1827, %v404
        %v1857 = vsub.f32 %v1829, %v405
        %v1858 = vsub.f32 %v1831, %v406
        %v1859 = vsub.f32 %v1838, %v407
        %v1860 = vand.u32 2147483647, %v1855
        %v1861 = vand.u32 2147483647, %v1856
        %v1862 = vand.u32 2147483647, %v1857
        %v1863 = vand.u32 2147483647, %v1858
        %v1864 = vand.u32 2147483647, %v1859
        %v1865 = vmul.f32 %v1841, %v274
        %v1866 = vmul.f32 %v1843, %v275
        %v1867 = vmul.f32 %v1845, %v276
        %v1868 = vmul.f32 %v1847, %v277
        %v1869 = vmul.f32 %v1854, %v278
        %v1870 = vmul.f32 %v1860, %v1865
        %v1871 = vmul.f32 %v1861, %v1866
        %v1872 = vmul.f32 %v1862, %v1867
        %v1873 = vmul.f32 %v1863, %v1868
        %v1874 = vmul.f32 %v1864, %v1869
        %vm1875 = vcmp.lt.s32.totalorder %v409, 36
        %vm1876 = vcmp.lt.s32.totalorder %v410, 36
        %vm1877 = vcmp.lt.s32.totalorder %v411, 36
        %vm1878 = vcmp.lt.s32.totalorder %v412, 36
        %vm1879 = vcmp.lt.s32.totalorder %v413, 36
        %v1880 = vsel %vm1875, 1, 0
        %v1881 = vsel %vm1876, 1, 0
        %v1882 = vsel %vm1877, 1, 0
        %v1883 = vsel %vm1878, 1, 0
        %v1884 = vsel %vm1879, 1, 0
        %v1885 = vcvt.s32.f32 %v1880
        %v1886 = vcvt.s32.f32 %v1881
        %v1887 = vcvt.s32.f32 %v1882
        %v1888 = vcvt.s32.f32 %v1883
        %v1889 = vcvt.s32.f32 %v1884
        %v1890 = vmul.f32 %v1578, %v1885
        %v1891 = vmul.f32 %v1579, %v1886
        %v1892 = vmul.f32 %v1580, %v1887
        %v1893 = vmul.f32 %v1581, %v1888
        %v1894 = vmul.f32 %v1582, %v1889
        %1895 = vmatprep.subr.mxu0 0.0
        %1896 = vmatpush1.msra.mxu0 %v1578
        %1897 = vmatprep.subr.mxu0 0.0
        %1898 = vmatpush1.msra.mxu0 %v1579
        %1899 = vmatprep.subr.mxu0 0.0
        %1900 = vmatpush1.msra.mxu0 %v1580
        %1901 = vmatprep.subr.mxu0 0.0
        %1902 = vmatpush1.msra.mxu0 %v1581
        %1903 = vmatprep.subr.mxu0 0.0
        %1904 = vmatpush1.msra.mxu0 %v1582
        %1905 = vmatprep.subr.mxu0 0.0
        %1906 = vmatpush1.msra.mxu0 %v1583
        %1907 = vmatprep.subr.mxu0 0.0
        %1908 = vmatpush1.msra.mxu0 %v1584
        %1909 = vmatprep.subr.mxu0 0.0
        %1910 = vmatpush1.msra.mxu0 %v1585
        %1911 = vmatprep.subr.mxu0 0.0
        %1912 = vmatpush1.msra.mxu0 %v1586
        %1913 = vmatprep.subr.mxu0 0.0
        %1914 = vmatpush1.msra.mxu0 %v1587
        %1915 = vmatprep.subr.mxu0 0.0
        %1916 = vmatpush1.msra.mxu0 %v1588
        %1917 = vmatprep.subr.mxu0 0.0
        %1918 = vmatpush1.msra.mxu0 %v1589
        %1919 = vmatprep.subr.mxu0 0.0
        %1920 = vmatpush1.msra.mxu0 %v1590
        %1921 = vmatprep.subr.mxu0 0.0
        %1922 = vmatpush1.msra.mxu0 %v1591
        %1923 = vmatprep.subr.mxu0 0.0
        %1924 = vmatpush1.msra.mxu0 %v1592
        %1925 = vmatprep.subr.mxu0 0.0
        %1926 = vmatpush1.msra.mxu0 %v1593
        %1927 = vmatprep.subr.mxu0 0.0
        %1928 = vmatpush1.msra.mxu0 0.0
        %1929 = vmatprep.subr.mxu0 0.0
        %1930 = vmatpush1.msra.mxu0 0.0
        %1931 = vmatprep.subr.mxu0 0.0
        %1932 = vmatpush1.msra.mxu0 0.0
        %1933 = vmatprep.subr.mxu0 0.0
        %1934 = vmatpush1.msra.mxu0 0.0
        %1935 = vmatprep.subr.mxu0 0.0
        %1936 = vmatpush1.msra.mxu0 0.0
        %1937 = vmatprep.subr.mxu0 0.0
        %1938 = vmatpush1.msra.mxu0 0.0
        %1939 = vmatprep.subr.mxu0 0.0
        %1940 = vmatpush1.msra.mxu0 0.0
        %1941 = vmatprep.subr.mxu0 0.0
        %1942 = vmatpush1.msra.mxu0 0.0
        %1943 = vmatprep.subr.mxu0 0.0
        %1944 = vmatpush1.msra.mxu0 0.0
        %1945 = vmatprep.subr.mxu0 0.0
        %1946 = vmatpush1.msra.mxu0 0.0
        %1947 = vmatprep.subr.mxu0 0.0
        %1948 = vmatpush1.msra.mxu0 0.0
        %1949 = vmatprep.subr.mxu0 0.0
        %1950 = vmatpush1.msra.mxu0 0.0
        %1951 = vmatprep.subr.mxu0 0.0
        %1952 = vmatpush1.msra.mxu0 0.0
        %1953 = vmatprep.subr.mxu0 0.0
        %1954 = vmatpush1.msra.mxu0 0.0
        %1955 = vmatprep.subr.mxu0 0.0
        %1956 = vmatpush1.msra.mxu0 0.0
        %1957 = vmatprep.subr.mxu0 0.0
        %1958 = vmatpush1.msra.mxu0 0.0
        %1959 = vmatprep.mubr.f32.mxu0 0.0
        %1960 = vmatmul.mubr.f32.gmra.mrb[0].mxu0 %v1870
        %v1961 = vpop.f32.mrb[0].mxu0
        %v1962 = vadd.f32 0.0, %v1961
        %v1963 = vpop.f32.mrb[0].mxu0
        %1964 = vmatprep.mubr.f32.mxu0 0.0
        %1965 = vmatmul.mubr.f32.gmra.mrb[0].mxu0 %v1871
        %v1966 = vpop.f32.mrb[0].mxu0
        %v1967 = vadd.f32 0.0, %v1966
        %v1968 = vpop.f32.mrb[0].mxu0
        %1969 = vmatprep.mubr.f32.mxu0 0.0
        %1970 = vmatmul.mubr.f32.gmra.mrb[0].mxu0 %v1872
        %v1971 = vpop.f32.mrb[0].mxu0
        %v1972 = vadd.f32 0.0, %v1971
        %v1973 = vpop.f32.mrb[0].mxu0
        %1974 = vmatprep.mubr.f32.mxu0 0.0
        %1975 = vmatmul.mubr.f32.gmra.mrb[0].mxu0 %v1873
        %v1976 = vpop.f32.mrb[0].mxu0
        %v1977 = vadd.f32 0.0, %v1976
        %v1978 = vpop.f32.mrb[0].mxu0
        %1979 = vmatprep.mubr.f32.mxu0 0.0
        %1980 = vmatmul.mubr.f32.gmra.mrb[0].mxu0 %v1874
        %v1981 = vpop.f32.mrb[0].mxu0
        %v1982 = vadd.f32 0.0, %v1981
        %v1983 = vpop.f32.mrb[0].mxu0
        %1984 = vdwg.mxu0
        %v1985 = vmul.f32 %v1962, %v1890
        %v1986 = vmul.f32 %v1967, %v1891
        %v1987 = vmul.f32 %v1972, %v1892
        %v1988 = vmul.f32 %v1977, %v1893
        %v1989 = vmul.f32 %v1982, %v1894
        %v1990 = vsel %vm520, %v1985, 0.0
        %v1991 = vsel %vm520, %v1986, 0.0
        %v1992 = vadd.f32 %v1990, %v1991
        %v1993 = vsel %vm520, %v1987, 0.0
        %v1994 = vadd.f32 %v1992, %v1993
        %v1995 = vsel %vm520, %v1988, 0.0
        %v1996 = vadd.f32 %v1994, %v1995
        %v1997 = vsel %vm520, %v1989, 0.0
        %v1998 = vadd.f32 %v1996, %v1997
        %1999 = vadd.xlane.f32.xlu0 %v1998
        %v2000 = vpop.xlane.xlu0 %1999
        %v2001 = vrot.slane %v2000, 4
        %v2002 = vadd.f32 %v2000, %v2001
        %v2003 = vrot.slane %v2002, 2
        %v2004 = vadd.f32 %v2002, %v2003
        %v2005 = vrot.slane %v2004, 1
        %v2006 = vadd.f32 %v2004, %v2005
        %s2007 = vtos %v2006
        %s2008 = sadd.f32 %s1821, %s2007
        %2009 = vmatprep.subr.mxu0 0.0
        %2010 = vmatpush1.msra.mxu0 %v1578
        %2011 = vmatprep.subr.mxu0 0.0
        %2012 = vmatpush1.msra.mxu0 %v1579
        %2013 = vmatprep.subr.mxu0 0.0
        %2014 = vmatpush1.msra.mxu0 %v1580
        %2015 = vmatprep.subr.mxu0 0.0
        %2016 = vmatpush1.msra.mxu0 %v1581
        %2017 = vmatprep.subr.mxu0 0.0
        %2018 = vmatpush1.msra.mxu0 %v1582
        %2019 = vmatprep.subr.mxu0 0.0
        %2020 = vmatpush1.msra.mxu0 %v1583
        %2021 = vmatprep.subr.mxu0 0.0
        %2022 = vmatpush1.msra.mxu0 %v1584
        %2023 = vmatprep.subr.mxu0 0.0
        %2024 = vmatpush1.msra.mxu0 %v1585
        %2025 = vmatprep.subr.mxu0 0.0
        %2026 = vmatpush1.msra.mxu0 %v1586
        %2027 = vmatprep.subr.mxu0 0.0
        %2028 = vmatpush1.msra.mxu0 %v1587
        %2029 = vmatprep.subr.mxu0 0.0
        %2030 = vmatpush1.msra.mxu0 %v1588
        %2031 = vmatprep.subr.mxu0 0.0
        %2032 = vmatpush1.msra.mxu0 %v1589
        %2033 = vmatprep.subr.mxu0 0.0
        %2034 = vmatpush1.msra.mxu0 %v1590
        %2035 = vmatprep.subr.mxu0 0.0
        %2036 = vmatpush1.msra.mxu0 %v1591
        %2037 = vmatprep.subr.mxu0 0.0
        %2038 = vmatpush1.msra.mxu0 %v1592
        %2039 = vmatprep.subr.mxu0 0.0
        %2040 = vmatpush1.msra.mxu0 %v1593
        %2041 = vmatprep.subr.mxu0 0.0
        %2042 = vmatpush1.msra.mxu0 0.0
        %2043 = vmatprep.subr.mxu0 0.0
        %2044 = vmatpush1.msra.mxu0 0.0
        %2045 = vmatprep.subr.mxu0 0.0
        %2046 = vmatpush1.msra.mxu0 0.0
        %2047 = vmatprep.subr.mxu0 0.0
        %2048 = vmatpush1.msra.mxu0 0.0
        %2049 = vmatprep.subr.mxu0 0.0
        %2050 = vmatpush1.msra.mxu0 0.0
        %2051 = vmatprep.subr.mxu0 0.0
        %2052 = vmatpush1.msra.mxu0 0.0
        %2053 = vmatprep.subr.mxu0 0.0
        %2054 = vmatpush1.msra.mxu0 0.0
        %2055 = vmatprep.subr.mxu0 0.0
        %2056 = vmatpush1.msra.mxu0 0.0
        %2057 = vmatprep.subr.mxu0 0.0
        %2058 = vmatpush1.msra.mxu0 0.0
        %2059 = vmatprep.subr.mxu0 0.0
        %2060 = vmatpush1.msra.mxu0 0.0
        %2061 = vmatprep.subr.mxu0 0.0
        %2062 = vmatpush1.msra.mxu0 0.0
        %2063 = vmatprep.subr.mxu0 0.0
        %2064 = vmatpush1.msra.mxu0 0.0
        %2065 = vmatprep.subr.mxu0 0.0
        %2066 = vmatpush1.msra.mxu0 0.0
        %2067 = vmatprep.subr.mxu0 0.0
        %2068 = vmatpush1.msra.mxu0 0.0
        %2069 = vmatprep.subr.mxu0 0.0
        %2070 = vmatpush1.msra.mxu0 0.0
        %2071 = vmatprep.subr.mxu0 0.0
        %2072 = vmatpush1.msra.mxu0 0.0
        %2073 = vmatprep.mubr.f32.mxu0 0.0
        %2074 = vmatmul.mubr.f32.gmra.mrb[0].mxu0 %v274
        %v2075 = vpop.f32.mrb[0].mxu0
        %v2076 = vadd.f32 0.0, %v2075
        %v2077 = vpop.f32.mrb[0].mxu0
        %2078 = vmatprep.mubr.f32.mxu0 0.0
        %2079 = vmatmul.mubr.f32.gmra.mrb[0].mxu0 %v275
        %v2080 = vpop.f32.mrb[0].mxu0
        %v2081 = vadd.f32 0.0, %v2080
        %v2082 = vpop.f32.mrb[0].mxu0
        %2083 = vmatprep.mubr.f32.mxu0 0.0
        %2084 = vmatmul.mubr.f32.gmra.mrb[0].mxu0 %v276
        %v2085 = vpop.f32.mrb[0].mxu0
        %v2086 = vadd.f32 0.0, %v2085
        %v2087 = vpop.f32.mrb[0].mxu0
        %2088 = vmatprep.mubr.f32.mxu0 0.0
        %2089 = vmatmul.mubr.f32.gmra.mrb[0].mxu0 %v277
        %v2090 = vpop.f32.mrb[0].mxu0
        %v2091 = vadd.f32 0.0, %v2090
        %v2092 = vpop.f32.mrb[0].mxu0
        %2093 = vmatprep.mubr.f32.mxu0 0.0
        %2094 = vmatmul.mubr.f32.gmra.mrb[0].mxu0 %v278
        %v2095 = vpop.f32.mrb[0].mxu0
        %v2096 = vadd.f32 0.0, %v2095
        %v2097 = vpop.f32.mrb[0].mxu0
        %2098 = vdwg.mxu0
        %v2099 = vmul.f32 %v2076, %v1578
        %v2100 = vmul.f32 %v2081, %v1579
        %v2101 = vmul.f32 %v2086, %v1580
        %v2102 = vmul.f32 %v2091, %v1581
        %v2103 = vmul.f32 %v2096, %v1582
        %v2104 = vsel %vm520, %v2099, 0.0
        %v2105 = vsel %vm520, %v2100, 0.0
        %v2106 = vadd.f32 %v2104, %v2105
        %v2107 = vsel %vm520, %v2101, 0.0
        %v2108 = vadd.f32 %v2106, %v2107
        %v2109 = vsel %vm520, %v2102, 0.0
        %v2110 = vadd.f32 %v2108, %v2109
        %v2111 = vsel %vm520, %v2103, 0.0
        %v2112 = vadd.f32 %v2110, %v2111
        %2113 = vadd.xlane.f32.xlu0 %v2112
        %v2114 = vpop.xlane.xlu0 %2113
        %v2115 = vrot.slane %v2114, 4
        %v2116 = vadd.f32 %v2114, %v2115
        %v2117 = vrot.slane %v2116, 2
        %v2118 = vadd.f32 %v2116, %v2117
        %v2119 = vrot.slane %v2118, 1
        %v2120 = vadd.f32 %v2118, %v2119
        %s2121 = vtos %v2120
        %v2122 = vand.u32 %v409, 7
        %v2123 = vand.u32 %v410, 7
        %v2124 = vand.u32 %v411, 7
        %v2125 = vand.u32 %v412, 7
        %v2126 = vand.u32 %v413, 7
        %v2127 = vand.u32 %v414, 7
        %v2128 = vand.u32 %v415, 7
        %v2129 = vand.u32 %v416, 7
        %v2130 = vand.u32 %v417, 7
        %v2131 = vand.u32 %v418, 7
        %v2132 = vand.u32 %v419, 7
        %v2133 = vand.u32 %v420, 7
        %v2134 = vand.u32 %v421, 7
        %v2135 = vand.u32 %v422, 7
        %v2136 = vand.u32 %v423, 7
        %v2137 = vand.u32 %v424, 7
        %vm2138 = vcmp.eq.s32.totalorder %v2122, 0
        %vm2139 = vcmp.eq.s32.totalorder %v2123, 0
        %vm2140 = vcmp.eq.s32.totalorder %v2124, 0
        %vm2141 = vcmp.eq.s32.totalorder %v2125, 0
        %vm2142 = vcmp.eq.s32.totalorder %v2126, 0
        %vm2143 = vcmp.eq.s32.totalorder %v2127, 0
        %vm2144 = vcmp.eq.s32.totalorder %v2128, 0
        %vm2145 = vcmp.eq.s32.totalorder %v2129, 0
        %vm2146 = vcmp.eq.s32.totalorder %v2130, 0
        %vm2147 = vcmp.eq.s32.totalorder %v2131, 0
        %vm2148 = vcmp.eq.s32.totalorder %v2132, 0
        %vm2149 = vcmp.eq.s32.totalorder %v2133, 0
        %vm2150 = vcmp.eq.s32.totalorder %v2134, 0
        %vm2151 = vcmp.eq.s32.totalorder %v2135, 0
        %vm2152 = vcmp.eq.s32.totalorder %v2136, 0
        %vm2153 = vcmp.eq.s32.totalorder %v2137, 0
        %v2154 = vsel %vm2138, 1, 0
        %v2155 = vsel %vm2139, 1, 0
        %v2156 = vsel %vm2140, 1, 0
        %v2157 = vsel %vm2141, 1, 0
        %v2158 = vsel %vm2142, 1, 0
        %v2159 = vsel %vm2143, 1, 0
        %v2160 = vsel %vm2144, 1, 0
        %v2161 = vsel %vm2145, 1, 0
        %v2162 = vsel %vm2146, 1, 0
        %v2163 = vsel %vm2147, 1, 0
        %v2164 = vsel %vm2148, 1, 0
        %v2165 = vsel %vm2149, 1, 0
        %v2166 = vsel %vm2150, 1, 0
        %v2167 = vsel %vm2151, 1, 0
        %v2168 = vsel %vm2152, 1, 0
        %v2169 = vsel %vm2153, 1, 0
        %v2170 = vcvt.s32.f32 %v2154
        %v2171 = vcvt.s32.f32 %v2155
        %v2172 = vcvt.s32.f32 %v2156
        %v2173 = vcvt.s32.f32 %v2157
        %v2174 = vcvt.s32.f32 %v2158
        %v2175 = vcvt.s32.f32 %v2159
        %v2176 = vcvt.s32.f32 %v2160
        %v2177 = vcvt.s32.f32 %v2161
        %v2178 = vcvt.s32.f32 %v2162
        %v2179 = vcvt.s32.f32 %v2163
        %v2180 = vcvt.s32.f32 %v2164
        %v2181 = vcvt.s32.f32 %v2165
        %v2182 = vcvt.s32.f32 %v2166
        %v2183 = vcvt.s32.f32 %v2167
        %v2184 = vcvt.s32.f32 %v2168
        %v2185 = vcvt.s32.f32 %v2169
        %2186 = vrot.lane.b32.xlu0 %v403, 120
        %v2187 = vpop.permute.xlu0 %2186
        %2188 = vrot.lane.b32.xlu0 %v404, 120
        %v2189 = vpop.permute.xlu0 %2188
        %2190 = vrot.lane.b32.xlu0 %v405, 120
        %v2191 = vpop.permute.xlu0 %2190
        %2192 = vrot.lane.b32.xlu0 %v406, 120
        %v2193 = vpop.permute.xlu0 %2192
        %2194 = vrot.lane.b32.xlu0 %v407, 120
        %v2195 = vpop.permute.xlu0 %2194
        %2201 = vrot.lane.b32.xlu0 %v274, 120
        %v2202 = vpop.permute.xlu0 %2201
        %2203 = vrot.lane.b32.xlu0 %v275, 120
        %v2204 = vpop.permute.xlu0 %2203
        %2205 = vrot.lane.b32.xlu0 %v276, 120
        %v2206 = vpop.permute.xlu0 %2205
        %2207 = vrot.lane.b32.xlu0 %v277, 120
        %v2208 = vpop.permute.xlu0 %2207
        %2209 = vrot.lane.b32.xlu0 %v278, 120
        %v2210 = vpop.permute.xlu0 %2209
        %v2216 = vsub.f32 %v2187, %v403
        %v2217 = vsub.f32 %v2189, %v404
        %v2218 = vsub.f32 %v2191, %v405
        %v2219 = vsub.f32 %v2193, %v406
        %v2220 = vsub.f32 %v2195, %v407
        %v2221 = vand.u32 2147483647, %v2216
        %v2222 = vand.u32 2147483647, %v2217
        %v2223 = vand.u32 2147483647, %v2218
        %v2224 = vand.u32 2147483647, %v2219
        %v2225 = vand.u32 2147483647, %v2220
        %v2226 = vmul.f32 %v2202, %v274
        %v2227 = vmul.f32 %v2204, %v275
        %v2228 = vmul.f32 %v2206, %v276
        %v2229 = vmul.f32 %v2208, %v277
        %v2230 = vmul.f32 %v2210, %v278
        %v2231 = vmul.f32 %v2221, %v2226
        %v2232 = vmul.f32 %v2222, %v2227
        %v2233 = vmul.f32 %v2223, %v2228
        %v2234 = vmul.f32 %v2224, %v2229
        %v2235 = vmul.f32 %v2225, %v2230
        %vm2236 = vcmp.lt.s32.totalorder %v409, 120
        %vm2237 = vcmp.lt.s32.totalorder %v410, 120
        %vm2238 = vcmp.lt.s32.totalorder %v411, 120
        %vm2239 = vcmp.lt.s32.totalorder %v412, 120
        %vm2240 = vcmp.lt.s32.totalorder %v413, 120
        %vm2241 = vcmp.lt.s32.totalorder %v414, 120
        %vm2242 = vcmp.lt.s32.totalorder %v415, 120
        %vm2243 = vcmp.lt.s32.totalorder %v416, 120
        %vm2244 = vcmp.lt.s32.totalorder %v417, 120
        %vm2245 = vcmp.lt.s32.totalorder %v418, 120
        %vm2246 = vcmp.lt.s32.totalorder %v419, 120
        %vm2247 = vcmp.lt.s32.totalorder %v420, 120
        %vm2248 = vcmp.lt.s32.totalorder %v421, 120
        %vm2249 = vcmp.lt.s32.totalorder %v422, 120
        %vm2250 = vcmp.lt.s32.totalorder %v423, 120
        %vm2251 = vcmp.lt.s32.totalorder %v424, 120
        %vm2252 = vmand %vm2138, %vm2236
        %vm2253 = vmand %vm2139, %vm2237
        %vm2254 = vmand %vm2140, %vm2238
        %vm2255 = vmand %vm2141, %vm2239
        %vm2256 = vmand %vm2142, %vm2240
        %vm2257 = vmand %vm2143, %vm2241
        %vm2258 = vmand %vm2144, %vm2242
        %vm2259 = vmand %vm2145, %vm2243
        %vm2260 = vmand %vm2146, %vm2244
        %vm2261 = vmand %vm2147, %vm2245
        %vm2262 = vmand %vm2148, %vm2246
        %vm2263 = vmand %vm2149, %vm2247
        %vm2264 = vmand %vm2150, %vm2248
        %vm2265 = vmand %vm2151, %vm2249
        %vm2266 = vmand %vm2152, %vm2250
        %vm2267 = vmand %vm2153, %vm2251
        %v2268 = vsel %vm2252, 1, 0
        %v2269 = vsel %vm2253, 1, 0
        %v2270 = vsel %vm2254, 1, 0
        %v2271 = vsel %vm2255, 1, 0
        %v2272 = vsel %vm2256, 1, 0
        %v2273 = vsel %vm2257, 1, 0
        %v2274 = vsel %vm2258, 1, 0
        %v2275 = vsel %vm2259, 1, 0
        %v2276 = vsel %vm2260, 1, 0
        %v2277 = vsel %vm2261, 1, 0
        %v2278 = vsel %vm2262, 1, 0
        %v2279 = vsel %vm2263, 1, 0
        %v2280 = vsel %vm2264, 1, 0
        %v2281 = vsel %vm2265, 1, 0
        %v2282 = vsel %vm2266, 1, 0
        %v2283 = vsel %vm2267, 1, 0
        %v2284 = vcvt.s32.f32 %v2268
        %v2285 = vcvt.s32.f32 %v2269
        %v2286 = vcvt.s32.f32 %v2270
        %v2287 = vcvt.s32.f32 %v2271
        %v2288 = vcvt.s32.f32 %v2272
        %v2289 = vcvt.s32.f32 %v2273
        %v2290 = vcvt.s32.f32 %v2274
        %v2291 = vcvt.s32.f32 %v2275
        %v2292 = vcvt.s32.f32 %v2276
        %v2293 = vcvt.s32.f32 %v2277
        %v2294 = vcvt.s32.f32 %v2278
        %v2295 = vcvt.s32.f32 %v2279
        %v2296 = vcvt.s32.f32 %v2280
        %v2297 = vcvt.s32.f32 %v2281
        %v2298 = vcvt.s32.f32 %v2282
        %v2299 = vcvt.s32.f32 %v2283
        %2300 = vmatprep.subr.mxu0 0.0
        %2301 = vmatpush1.msra.mxu0 %v2284
        %2302 = vmatprep.subr.mxu0 0.0
        %2303 = vmatpush1.msra.mxu0 %v2285
        %2304 = vmatprep.subr.mxu0 0.0
        %2305 = vmatpush1.msra.mxu0 %v2286
        %2306 = vmatprep.subr.mxu0 0.0
        %2307 = vmatpush1.msra.mxu0 %v2287
        %2308 = vmatprep.subr.mxu0 0.0
        %2309 = vmatpush1.msra.mxu0 %v2288
        %2310 = vmatprep.subr.mxu0 0.0
        %2311 = vmatpush1.msra.mxu0 %v2289
        %2312 = vmatprep.subr.mxu0 0.0
        %2313 = vmatpush1.msra.mxu0 %v2290
        %2314 = vmatprep.subr.mxu0 0.0
        %2315 = vmatpush1.msra.mxu0 %v2291
        %2316 = vmatprep.subr.mxu0 0.0
        %2317 = vmatpush1.msra.mxu0 %v2292
        %2318 = vmatprep.subr.mxu0 0.0
        %2319 = vmatpush1.msra.mxu0 %v2293
        %2320 = vmatprep.subr.mxu0 0.0
        %2321 = vmatpush1.msra.mxu0 %v2294
        %2322 = vmatprep.subr.mxu0 0.0
        %2323 = vmatpush1.msra.mxu0 %v2295
        %2324 = vmatprep.subr.mxu0 0.0
        %2325 = vmatpush1.msra.mxu0 %v2296
        %2326 = vmatprep.subr.mxu0 0.0
        %2327 = vmatpush1.msra.mxu0 %v2297
        %2328 = vmatprep.subr.mxu0 0.0
        %2329 = vmatpush1.msra.mxu0 %v2298
        %2330 = vmatprep.subr.mxu0 0.0
        %2331 = vmatpush1.msra.mxu0 %v2299
        %2332 = vmatprep.subr.mxu0 0.0
        %2333 = vmatpush1.msra.mxu0 0.0
        %2334 = vmatprep.subr.mxu0 0.0
        %2335 = vmatpush1.msra.mxu0 0.0
        %2336 = vmatprep.subr.mxu0 0.0
        %2337 = vmatpush1.msra.mxu0 0.0
        %2338 = vmatprep.subr.mxu0 0.0
        %2339 = vmatpush1.msra.mxu0 0.0
        %2340 = vmatprep.subr.mxu0 0.0
        %2341 = vmatpush1.msra.mxu0 0.0
        %2342 = vmatprep.subr.mxu0 0.0
        %2343 = vmatpush1.msra.mxu0 0.0
        %2344 = vmatprep.subr.mxu0 0.0
        %2345 = vmatpush1.msra.mxu0 0.0
        %2346 = vmatprep.subr.mxu0 0.0
        %2347 = vmatpush1.msra.mxu0 0.0
        %2348 = vmatprep.subr.mxu0 0.0
        %2349 = vmatpush1.msra.mxu0 0.0
        %2350 = vmatprep.subr.mxu0 0.0
        %2351 = vmatpush1.msra.mxu0 0.0
        %2352 = vmatprep.subr.mxu0 0.0
        %2353 = vmatpush1.msra.mxu0 0.0
        %2354 = vmatprep.subr.mxu0 0.0
        %2355 = vmatpush1.msra.mxu0 0.0
        %2356 = vmatprep.subr.mxu0 0.0
        %2357 = vmatpush1.msra.mxu0 0.0
        %2358 = vmatprep.subr.mxu0 0.0
        %2359 = vmatpush1.msra.mxu0 0.0
        %2360 = vmatprep.subr.mxu0 0.0
        %2361 = vmatpush1.msra.mxu0 0.0
        %2362 = vmatprep.subr.mxu0 0.0
        %2363 = vmatpush1.msra.mxu0 0.0
        %2364 = vmatprep.mubr.f32.mxu0 0.0
        %2365 = vmatmul.mubr.f32.gmra.mrb[0].mxu0 %v2231
        %v2366 = vpop.f32.mrb[0].mxu0
        %v2367 = vadd.f32 0.0, %v2366
        %v2368 = vpop.f32.mrb[0].mxu0
        %2369 = vmatprep.mubr.f32.mxu0 0.0
        %2370 = vmatmul.mubr.f32.gmra.mrb[0].mxu0 %v2232
        %v2371 = vpop.f32.mrb[0].mxu0
        %v2372 = vadd.f32 0.0, %v2371
        %v2373 = vpop.f32.mrb[0].mxu0
        %2374 = vmatprep.mubr.f32.mxu0 0.0
        %2375 = vmatmul.mubr.f32.gmra.mrb[0].mxu0 %v2233
        %v2376 = vpop.f32.mrb[0].mxu0
        %v2377 = vadd.f32 0.0, %v2376
        %v2378 = vpop.f32.mrb[0].mxu0
        %2379 = vmatprep.mubr.f32.mxu0 0.0
        %2380 = vmatmul.mubr.f32.gmra.mrb[0].mxu0 %v2234
        %v2381 = vpop.f32.mrb[0].mxu0
        %v2382 = vadd.f32 0.0, %v2381
        %v2383 = vpop.f32.mrb[0].mxu0
        %2384 = vmatprep.mubr.f32.mxu0 0.0
        %2385 = vmatmul.mubr.f32.gmra.mrb[0].mxu0 %v2235
        %v2386 = vpop.f32.mrb[0].mxu0
        %v2387 = vadd.f32 0.0, %v2386
        %v2388 = vpop.f32.mrb[0].mxu0
        %2389 = vdwg.mxu0
        %v2390 = vmul.f32 %v2367, %v2170
        %v2391 = vmul.f32 %v2372, %v2171
        %v2392 = vmul.f32 %v2377, %v2172
        %v2393 = vmul.f32 %v2382, %v2173
        %v2394 = vmul.f32 %v2387, %v2174
        %v2395 = vsel %vm520, %v2390, 0.0
        %v2396 = vsel %vm520, %v2391, 0.0
        %v2397 = vadd.f32 %v2395, %v2396
        %v2398 = vsel %vm520, %v2392, 0.0
        %v2399 = vadd.f32 %v2397, %v2398
        %v2400 = vsel %vm520, %v2393, 0.0
        %v2401 = vadd.f32 %v2399, %v2400
        %v2402 = vsel %vm520, %v2394, 0.0
        %v2403 = vadd.f32 %v2401, %v2402
        %2404 = vadd.xlane.f32.xlu0 %v2403
        %v2405 = vpop.xlane.xlu0 %2404
        %v2406 = vrot.slane %v2405, 4
        %v2407 = vadd.f32 %v2405, %v2406
        %v2408 = vrot.slane %v2407, 2
        %v2409 = vadd.f32 %v2407, %v2408
        %v2410 = vrot.slane %v2409, 1
        %v2411 = vadd.f32 %v2409, %v2410
        %s2412 = vtos %v2411
        %s2413 = sadd.f32 %s2412, 0.0
        %v2414 = vsub.f32 %v404, %v403
        %v2415 = vsub.f32 %v405, %v404
        %v2416 = vsub.f32 %v406, %v405
        %v2417 = vsub.f32 %v407, %v406
        %v2418 = vsub.f32 %v403, %v407
        %v2419 = vand.u32 2147483647, %v2414
        %v2420 = vand.u32 2147483647, %v2415
        %v2421 = vand.u32 2147483647, %v2416
        %v2422 = vand.u32 2147483647, %v2417
        %v2423 = vand.u32 2147483647, %v2418
        %v2424 = vmul.f32 %v275, %v274
        %v2425 = vmul.f32 %v276, %v275
        %v2426 = vmul.f32 %v277, %v276
        %v2427 = vmul.f32 %v278, %v277
        %v2428 = vmul.f32 %v274, %v278
        %v2429 = vmul.f32 %v2419, %v2424
        %v2430 = vmul.f32 %v2420, %v2425
        %v2431 = vmul.f32 %v2421, %v2426
        %v2432 = vmul.f32 %v2422, %v2427
        %v2433 = vmul.f32 %v2423, %v2428
        %vm2434 = vcmp.lt.s32.totalorder %v409, 32
        %vm2435 = vcmp.lt.s32.totalorder %v410, 32
        %vm2436 = vcmp.lt.s32.totalorder %v411, 32
        %vm2437 = vcmp.lt.s32.totalorder %v412, 32
        %vm2438 = vcmp.lt.s32.totalorder %v413, 32
        %v2439 = vsel %vm2434, 1, 0
        %v2440 = vsel %vm2435, 1, 0
        %v2441 = vsel %vm2436, 1, 0
        %v2442 = vsel %vm2437, 1, 0
        %v2443 = vsel %vm2438, 1, 0
        %v2444 = vcvt.s32.f32 %v2439
        %v2445 = vcvt.s32.f32 %v2440
        %v2446 = vcvt.s32.f32 %v2441
        %v2447 = vcvt.s32.f32 %v2442
        %v2448 = vcvt.s32.f32 %v2443
        %v2449 = vmul.f32 %v2170, %v2444
        %v2450 = vmul.f32 %v2171, %v2445
        %v2451 = vmul.f32 %v2172, %v2446
        %v2452 = vmul.f32 %v2173, %v2447
        %v2453 = vmul.f32 %v2174, %v2448
        %2454 = vmatprep.subr.mxu0 0.0
        %2455 = vmatpush1.msra.mxu0 %v2170
        %2456 = vmatprep.subr.mxu0 0.0
        %2457 = vmatpush1.msra.mxu0 %v2171
        %2458 = vmatprep.subr.mxu0 0.0
        %2459 = vmatpush1.msra.mxu0 %v2172
        %2460 = vmatprep.subr.mxu0 0.0
        %2461 = vmatpush1.msra.mxu0 %v2173
        %2462 = vmatprep.subr.mxu0 0.0
        %2463 = vmatpush1.msra.mxu0 %v2174
        %2464 = vmatprep.subr.mxu0 0.0
        %2465 = vmatpush1.msra.mxu0 %v2175
        %2466 = vmatprep.subr.mxu0 0.0
        %2467 = vmatpush1.msra.mxu0 %v2176
        %2468 = vmatprep.subr.mxu0 0.0
        %2469 = vmatpush1.msra.mxu0 %v2177
        %2470 = vmatprep.subr.mxu0 0.0
        %2471 = vmatpush1.msra.mxu0 %v2178
        %2472 = vmatprep.subr.mxu0 0.0
        %2473 = vmatpush1.msra.mxu0 %v2179
        %2474 = vmatprep.subr.mxu0 0.0
        %2475 = vmatpush1.msra.mxu0 %v2180
        %2476 = vmatprep.subr.mxu0 0.0
        %2477 = vmatpush1.msra.mxu0 %v2181
        %2478 = vmatprep.subr.mxu0 0.0
        %2479 = vmatpush1.msra.mxu0 %v2182
        %2480 = vmatprep.subr.mxu0 0.0
        %2481 = vmatpush1.msra.mxu0 %v2183
        %2482 = vmatprep.subr.mxu0 0.0
        %2483 = vmatpush1.msra.mxu0 %v2184
        %2484 = vmatprep.subr.mxu0 0.0
        %2485 = vmatpush1.msra.mxu0 %v2185
        %2486 = vmatprep.subr.mxu0 0.0
        %2487 = vmatpush1.msra.mxu0 0.0
        %2488 = vmatprep.subr.mxu0 0.0
        %2489 = vmatpush1.msra.mxu0 0.0
        %2490 = vmatprep.subr.mxu0 0.0
        %2491 = vmatpush1.msra.mxu0 0.0
        %2492 = vmatprep.subr.mxu0 0.0
        %2493 = vmatpush1.msra.mxu0 0.0
        %2494 = vmatprep.subr.mxu0 0.0
        %2495 = vmatpush1.msra.mxu0 0.0
        %2496 = vmatprep.subr.mxu0 0.0
        %2497 = vmatpush1.msra.mxu0 0.0
        %2498 = vmatprep.subr.mxu0 0.0
        %2499 = vmatpush1.msra.mxu0 0.0
        %2500 = vmatprep.subr.mxu0 0.0
        %2501 = vmatpush1.msra.mxu0 0.0
        %2502 = vmatprep.subr.mxu0 0.0
        %2503 = vmatpush1.msra.mxu0 0.0
        %2504 = vmatprep.subr.mxu0 0.0
        %2505 = vmatpush1.msra.mxu0 0.0
        %2506 = vmatprep.subr.mxu0 0.0
        %2507 = vmatpush1.msra.mxu0 0.0
        %2508 = vmatprep.subr.mxu0 0.0
        %2509 = vmatpush1.msra.mxu0 0.0
        %2510 = vmatprep.subr.mxu0 0.0
        %2511 = vmatpush1.msra.mxu0 0.0
        %2512 = vmatprep.subr.mxu0 0.0
        %2513 = vmatpush1.msra.mxu0 0.0
        %2514 = vmatprep.subr.mxu0 0.0
        %2515 = vmatpush1.msra.mxu0 0.0
        %2516 = vmatprep.subr.mxu0 0.0
        %2517 = vmatpush1.msra.mxu0 0.0
        %2518 = vmatprep.mubr.f32.mxu0 0.0
        %2519 = vmatmul.mubr.f32.gmra.mrb[0].mxu0 %v2429
        %v2520 = vpop.f32.mrb[0].mxu0
        %v2521 = vadd.f32 0.0, %v2520
        %v2522 = vpop.f32.mrb[0].mxu0
        %2523 = vmatprep.mubr.f32.mxu0 0.0
        %2524 = vmatmul.mubr.f32.gmra.mrb[0].mxu0 %v2430
        %v2525 = vpop.f32.mrb[0].mxu0
        %v2526 = vadd.f32 0.0, %v2525
        %v2527 = vpop.f32.mrb[0].mxu0
        %2528 = vmatprep.mubr.f32.mxu0 0.0
        %2529 = vmatmul.mubr.f32.gmra.mrb[0].mxu0 %v2431
        %v2530 = vpop.f32.mrb[0].mxu0
        %v2531 = vadd.f32 0.0, %v2530
        %v2532 = vpop.f32.mrb[0].mxu0
        %2533 = vmatprep.mubr.f32.mxu0 0.0
        %2534 = vmatmul.mubr.f32.gmra.mrb[0].mxu0 %v2432
        %v2535 = vpop.f32.mrb[0].mxu0
        %v2536 = vadd.f32 0.0, %v2535
        %v2537 = vpop.f32.mrb[0].mxu0
        %2538 = vmatprep.mubr.f32.mxu0 0.0
        %2539 = vmatmul.mubr.f32.gmra.mrb[0].mxu0 %v2433
        %v2540 = vpop.f32.mrb[0].mxu0
        %v2541 = vadd.f32 0.0, %v2540
        %v2542 = vpop.f32.mrb[0].mxu0
        %2543 = vdwg.mxu0
        %v2544 = vmul.f32 %v2521, %v2449
        %v2545 = vmul.f32 %v2526, %v2450
        %v2546 = vmul.f32 %v2531, %v2451
        %v2547 = vmul.f32 %v2536, %v2452
        %v2548 = vmul.f32 %v2541, %v2453
        %v2549 = vsel %vm520, %v2544, 0.0
        %v2550 = vsel %vm520, %v2545, 0.0
        %v2551 = vadd.f32 %v2549, %v2550
        %v2552 = vsel %vm520, %v2546, 0.0
        %v2553 = vadd.f32 %v2551, %v2552
        %v2554 = vsel %vm520, %v2547, 0.0
        %v2555 = vadd.f32 %v2553, %v2554
        %v2556 = vsel %vm520, %v2548, 0.0
        %v2557 = vadd.f32 %v2555, %v2556
        %2558 = vadd.xlane.f32.xlu0 %v2557
        %v2559 = vpop.xlane.xlu0 %2558
        %v2560 = vrot.slane %v2559, 4
        %v2561 = vadd.f32 %v2559, %v2560
        %v2562 = vrot.slane %v2561, 2
        %v2563 = vadd.f32 %v2561, %v2562
        %v2564 = vrot.slane %v2563, 1
        %v2565 = vadd.f32 %v2563, %v2564
        %s2566 = vtos %v2565
        %s2567 = sadd.f32 %s2413, %s2566
        %2568 = vmatprep.subr.mxu0 0.0
        %2569 = vmatpush1.msra.mxu0 %v2170
        %2570 = vmatprep.subr.mxu0 0.0
        %2571 = vmatpush1.msra.mxu0 %v2171
        %2572 = vmatprep.subr.mxu0 0.0
        %2573 = vmatpush1.msra.mxu0 %v2172
        %2574 = vmatprep.subr.mxu0 0.0
        %2575 = vmatpush1.msra.mxu0 %v2173
        %2576 = vmatprep.subr.mxu0 0.0
        %2577 = vmatpush1.msra.mxu0 %v2174
        %2578 = vmatprep.subr.mxu0 0.0
        %2579 = vmatpush1.msra.mxu0 %v2175
        %2580 = vmatprep.subr.mxu0 0.0
        %2581 = vmatpush1.msra.mxu0 %v2176
        %2582 = vmatprep.subr.mxu0 0.0
        %2583 = vmatpush1.msra.mxu0 %v2177
        %2584 = vmatprep.subr.mxu0 0.0
        %2585 = vmatpush1.msra.mxu0 %v2178
        %2586 = vmatprep.subr.mxu0 0.0
        %2587 = vmatpush1.msra.mxu0 %v2179
        %2588 = vmatprep.subr.mxu0 0.0
        %2589 = vmatpush1.msra.mxu0 %v2180
        %2590 = vmatprep.subr.mxu0 0.0
        %2591 = vmatpush1.msra.mxu0 %v2181
        %2592 = vmatprep.subr.mxu0 0.0
        %2593 = vmatpush1.msra.mxu0 %v2182
        %2594 = vmatprep.subr.mxu0 0.0
        %2595 = vmatpush1.msra.mxu0 %v2183
        %2596 = vmatprep.subr.mxu0 0.0
        %2597 = vmatpush1.msra.mxu0 %v2184
        %2598 = vmatprep.subr.mxu0 0.0
        %2599 = vmatpush1.msra.mxu0 %v2185
        %2600 = vmatprep.subr.mxu0 0.0
        %2601 = vmatpush1.msra.mxu0 0.0
        %2602 = vmatprep.subr.mxu0 0.0
        %2603 = vmatpush1.msra.mxu0 0.0
        %2604 = vmatprep.subr.mxu0 0.0
        %2605 = vmatpush1.msra.mxu0 0.0
        %2606 = vmatprep.subr.mxu0 0.0
        %2607 = vmatpush1.msra.mxu0 0.0
        %2608 = vmatprep.subr.mxu0 0.0
        %2609 = vmatpush1.msra.mxu0 0.0
        %2610 = vmatprep.subr.mxu0 0.0
        %2611 = vmatpush1.msra.mxu0 0.0
        %2612 = vmatprep.subr.mxu0 0.0
        %2613 = vmatpush1.msra.mxu0 0.0
        %2614 = vmatprep.subr.mxu0 0.0
        %2615 = vmatpush1.msra.mxu0 0.0
        %2616 = vmatprep.subr.mxu0 0.0
        %2617 = vmatpush1.msra.mxu0 0.0
        %2618 = vmatprep.subr.mxu0 0.0
        %2619 = vmatpush1.msra.mxu0 0.0
        %2620 = vmatprep.subr.mxu0 0.0
        %2621 = vmatpush1.msra.mxu0 0.0
        %2622 = vmatprep.subr.mxu0 0.0
        %2623 = vmatpush1.msra.mxu0 0.0
        %2624 = vmatprep.subr.mxu0 0.0
        %2625 = vmatpush1.msra.mxu0 0.0
        %2626 = vmatprep.subr.mxu0 0.0
        %2627 = vmatpush1.msra.mxu0 0.0
        %2628 = vmatprep.subr.mxu0 0.0
        %2629 = vmatpush1.msra.mxu0 0.0
        %2630 = vmatprep.subr.mxu0 0.0
        %2631 = vmatpush1.msra.mxu0 0.0
        %2632 = vmatprep.mubr.f32.mxu0 0.0
        %2633 = vmatmul.mubr.f32.gmra.mrb[0].mxu0 %v274
        %v2634 = vpop.f32.mrb[0].mxu0
        %v2635 = vadd.f32 0.0, %v2634
        %v2636 = vpop.f32.mrb[0].mxu0
        %2637 = vmatprep.mubr.f32.mxu0 0.0
        %2638 = vmatmul.mubr.f32.gmra.mrb[0].mxu0 %v275
        %v2639 = vpop.f32.mrb[0].mxu0
        %v2640 = vadd.f32 0.0, %v2639
        %v2641 = vpop.f32.mrb[0].mxu0
        %2642 = vmatprep.mubr.f32.mxu0 0.0
        %2643 = vmatmul.mubr.f32.gmra.mrb[0].mxu0 %v276
        %v2644 = vpop.f32.mrb[0].mxu0
        %v2645 = vadd.f32 0.0, %v2644
        %v2646 = vpop.f32.mrb[0].mxu0
        %2647 = vmatprep.mubr.f32.mxu0 0.0
        %2648 = vmatmul.mubr.f32.gmra.mrb[0].mxu0 %v277
        %v2649 = vpop.f32.mrb[0].mxu0
        %v2650 = vadd.f32 0.0, %v2649
        %v2651 = vpop.f32.mrb[0].mxu0
        %2652 = vmatprep.mubr.f32.mxu0 0.0
        %2653 = vmatmul.mubr.f32.gmra.mrb[0].mxu0 %v278
        %v2654 = vpop.f32.mrb[0].mxu0
        %v2655 = vadd.f32 0.0, %v2654
        %v2656 = vpop.f32.mrb[0].mxu0
        %2657 = vdwg.mxu0
        %v2658 = vmul.f32 %v2635, %v2170
        %v2659 = vmul.f32 %v2640, %v2171
        %v2660 = vmul.f32 %v2645, %v2172
        %v2661 = vmul.f32 %v2650, %v2173
        %v2662 = vmul.f32 %v2655, %v2174
        %v2663 = vsel %vm520, %v2658, 0.0
        %v2664 = vsel %vm520, %v2659, 0.0
        %v2665 = vadd.f32 %v2663, %v2664
        %v2666 = vsel %vm520, %v2660, 0.0
        %v2667 = vadd.f32 %v2665, %v2666
        %v2668 = vsel %vm520, %v2661, 0.0
        %v2669 = vadd.f32 %v2667, %v2668
        %v2670 = vsel %vm520, %v2662, 0.0
        %v2671 = vadd.f32 %v2669, %v2670
        %2672 = vadd.xlane.f32.xlu0 %v2671
        %v2673 = vpop.xlane.xlu0 %2672
        %v2674 = vrot.slane %v2673, 4
        %v2675 = vadd.f32 %v2673, %v2674
        %v2676 = vrot.slane %v2675, 2
        %v2677 = vadd.f32 %v2675, %v2676
        %v2678 = vrot.slane %v2677, 1
        %v2679 = vadd.f32 %v2677, %v2678
        %s2680 = vtos %v2679
        %v2681 = vlaneseq
        %v2682 = vand.u32 %v2681, 127
        %vm2683 = vcmp.eq.s32.totalorder %v2682, 0
        %v2684 = vsel %vm2683, 1, 0
        %v2685 = vcvt.s32.f32 %v2684
        %v2686 = vmul.f32 %v2685, %v386
        %v2687 = vadd.f32 %v2686, 0.0
        %vm2688 = vcmp.eq.s32.totalorder %v2682, 1
        %v2689 = vsel %vm2688, 1, 0
        %v2690 = vcvt.s32.f32 %v2689
        %v2691 = vstv %s327
        %v2692 = vmul.f32 %v2690, %v2691
        %v2693 = vadd.f32 %v2687, %v2692
        %vm2694 = vcmp.eq.s32.totalorder %v2682, 2
        %v2695 = vsel %vm2694, 1, 0
        %v2696 = vcvt.s32.f32 %v2695
        %v2697 = vstv %s538
        %v2698 = vmul.f32 %v2696, %v2697
        %v2699 = vadd.f32 %v2693, %v2698
        %vm2700 = vcmp.eq.s32.totalorder %v2682, 3
        %v2701 = vsel %vm2700, 1, 0
        %v2702 = vcvt.s32.f32 %v2701
        %v2703 = vstv %s937
        %v2704 = vmul.f32 %v2702, %v2703
        %v2705 = vadd.f32 %v2699, %v2704
        %vm2706 = vcmp.eq.s32.totalorder %v2682, 4
        %v2707 = vsel %vm2706, 1, 0
        %v2708 = vcvt.s32.f32 %v2707
        %v2709 = vstv %s1416
        %v2710 = vmul.f32 %v2708, %v2709
        %v2711 = vadd.f32 %v2705, %v2710
        %vm2712 = vcmp.eq.s32.totalorder %v2682, 5
        %v2713 = vsel %vm2712, 1, 0
        %v2714 = vcvt.s32.f32 %v2713
        %v2715 = vstv %s2008
        %v2716 = vmul.f32 %v2714, %v2715
        %v2717 = vadd.f32 %v2711, %v2716
        %vm2718 = vcmp.eq.s32.totalorder %v2682, 6
        %v2719 = vsel %vm2718, 1, 0
        %v2720 = vcvt.s32.f32 %v2719
        %v2721 = vstv %s2567
        %v2722 = vmul.f32 %v2720, %v2721
        %v2723 = vadd.f32 %v2717, %v2722
        %vm2724 = vcmp.eq.s32.totalorder %v2682, 7
        %v2725 = vsel %vm2724, 1, 0
        %v2726 = vcvt.s32.f32 %v2725
        %v2727 = vstv %s1529
        %v2728 = vmul.f32 %v2726, %v2727
        %v2729 = vadd.f32 %v2723, %v2728
        %vm2730 = vcmp.eq.s32.totalorder %v2682, 8
        %v2731 = vsel %vm2730, 1, 0
        %v2732 = vcvt.s32.f32 %v2731
        %v2733 = vstv %s2121
        %v2734 = vmul.f32 %v2732, %v2733
        %v2735 = vadd.f32 %v2729, %v2734
        %vm2736 = vcmp.eq.s32.totalorder %v2682, 9
        %v2737 = vsel %vm2736, 1, 0
        %v2738 = vcvt.s32.f32 %v2737
        %v2739 = vstv %s2680
        %v2740 = vmul.f32 %v2738, %v2739
        %v2741 = vadd.f32 %v2735, %v2740
        %2742 = vst [vmem:[%s263] sm:$0x1] %v2741
        %p2743 = scmp.lt.s32.totalorder %s20, 1
        %s2744 = scalar_select %p2743, %s20, 1
        %s2745 = scalar_lea.vmem %s3, %s2744
        // Predicated region
        $region45: #{scale_and_shift_invariant_loss.1} parent=31 // pred_check
          %p2746 = pneg %p116
        $region46: #{scale_and_shift_invariant_loss.1} parent=31 // pred_check_branch
          %2748 = sbr.rel (%p2746) target = $region48
        $region47: #{scale_and_shift_invariant_loss.1} parent=31 // pred_region
          _
        $region48: #{scale_and_shift_invariant_loss.1} parent=31 // pred_fallthru
          _
      $region32: #{scale_and_shift_invariant_loss.1} parent=5 // pred_fallthru
        _
      %p2749 = scmp.le.s32.totalorder 2, %s15
      // Predicated region
      $region49: #{scale_and_shift_invariant_loss.1} parent=5 // pred_check
        %p2750 = pneg %p2749
      $region50: #{scale_and_shift_invariant_loss.1} parent=5 // pred_check_branch
        %2752 = sbr.rel (%p2750) target = $region52
      $region51: #{scale_and_shift_invariant_loss.1} parent=5 // pred_region
        %s2753 = ssub.s32 %s15, 2
        // Predicated region
        $region53: #{scale_and_shift_invariant_loss.1} parent=51 // pred_check
          %p2754 = pneg %p122
        $region54: #{scale_and_shift_invariant_loss.1} parent=51 // pred_check_branch
          %2756 = sbr.rel (%p2754) target = $region56
        $region55: #{scale_and_shift_invariant_loss.1} parent=51 // pred_region
          %p2757 = scmp.lt.s32.totalorder %s21, 1
          %s2758 = scalar_select %p2757, %s21, 1
          %s2759 = scalar_lea.vmem %s3, %s2758
        $region56: #{scale_and_shift_invariant_loss.1} parent=51 // pred_fallthru
          _
      $region52: #{scale_and_shift_invariant_loss.1} parent=5 // pred_fallthru
        _
    $region6: #{scale_and_shift_invariant_loss.1} parent=1 // loop_footer
      %s19 = sadd.s32 1, %s15
    $region7: #{scale_and_shift_invariant_loss.1} parent=1 // loop_footer_branch
      %14 = sbr.rel target = $region3
    $region8: #{scale_and_shift_invariant_loss.1} parent=1 // loop_exit
      _
    %2760 = vsyncpa [#allocation3], 1
    %s2761 = scalar_lea.sflag [#allocation3], 1
    %2762 = vsyncpa %s2761, 1
    %2763 = vsyncpa [#allocation5], 1
    %s2764 = scalar_lea.sflag [#allocation5], 1
    %2765 = vsyncpa %s2764, 1

</llo_original>
